<compile_context>
chip_gen: v6e
topology: v6e:2x2x1
jax: 0.10.0
libtpu: 0.0.40
codegen_flags: <defaults>
</compile_context>

<pallas_src>
import functools
import math

import jax
import jax.numpy as jnp
import numpy as np
from jax import lax
from jax.experimental import pallas as pl
from jax.experimental.pallas import tpu as pltpu


def _layer_norm(v, eps=1e-5):
  mu = jnp.mean(v, axis=-1, keepdims=True)
  var = jnp.mean((v - mu) ** 2, axis=-1, keepdims=True)
  return (v - mu) * lax.rsqrt(var + eps)


def encoder_attention_kernel(
    x_ref, wkv_ref, bkv_ref, wout_ref, bout_ref, w1_ref, b1_ref, w2_ref, b2_ref,
    o_ref, *, num_heads, key_dim, value_dim, causal_mask,
):
  """EncoderAttention forward for a block of TB batch elements (self-attention)."""
  TB, S, D = x_ref.shape
  O = o_ref.shape[-1]
  H = num_heads
  HK = H * key_dim

  x = x_ref[...].astype(jnp.float32)            # (TB, S, D)
  x2d = x.reshape(TB * S, D)                    # fold batch*seq into MXU rows

  # ---- fused per-head key/value projections: ONE large matmul --------------
  kv = jnp.dot(x2d, wkv_ref[...], preferred_element_type=jnp.float32) + bkv_ref[...]
  kv = kv.reshape(TB, S, H * (key_dim + value_dim))
  keys = kv[:, :, :HK]                          # (TB, S, H*Kd)
  vals = kv[:, :, HK:]                          # (TB, S, H*Vd)

  # ---- causal mask built once (hoisted out of the head loop) ---------------
  if causal_mask:
    row = lax.broadcasted_iota(jnp.int32, (S, S), 0)
    col = lax.broadcasted_iota(jnp.int32, (S, S), 1)
    # Large finite negative instead of -inf: robust if a row is ever fully masked.
    add_mask = jnp.where(col > row, jnp.float32(-1e30), jnp.float32(0.0))
  scale = jnp.float32(1.0 / math.sqrt(key_dim))

  # ---- attention per head (batched over TB), accumulate output projection --
  y = jnp.zeros((TB, S, O), jnp.float32)
  for h in range(H):                            # static unroll; H is small
    k_h = keys[:, :, h * key_dim:(h + 1) * key_dim]        # (TB, S, Kd)
    v_h = vals[:, :, h * value_dim:(h + 1) * value_dim]    # (TB, S, Vd)
    # Self-attention: query == key (matches the PyTorch reference exactly).
    att = jnp.einsum("bqk,bsk->bqs", k_h, k_h,
                     preferred_element_type=jnp.float32) * scale
    if causal_mask:
      att = att + add_mask
    att = att - jnp.max(att, axis=-1, keepdims=True)
    p = jnp.exp(att)
    # Exact divide (approx reciprocal would cost ~1e-4 rel error vs reference).
    p = p / jnp.sum(p, axis=-1, keepdims=True)
    ctx = jnp.einsum("bqs,bsv->bqv", p, v_h,
                     preferred_element_type=jnp.float32)   # (TB, S, Vd)
    y = y + jnp.einsum("bqv,vo->bqo", ctx, wout_ref[h],
                       preferred_element_type=jnp.float32)
  y = y + bout_ref[...]                          # (1, O) broadcasts

  # ---- residual + LayerNorm (elementwise_affine=False, eps=1e-5) -----------
  out = _layer_norm(y + x)
  out2d = out.reshape(TB * S, O)

  # ---- 2-layer MLP with ReLU, M = TB*S rows on the MXU ----------------------
  h1 = jnp.dot(out2d, w1_ref[...], preferred_element_type=jnp.float32) + b1_ref[...]
  h1 = jnp.maximum(h1, 0.0)
  z = jnp.dot(h1, w2_ref[...], preferred_element_type=jnp.float32) + b2_ref[...]

  # ---- residual + LayerNorm --------------------------------------------------
  z = _layer_norm(z.reshape(TB, S, O) + out)
  o_ref[...] = z.astype(o_ref.dtype)


def encoder_attention(x, params, *, num_heads, key_dim, mask, block_b=8):
  N, S, D = x.shape
  H = num_heads
  Kd = key_dim
  Vd = params["wv"].shape[-1]
  O = params["wout"].shape[-1]
  Fc = params["w1"].shape[-1]

  # Pre-pack the per-head projection weights into one fused weight / bias,
  # and reshape the output projection per head (avoids head concat in-kernel).
  w_kv = jnp.concatenate(
      [jnp.transpose(params["wk"], (1, 0, 2)).reshape(D, H * Kd),
       jnp.transpose(params["wv"], (1, 0, 2)).reshape(D, H * Vd)], axis=-1)
  b_kv = jnp.concatenate(
      [params["bk"].reshape(1, H * Kd), params["bv"].reshape(1, H * Vd)], axis=-1)
  w_out = params["wout"].reshape(H, Vd, O)
  weights = (w_kv, b_kv, w_out, params["bout"], params["w1"], params["b1"],
             params["w2"], params["b2"])

  # Batch TB elements per grid step; pad N up to a multiple of TB.
  TB = min(block_b, N)
  n_blocks = pl.cdiv(N, TB)
  Npad = n_blocks * TB
  if Npad != N:
    x = jnp.pad(x, ((0, Npad - N), (0, 0), (0, 0)))

  kernel = functools.partial(
      encoder_attention_kernel,
      num_heads=H, key_dim=Kd, value_dim=Vd, causal_mask=mask)

  def full_spec(a):
    nd = a.ndim
    return pl.BlockSpec(a.shape, lambda b, _nd=nd: (0,) * _nd)

  in_specs = [pl.BlockSpec((TB, S, D), lambda b: (b, 0, 0))]
  in_specs += [full_spec(w) for w in weights]

  flops = Npad * (
      2 * S * D * H * (Kd + Vd)             # fused KV projection
      + H * 2 * S * S * (Kd + Vd)           # attention scores + context
      + H * 2 * S * Vd * O                  # output projection (per-head accumulate)
      + 2 * S * O * Fc + 2 * S * Fc * O)    # MLP
  transcendentals = Npad * (H * S * S + 2 * S)
  bytes_accessed = 4 * (Npad * S * D + Npad * S * O
                        + sum(int(np.prod(w.shape)) for w in weights))

  out = pl.pallas_call(
      kernel,
      out_shape=jax.ShapeDtypeStruct((Npad, S, O), x.dtype),
      grid_spec=pltpu.PrefetchScalarGridSpec(
          num_scalar_prefetch=0,
          grid=(n_blocks,),
          in_specs=in_specs,
          out_specs=pl.BlockSpec((TB, S, O), lambda b: (b, 0, 0)),
      ),
      compiler_params=pltpu.CompilerParams(
          dimension_semantics=("parallel",),
          vmem_limit_bytes=32 * 1024 * 1024),
      cost_estimate=pl.CostEstimate(
          flops=int(flops),
          transcendentals=int(transcendentals),
          bytes_accessed=int(bytes_accessed)),
  )(x, *weights)
  return out[:N]


def reference(x, params, *, num_heads, key_dim, mask):
  """Pure-JAX mirror of the PyTorch EncoderAttention forward (self-attention)."""
  def layer_norm(v):
    mu = jnp.mean(v, axis=-1, keepdims=True)
    var = jnp.mean((v - mu) ** 2, axis=-1, keepdims=True)
    return (v - mu) / jnp.sqrt(var + 1e-5)

  N, S, D = x.shape
  heads = []
  for h in range(num_heads):
    key = x @ params["wk"][h] + params["bk"][h]
    value = x @ params["wv"][h] + params["bv"][h]
    att = jnp.einsum("nqk,nsk->nqs", key, key) / np.sqrt(key_dim)
    if mask:
      m = jnp.triu(jnp.ones((S, S), bool), k=1)
      att = jnp.where(m, -jnp.inf, att)
    att = jax.nn.softmax(att, axis=-1)
    heads.append(jnp.einsum("nqs,nsv->nqv", att, value))
  y = jnp.concatenate(heads, -1) @ params["wout"] + params["bout"]
  out = layer_norm(y + x)
  z = jnp.maximum(out @ params["w1"] + params["b1"], 0.0) @ params["w2"] + params["b2"]
  return layer_norm(z + out)


if __name__ == "__main__":
  # Small config (residual requires in_dim == out_dim); N chosen so the grid
  # has >= 2 steps with block_b=8 (keeps both v7x TensorCores busy).
  N, S = 16, 8
  in_dim = out_dim = 32
  key_dim = 16
  value_dim = 16
  num_heads = 2
  fc_dim = 64
  mask = True          # causal self-attention masking, as in the module

  key0 = jax.random.PRNGKey(0)
  ks = jax.random.split(key0, 12)
  scale = 0.1
  params = {
      "wk":   scale * jax.random.normal(ks[0], (num_heads, in_dim, key_dim), jnp.float32),
      "bk":   scale * jax.random.normal(ks[1], (num_heads, 1, key_dim), jnp.float32),
      "wv":   scale * jax.random.normal(ks[2], (num_heads, in_dim, value_dim), jnp.float32),
      "bv":   scale * jax.random.normal(ks[3], (num_heads, 1, value_dim), jnp.float32),
      "wout": scale * jax.random.normal(ks[4], (num_heads * value_dim, out_dim), jnp.float32),
      "bout": scale * jax.random.normal(ks[5], (1, out_dim), jnp.float32),
      "w1":   scale * jax.random.normal(ks[6], (out_dim, fc_dim), jnp.float32),
      "b1":   scale * jax.random.normal(ks[7], (1, fc_dim), jnp.float32),
      "w2":   scale * jax.random.normal(ks[8], (fc_dim, out_dim), jnp.float32),
      "b2":   scale * jax.random.normal(ks[9], (1, out_dim), jnp.float32),
  }
  x = jax.random.normal(ks[10], (N, S, in_dim), jnp.float32)

  out = encoder_attention(x, params, num_heads=num_heads, key_dim=key_dim,
                          mask=mask, block_b=8)
  out = jax.block_until_ready(out)

  ref = reference(x, params, num_heads=num_heads, key_dim=key_dim, mask=mask)
  np.testing.assert_allclose(np.asarray(out), np.asarray(ref), rtol=1e-5, atol=1e-5)

  print("KERNEL_OK")
</pallas_src>

<mosaic_0001>
module attributes {stable_mosaic.version = 11 : i64} {
  func.func @encoder_attention_kernel(%arg0: i32, %arg1: memref<8x8x32xf32, #tpu.memory_space<vmem>>, %arg2: memref<32x64xf32, #tpu.memory_space<vmem>>, %arg3: memref<1x64xf32, #tpu.memory_space<vmem>>, %arg4: memref<2x16x32xf32, #tpu.memory_space<vmem>>, %arg5: memref<1x32xf32, #tpu.memory_space<vmem>>, %arg6: memref<32x64xf32, #tpu.memory_space<vmem>>, %arg7: memref<1x64xf32, #tpu.memory_space<vmem>>, %arg8: memref<64x32xf32, #tpu.memory_space<vmem>>, %arg9: memref<1x32xf32, #tpu.memory_space<vmem>>, %arg10: memref<8x8x32xf32, #tpu.memory_space<vmem>>) attributes {dimension_semantics = [#tpu.dimension_semantics<parallel>], iteration_bounds = array<i64: 2>, scalar_prefetch = 0 : i64, scratch_operands = 0 : i64, tpu.core_type = #tpu.core_type<tc>, window_params = [{transform_indices = @transform_0, window_bounds = array<i64: 8, 8, 32>}, {pipeline_mode = #tpu.pipeline_mode<synchronous>, transform_indices = @transform_1, window_bounds = array<i64: 32, 64>}, {pipeline_mode = #tpu.pipeline_mode<synchronous>, transform_indices = @transform_2, window_bounds = array<i64: 1, 64>}, {pipeline_mode = #tpu.pipeline_mode<synchronous>, transform_indices = @transform_3, window_bounds = array<i64: 2, 16, 32>}, {pipeline_mode = #tpu.pipeline_mode<synchronous>, transform_indices = @transform_4, window_bounds = array<i64: 1, 32>}, {pipeline_mode = #tpu.pipeline_mode<synchronous>, transform_indices = @transform_5, window_bounds = array<i64: 32, 64>}, {pipeline_mode = #tpu.pipeline_mode<synchronous>, transform_indices = @transform_6, window_bounds = array<i64: 1, 64>}, {pipeline_mode = #tpu.pipeline_mode<synchronous>, transform_indices = @transform_7, window_bounds = array<i64: 64, 32>}, {pipeline_mode = #tpu.pipeline_mode<synchronous>, transform_indices = @transform_8, window_bounds = array<i64: 1, 32>}, {transform_indices = @transform_9, window_bounds = array<i64: 8, 8, 32>}]} {
    %c0 = arith.constant 0 : index
    %c0_0 = arith.constant 0 : index
    %c0_1 = arith.constant 0 : index
    %0 = vector.load %arg1[%c0, %c0_0, %c0_1] : memref<8x8x32xf32, #tpu.memory_space<vmem>>, vector<8x8x32xf32>
    %1 = vector.shape_cast %0 : vector<8x8x32xf32> to vector<64x32xf32>
    %c0_2 = arith.constant 0 : index
    %c0_3 = arith.constant 0 : index
    %2 = vector.load %arg2[%c0_2, %c0_3] : memref<32x64xf32, #tpu.memory_space<vmem>>, vector<32x64xf32>
    %cst = arith.constant dense<0.000000e+00> : vector<64x64xf32>
    %3 = tpu.matmul %1, %2, %cst {dimension_numbers = #tpu.dot_dimension_numbers<[1], [0], [0], [1], [0, 0, 1, 1], [], []>} : vector<64x32xf32>, vector<32x64xf32>, vector<64x64xf32> -> vector<64x64xf32>
    %c0_4 = arith.constant 0 : index
    %c0_5 = arith.constant 0 : index
    %4 = vector.load %arg3[%c0_4, %c0_5] : memref<1x64xf32, #tpu.memory_space<vmem>>, vector<1x64xf32>
    %5 = vector.broadcast %4 : vector<1x64xf32> to vector<64x64xf32>
    %6 = arith.addf %3, %5 : vector<64x64xf32>
    %7 = vector.shape_cast %6 : vector<64x64xf32> to vector<8x8x64xf32>
    %8 = vector.extract_strided_slice %7 {offsets = [0, 0, 0], sizes = [8, 8, 32], strides = [1, 1, 1]} : vector<8x8x64xf32> to vector<8x8x32xf32>
    %9 = vector.extract_strided_slice %7 {offsets = [0, 0, 32], sizes = [8, 8, 32], strides = [1, 1, 1]} : vector<8x8x64xf32> to vector<8x8x32xf32>
    %10 = tpu.iota {dimensions = array<i32: 0>} : vector<8x8xi32>
    %11 = tpu.iota {dimensions = array<i32: 1>} : vector<8x8xi32>
    %12 = arith.cmpi sgt, %11, %10 : vector<8x8xi32>
    %cst_6 = arith.constant -1.000000e+30 : f32
    %cst_7 = arith.constant 0.000000e+00 : f32
    %13 = vector.broadcast %cst_6 : f32 to vector<8x8xf32>
    %14 = vector.broadcast %cst_7 : f32 to vector<8x8xf32>
    %15 = arith.select %12, %13, %14 : vector<8x8xi1>, vector<8x8xf32>
    %cst_8 = arith.constant 0.000000e+00 : f32
    %16 = vector.broadcast %cst_8 : f32 to vector<8x8x32xf32>
    %17 = vector.extract_strided_slice %8 {offsets = [0, 0, 0], sizes = [8, 8, 16], strides = [1, 1, 1]} : vector<8x8x32xf32> to vector<8x8x16xf32>
    %18 = vector.extract_strided_slice %9 {offsets = [0, 0, 0], sizes = [8, 8, 16], strides = [1, 1, 1]} : vector<8x8x32xf32> to vector<8x8x16xf32>
    "tpu.trace_start"() <{level = 10 : i32, message = "bqk,bsk->bqs"}> : () -> ()
    %cst_9 = arith.constant dense<0.000000e+00> : vector<8x8x8xf32>
    %19 = tpu.matmul %17, %17, %cst_9 {dimension_numbers = #tpu.dot_dimension_numbers<[2], [2], [1], [1], [0, 0, 0, 1, 1, 1], [0], [0]>} : vector<8x8x16xf32>, vector<8x8x16xf32>, vector<8x8x8xf32> -> vector<8x8x8xf32>
    "tpu.trace_stop"() : () -> ()
    %cst_10 = arith.constant 2.500000e-01 : f32
    %20 = vector.broadcast %cst_10 : f32 to vector<8x8x8xf32>
    %21 = arith.mulf %19, %20 : vector<8x8x8xf32>
    %22 = vector.shape_cast %15 : vector<8x8xf32> to vector<1x8x8xf32>
    %23 = vector.broadcast %22 : vector<1x8x8xf32> to vector<8x8x8xf32>
    %24 = arith.addf %21, %23 : vector<8x8x8xf32>
    %cst_11 = arith.constant dense<0xFF800000> : vector<8x8xf32>
    %25 = vector.multi_reduction <maximumf>, %24, %cst_11 [2] : vector<8x8x8xf32> to vector<8x8xf32>
    %26 = vector.shape_cast %25 : vector<8x8xf32> to vector<8x8x1xf32>
    %27 = vector.broadcast %26 : vector<8x8x1xf32> to vector<8x8x8xf32>
    %28 = arith.subf %24, %27 : vector<8x8x8xf32>
    %29 = math.exp %28 : vector<8x8x8xf32>
    %cst_12 = arith.constant dense<0.000000e+00> : vector<8x8xf32>
    %30 = vector.multi_reduction <add>, %29, %cst_12 [2] : vector<8x8x8xf32> to vector<8x8xf32>
    %31 = vector.shape_cast %30 : vector<8x8xf32> to vector<8x8x1xf32>
    %32 = vector.broadcast %31 : vector<8x8x1xf32> to vector<8x8x8xf32>
    %33 = arith.divf %29, %32 : vector<8x8x8xf32>
    "tpu.trace_start"() <{level = 10 : i32, message = "bqs,bsv->bqv"}> : () -> ()
    %cst_13 = arith.constant dense<0.000000e+00> : vector<8x8x16xf32>
    %34 = tpu.matmul %33, %18, %cst_13 {dimension_numbers = #tpu.dot_dimension_numbers<[2], [1], [1], [2], [0, 0, 0, 1, 1, 2], [0], [0]>} : vector<8x8x8xf32>, vector<8x8x16xf32>, vector<8x8x16xf32> -> vector<8x8x16xf32>
    "tpu.trace_stop"() : () -> ()
    %c0_14 = arith.constant 0 : index
    %c0_15 = arith.constant 0 : index
    %c0_16 = arith.constant 0 : index
    %35 = vector.load %arg4[%c0_14, %c0_15, %c0_16] : memref<2x16x32xf32, #tpu.memory_space<vmem>>, vector<1x16x32xf32>
    %36 = vector.shape_cast %35 : vector<1x16x32xf32> to vector<16x32xf32>
    "tpu.trace_start"() <{level = 10 : i32, message = "bqv,vo->bqo"}> : () -> ()
    %cst_17 = arith.constant dense<0.000000e+00> : vector<8x8x32xf32>
    %37 = tpu.matmul %34, %36, %cst_17 {dimension_numbers = #tpu.dot_dimension_numbers<[2], [0], [0, 1], [1], [0, 0, 0, 1, 1, 1], [], []>} : vector<8x8x16xf32>, vector<16x32xf32>, vector<8x8x32xf32> -> vector<8x8x32xf32>
    "tpu.trace_stop"() : () -> ()
    %38 = arith.addf %16, %37 : vector<8x8x32xf32>
    %39 = vector.extract_strided_slice %8 {offsets = [0, 0, 16], sizes = [8, 8, 16], strides = [1, 1, 1]} : vector<8x8x32xf32> to vector<8x8x16xf32>
    %40 = vector.extract_strided_slice %9 {offsets = [0, 0, 16], sizes = [8, 8, 16], strides = [1, 1, 1]} : vector<8x8x32xf32> to vector<8x8x16xf32>
    "tpu.trace_start"() <{level = 10 : i32, message = "bqk,bsk->bqs"}> : () -> ()
    %cst_18 = arith.constant dense<0.000000e+00> : vector<8x8x8xf32>
    %41 = tpu.matmul %39, %39, %cst_18 {dimension_numbers = #tpu.dot_dimension_numbers<[2], [2], [1], [1], [0, 0, 0, 1, 1, 1], [0], [0]>} : vector<8x8x16xf32>, vector<8x8x16xf32>, vector<8x8x8xf32> -> vector<8x8x8xf32>
    "tpu.trace_stop"() : () -> ()
    %cst_19 = arith.constant 2.500000e-01 : f32
    %42 = vector.broadcast %cst_19 : f32 to vector<8x8x8xf32>
    %43 = arith.mulf %41, %42 : vector<8x8x8xf32>
    %44 = vector.shape_cast %15 : vector<8x8xf32> to vector<1x8x8xf32>
    %45 = vector.broadcast %44 : vector<1x8x8xf32> to vector<8x8x8xf32>
    %46 = arith.addf %43, %45 : vector<8x8x8xf32>
    %cst_20 = arith.constant dense<0xFF800000> : vector<8x8xf32>
    %47 = vector.multi_reduction <maximumf>, %46, %cst_20 [2] : vector<8x8x8xf32> to vector<8x8xf32>
    %48 = vector.shape_cast %47 : vector<8x8xf32> to vector<8x8x1xf32>
    %49 = vector.broadcast %48 : vector<8x8x1xf32> to vector<8x8x8xf32>
    %50 = arith.subf %46, %49 : vector<8x8x8xf32>
    %51 = math.exp %50 : vector<8x8x8xf32>
    %cst_21 = arith.constant dense<0.000000e+00> : vector<8x8xf32>
    %52 = vector.multi_reduction <add>, %51, %cst_21 [2] : vector<8x8x8xf32> to vector<8x8xf32>
    %53 = vector.shape_cast %52 : vector<8x8xf32> to vector<8x8x1xf32>
    %54 = vector.broadcast %53 : vector<8x8x1xf32> to vector<8x8x8xf32>
    %55 = arith.divf %51, %54 : vector<8x8x8xf32>
    "tpu.trace_start"() <{level = 10 : i32, message = "bqs,bsv->bqv"}> : () -> ()
    %cst_22 = arith.constant dense<0.000000e+00> : vector<8x8x16xf32>
    %56 = tpu.matmul %55, %40, %cst_22 {dimension_numbers = #tpu.dot_dimension_numbers<[2], [1], [1], [2], [0, 0, 0, 1, 1, 2], [0], [0]>} : vector<8x8x8xf32>, vector<8x8x16xf32>, vector<8x8x16xf32> -> vector<8x8x16xf32>
    "tpu.trace_stop"() : () -> ()
    %c1 = arith.constant 1 : index
    %c0_23 = arith.constant 0 : index
    %c0_24 = arith.constant 0 : index
    %57 = vector.load %arg4[%c1, %c0_23, %c0_24] : memref<2x16x32xf32, #tpu.memory_space<vmem>>, vector<1x16x32xf32>
    %58 = vector.shape_cast %57 : vector<1x16x32xf32> to vector<16x32xf32>
    "tpu.trace_start"() <{level = 10 : i32, message = "bqv,vo->bqo"}> : () -> ()
    %cst_25 = arith.constant dense<0.000000e+00> : vector<8x8x32xf32>
    %59 = tpu.matmul %56, %58, %cst_25 {dimension_numbers = #tpu.dot_dimension_numbers<[2], [0], [0, 1], [1], [0, 0, 0, 1, 1, 1], [], []>} : vector<8x8x16xf32>, vector<16x32xf32>, vector<8x8x32xf32> -> vector<8x8x32xf32>
    "tpu.trace_stop"() : () -> ()
    %60 = arith.addf %38, %59 : vector<8x8x32xf32>
    %c0_26 = arith.constant 0 : index
    %c0_27 = arith.constant 0 : index
    %61 = vector.load %arg5[%c0_26, %c0_27] : memref<1x32xf32, #tpu.memory_space<vmem>>, vector<1x32xf32>
    %62 = vector.shape_cast %61 : vector<1x32xf32> to vector<1x1x32xf32>
    %63 = vector.broadcast %62 : vector<1x1x32xf32> to vector<8x8x32xf32>
    %64 = arith.addf %60, %63 : vector<8x8x32xf32>
    %65 = arith.addf %64, %0 : vector<8x8x32xf32>
    %cst_28 = arith.constant dense<0.000000e+00> : vector<8x8xf32>
    %66 = vector.multi_reduction <add>, %65, %cst_28 [2] : vector<8x8x32xf32> to vector<8x8xf32>
    %67 = vector.shape_cast %66 : vector<8x8xf32> to vector<8x8x1xf32>
    %cst_29 = arith.constant 3.200000e+01 : f32
    %68 = vector.broadcast %cst_29 : f32 to vector<8x8x1xf32>
    %69 = arith.divf %67, %68 : vector<8x8x1xf32>
    %70 = vector.broadcast %69 : vector<8x8x1xf32> to vector<8x8x32xf32>
    %71 = arith.subf %65, %70 : vector<8x8x32xf32>
    %72 = arith.mulf %71, %71 : vector<8x8x32xf32>
    %cst_30 = arith.constant dense<0.000000e+00> : vector<8x8xf32>
    %73 = vector.multi_reduction <add>, %72, %cst_30 [2] : vector<8x8x32xf32> to vector<8x8xf32>
    %74 = vector.shape_cast %73 : vector<8x8xf32> to vector<8x8x1xf32>
    %cst_31 = arith.constant 3.200000e+01 : f32
    %75 = vector.broadcast %cst_31 : f32 to vector<8x8x1xf32>
    %76 = arith.divf %74, %75 : vector<8x8x1xf32>
    %77 = vector.broadcast %69 : vector<8x8x1xf32> to vector<8x8x32xf32>
    %78 = arith.subf %65, %77 : vector<8x8x32xf32>
    %cst_32 = arith.constant 9.99999974E-6 : f32
    %79 = vector.broadcast %cst_32 : f32 to vector<8x8x1xf32>
    %80 = arith.addf %76, %79 : vector<8x8x1xf32>
    %81 = math.rsqrt %80 : vector<8x8x1xf32>
    %82 = vector.broadcast %81 : vector<8x8x1xf32> to vector<8x8x32xf32>
    %83 = arith.mulf %78, %82 : vector<8x8x32xf32>
    %84 = vector.shape_cast %83 : vector<8x8x32xf32> to vector<64x32xf32>
    %c0_33 = arith.constant 0 : index
    %c0_34 = arith.constant 0 : index
    %85 = vector.load %arg6[%c0_33, %c0_34] : memref<32x64xf32, #tpu.memory_space<vmem>>, vector<32x64xf32>
    %cst_35 = arith.constant dense<0.000000e+00> : vector<64x64xf32>
    %86 = tpu.matmul %84, %85, %cst_35 {dimension_numbers = #tpu.dot_dimension_numbers<[1], [0], [0], [1], [0, 0, 1, 1], [], []>} : vector<64x32xf32>, vector<32x64xf32>, vector<64x64xf32> -> vector<64x64xf32>
    %c0_36 = arith.constant 0 : index
    %c0_37 = arith.constant 0 : index
    %87 = vector.load %arg7[%c0_36, %c0_37] : memref<1x64xf32, #tpu.memory_space<vmem>>, vector<1x64xf32>
    %88 = vector.broadcast %87 : vector<1x64xf32> to vector<64x64xf32>
    %89 = arith.addf %86, %88 : vector<64x64xf32>
    %cst_38 = arith.constant 0.000000e+00 : f32
    %90 = vector.broadcast %cst_38 : f32 to vector<64x64xf32>
    %91 = arith.maximumf %89, %90 : vector<64x64xf32>
    %c0_39 = arith.constant 0 : index
    %c0_40 = arith.constant 0 : index
    %92 = vector.load %arg8[%c0_39, %c0_40] : memref<64x32xf32, #tpu.memory_space<vmem>>, vector<64x32xf32>
    %cst_41 = arith.constant dense<0.000000e+00> : vector<64x32xf32>
    %93 = tpu.matmul %91, %92, %cst_41 {dimension_numbers = #tpu.dot_dimension_numbers<[1], [0], [0], [1], [0, 0, 1, 1], [], []>} : vector<64x64xf32>, vector<64x32xf32>, vector<64x32xf32> -> vector<64x32xf32>
    %c0_42 = arith.constant 0 : index
    %c0_43 = arith.constant 0 : index
    %94 = vector.load %arg9[%c0_42, %c0_43] : memref<1x32xf32, #tpu.memory_space<vmem>>, vector<1x32xf32>
    %95 = vector.broadcast %94 : vector<1x32xf32> to vector<64x32xf32>
    %96 = arith.addf %93, %95 : vector<64x32xf32>
    %97 = vector.shape_cast %96 : vector<64x32xf32> to vector<8x8x32xf32>
    %98 = arith.addf %97, %83 : vector<8x8x32xf32>
    %cst_44 = arith.constant dense<0.000000e+00> : vector<8x8xf32>
    %99 = vector.multi_reduction <add>, %98, %cst_44 [2] : vector<8x8x32xf32> to vector<8x8xf32>
    %100 = vector.shape_cast %99 : vector<8x8xf32> to vector<8x8x1xf32>
    %cst_45 = arith.constant 3.200000e+01 : f32
    %101 = vector.broadcast %cst_45 : f32 to vector<8x8x1xf32>
    %102 = arith.divf %100, %101 : vector<8x8x1xf32>
    %103 = vector.broadcast %102 : vector<8x8x1xf32> to vector<8x8x32xf32>
    %104 = arith.subf %98, %103 : vector<8x8x32xf32>
    %105 = arith.mulf %104, %104 : vector<8x8x32xf32>
    %cst_46 = arith.constant dense<0.000000e+00> : vector<8x8xf32>
    %106 = vector.multi_reduction <add>, %105, %cst_46 [2] : vector<8x8x32xf32> to vector<8x8xf32>
    %107 = vector.shape_cast %106 : vector<8x8xf32> to vector<8x8x1xf32>
    %cst_47 = arith.constant 3.200000e+01 : f32
    %108 = vector.broadcast %cst_47 : f32 to vector<8x8x1xf32>
    %109 = arith.divf %107, %108 : vector<8x8x1xf32>
    %110 = vector.broadcast %102 : vector<8x8x1xf32> to vector<8x8x32xf32>
    %111 = arith.subf %98, %110 : vector<8x8x32xf32>
    %cst_48 = arith.constant 9.99999974E-6 : f32
    %112 = vector.broadcast %cst_48 : f32 to vector<8x8x1xf32>
    %113 = arith.addf %109, %112 : vector<8x8x1xf32>
    %114 = math.rsqrt %113 : vector<8x8x1xf32>
    %115 = vector.broadcast %114 : vector<8x8x1xf32> to vector<8x8x32xf32>
    %116 = arith.mulf %111, %115 : vector<8x8x32xf32>
    %c0_49 = arith.constant 0 : index
    %c0_50 = arith.constant 0 : index
    %c0_51 = arith.constant 0 : index
    %117 = vector.load %arg10[%c0_49, %c0_50, %c0_51] : memref<8x8x32xf32, #tpu.memory_space<vmem>>, vector<8x8x32xf32>
    tpu.vector_store %arg10[%c0_49, %c0_50, %c0_51], %116 {strides = array<i32>} : memref<8x8x32xf32, #tpu.memory_space<vmem>>, vector<8x8x32xf32>,
    return
  }
  func.func @transform_0(%arg0: i32) -> (i32, i32, i32) {
    %c0_i32 = arith.constant 0 : i32
    %c0_i32_0 = arith.constant 0 : i32
    %c0_i32_1 = arith.constant 0 : i32
    return %arg0, %c0_i32, %c0_i32_0 : i32, i32, i32
  }
  func.func @transform_1(%arg0: i32) -> (i32, i32) {
    %c0_i32 = arith.constant 0 : i32
    %c0_i32_0 = arith.constant 0 : i32
    %c0_i32_1 = arith.constant 0 : i32
    return %c0_i32, %c0_i32_0 : i32, i32
  }
  func.func @transform_2(%arg0: i32) -> (i32, i32) {
    %c0_i32 = arith.constant 0 : i32
    %c0_i32_0 = arith.constant 0 : i32
    %c0_i32_1 = arith.constant 0 : i32
    return %c0_i32, %c0_i32_0 : i32, i32
  }
  func.func @transform_3(%arg0: i32) -> (i32, i32, i32) {
    %c0_i32 = arith.constant 0 : i32
    %c0_i32_0 = arith.constant 0 : i32
    %c0_i32_1 = arith.constant 0 : i32
    %c0_i32_2 = arith.constant 0 : i32
    return %c0_i32, %c0_i32_0, %c0_i32_1 : i32, i32, i32
  }
  func.func @transform_4(%arg0: i32) -> (i32, i32) {
    %c0_i32 = arith.constant 0 : i32
    %c0_i32_0 = arith.constant 0 : i32
    %c0_i32_1 = arith.constant 0 : i32
    return %c0_i32, %c0_i32_0 : i32, i32
  }
  func.func @transform_5(%arg0: i32) -> (i32, i32) {
    %c0_i32 = arith.constant 0 : i32
    %c0_i32_0 = arith.constant 0 : i32
    %c0_i32_1 = arith.constant 0 : i32
    return %c0_i32, %c0_i32_0 : i32, i32
  }
  func.func @transform_6(%arg0: i32) -> (i32, i32) {
    %c0_i32 = arith.constant 0 : i32
    %c0_i32_0 = arith.constant 0 : i32
    %c0_i32_1 = arith.constant 0 : i32
    return %c0_i32, %c0_i32_0 : i32, i32
  }
  func.func @transform_7(%arg0: i32) -> (i32, i32) {
    %c0_i32 = arith.constant 0 : i32
    %c0_i32_0 = arith.constant 0 : i32
    %c0_i32_1 = arith.constant 0 : i32
    return %c0_i32, %c0_i32_0 : i32, i32
  }
  func.func @transform_8(%arg0: i32) -> (i32, i32) {
    %c0_i32 = arith.constant 0 : i32
    %c0_i32_0 = arith.constant 0 : i32
    %c0_i32_1 = arith.constant 0 : i32
    return %c0_i32, %c0_i32_0 : i32, i32
  }
  func.func @transform_9(%arg0: i32) -> (i32, i32, i32) {
    %c0_i32 = arith.constant 0 : i32
    %c0_i32_0 = arith.constant 0 : i32
    %c0_i32_1 = arith.constant 0 : i32
    return %arg0, %c0_i32, %c0_i32_0 : i32, i32, i32
  }
}

</mosaic_0001>

<llo_original>
// kernel: tpu_custom_call.1
$region0: #{tpu_custom_call.1}
  #allocation0 [shape = 'u32[]', space=smem, size = 0x4, offset = 0x4, fixed_abs, tag = 'smem constant byte address 0x4 - core index']
  #allocation1 [shape = 'u32[144,128]{1,0:T(1,128)}', space=vmem, size = 0x12000, scoped, tag = 'internal scratch']
  %s0 = inlined_call_operand.hbm [shape: f32[16,8,32], index: 0, kind: input, shape index: {}]
  %s1 = inlined_call_operand.vmem [shape: f32[32,64], index: 1, kind: input, shape index: {}]
  %s2 = inlined_call_operand.vmem [shape: f32[1,64], index: 2, kind: input, shape index: {}]
  %s3 = inlined_call_operand.vmem [shape: f32[2,16,32], index: 3, kind: input, shape index: {}]
  %s4 = inlined_call_operand.vmem [shape: f32[1,32], index: 4, kind: input, shape index: {}]
  %s5 = inlined_call_operand.vmem [shape: f32[32,64], index: 5, kind: input, shape index: {}]
  %s6 = inlined_call_operand.vmem [shape: f32[1,64], index: 6, kind: input, shape index: {}]
  %s7 = inlined_call_operand.vmem [shape: f32[64,32], index: 7, kind: input, shape index: {}]
  %s8 = inlined_call_operand.vmem [shape: f32[1,32], index: 8, kind: input, shape index: {}]
  %s9 = inlined_call_operand.hbm [shape: f32[16,8,32], index: 9, kind: output, shape index: {}]
  %s10 = sld [smem:[#allocation0]]
  $region73: #{tpu_custom_call.1} parent=0
    _
  %s12 = ssub.s32 1, %s10
  %s13 = scalar_select 0, %s12, %s10
  $region1: #{tpu_custom_call.1} parent=0
    #allocation2 [shape = 'u8[65536]{0}', space=vmem, size = 0x10000, scoped, tag = 'input window, operand 0']
    #allocation3 [shape = 's32[2]{0}', space=sflag, size = 0x8, scoped, tag = 'scoped memory for tpu_custom_call.1']
    #allocation4 [shape = 's32[2]{0}', space=sflag, size = 0x8, scoped, tag = 'scoped memory for tpu_custom_call.1']
    #allocation5 [shape = 'u8[65536]{0}', space=vmem, size = 0x10000, scoped, tag = 'output window, operand 0']
    %14 = vsyncpa [#allocation3], 0
    %s15 = scalar_lea.sflag [#allocation3], 1
    %16 = vsyncpa %s15, 0
    %17 = vsyncpa [#allocation4], 0
    %s18 = scalar_lea.sflag [#allocation4], 1
    %19 = vsyncpa %s18, 0
    loop: start=0, step=1, limit=4
    $region2: #{tpu_custom_call.1} parent=1 // loop_pre_header
      _
    $region3: #{tpu_custom_call.1} parent=1 // loop_header
      %s21 = sphi 0, %s25
      %p22 = scmp.ge.s32.totalorder %s21, 4
      %s31 = sphi 0, %s33
      %s34 = sphi 0, %s31
      %s35 = sphi 0, %s34
      %s51 = sphi 0, %s35
      %s55 = sphi 0, %s55
      %s57 = sphi 0, %s55
      %s58 = sphi 0, %s57
      %s72 = sphi 0, %s58
      %s76 = sphi 0, %s76
      %s78 = sphi 0, %s76
      %s79 = sphi 0, %s78
      %s93 = sphi 0, %s79
      %s97 = sphi 0, %s97
      %s99 = sphi 0, %s97
      %s100 = sphi 0, %s99
      %s114 = sphi 0, %s100
      %s118 = sphi 0, %s118
      %s120 = sphi 0, %s118
      %s121 = sphi 0, %s120
      %s135 = sphi 0, %s121
      %s139 = sphi 0, %s139
      %s141 = sphi 0, %s139
      %s142 = sphi 0, %s141
      %s156 = sphi 0, %s142
      %s160 = sphi 0, %s160
      %s162 = sphi 0, %s160
      %s163 = sphi 0, %s162
      %s177 = sphi 0, %s163
      %s181 = sphi 0, %s181
      %s183 = sphi 0, %s181
      %s184 = sphi 0, %s183
      %s198 = sphi 0, %s184
      %s202 = sphi 0, %s202
      %s204 = sphi 0, %s202
      %s205 = sphi 0, %s204
      %s219 = sphi 0, %s205
      %s225 = sphi 0, %s227
      %s228 = sphi 0, %s225
      %s229 = sphi 0, %s228
      %s245 = sphi 0, %s229
    $region4: #{tpu_custom_call.1} parent=1 // loop_header_branch
      %24 = sbr.rel (%p22) target = $region8
    $region5: #{tpu_custom_call.1} parent=1 // loop_body
      %s26 = ssub.s32 %s21, 1
      %s27 = ssub.s32 %s21, 2
      %s28 = sadd.s32 %s21, 1
      %s29 = ssub.s32 %s21, %s28
      %p30 = scmp.eq.s32.totalorder %s29, 0
      %s32 = sadd.s32 %s31, 1
      %s33 = scalar_select %p30, %s31, %s32
      %p36 = pneg %p30
      %p37 = scmp.eq.s32.totalorder %s21, 1
      %p38 = por %p36, %p37
      %p39 = scmp.ne.s32.totalorder %s31, %s34
      %p40 = scmp.eq.s32.totalorder %s21, 0
      %p41 = por %p39, %p40
      %p42 = scmp.ne.s32.totalorder %s31, %s34
      %p43 = scmp.eq.s32.totalorder %s26, 1
      %p44 = por %p42, %p43
      %p45 = scmp.ne.s32.totalorder %s34, %s35
      %p46 = scmp.eq.s32.totalorder %s26, 0
      %p47 = por %p45, %p46
      %p48 = scmp.ne.s32.totalorder %s34, %s35
      %p49 = scmp.eq.s32.totalorder %s27, 1
      %p50 = por %p48, %p49
      %p52 = scmp.ne.s32.totalorder %s35, %s51
      %p53 = scmp.eq.s32.totalorder %s27, 0
      %p54 = por %p52, %p53
      %s56 = sadd.s32 %s55, 1
      %p59 = scmp.eq.s32.totalorder %s21, 1
      %p60 = scmp.ne.s32.totalorder %s55, %s57
      %p61 = scmp.eq.s32.totalorder %s21, 0
      %p62 = por %p60, %p61
      %p63 = scmp.ne.s32.totalorder %s55, %s57
      %p64 = scmp.eq.s32.totalorder %s26, 1
      %p65 = por %p63, %p64
      %p66 = scmp.ne.s32.totalorder %s57, %s58
      %p67 = scmp.eq.s32.totalorder %s26, 0
      %p68 = por %p66, %p67
      %p69 = scmp.ne.s32.totalorder %s57, %s58
      %p70 = scmp.eq.s32.totalorder %s27, 1
      %p71 = por %p69, %p70
      %p73 = scmp.ne.s32.totalorder %s58, %s72
      %p74 = scmp.eq.s32.totalorder %s27, 0
      %p75 = por %p73, %p74
      %s77 = sadd.s32 %s76, 1
      %p80 = scmp.eq.s32.totalorder %s21, 1
      %p81 = scmp.ne.s32.totalorder %s76, %s78
      %p82 = scmp.eq.s32.totalorder %s21, 0
      %p83 = por %p81, %p82
      %p84 = scmp.ne.s32.totalorder %s76, %s78
      %p85 = scmp.eq.s32.totalorder %s26, 1
      %p86 = por %p84, %p85
      %p87 = scmp.ne.s32.totalorder %s78, %s79
      %p88 = scmp.eq.s32.totalorder %s26, 0
      %p89 = por %p87, %p88
      %p90 = scmp.ne.s32.totalorder %s78, %s79
      %p91 = scmp.eq.s32.totalorder %s27, 1
      %p92 = por %p90, %p91
      %p94 = scmp.ne.s32.totalorder %s79, %s93
      %p95 = scmp.eq.s32.totalorder %s27, 0
      %p96 = por %p94, %p95
      %s98 = sadd.s32 %s97, 1
      %p101 = scmp.eq.s32.totalorder %s21, 1
      %p102 = scmp.ne.s32.totalorder %s97, %s99
      %p103 = scmp.eq.s32.totalorder %s21, 0
      %p104 = por %p102, %p103
      %p105 = scmp.ne.s32.totalorder %s97, %s99
      %p106 = scmp.eq.s32.totalorder %s26, 1
      %p107 = por %p105, %p106
      %p108 = scmp.ne.s32.totalorder %s99, %s100
      %p109 = scmp.eq.s32.totalorder %s26, 0
      %p110 = por %p108, %p109
      %p111 = scmp.ne.s32.totalorder %s99, %s100
      %p112 = scmp.eq.s32.totalorder %s27, 1
      %p113 = por %p111, %p112
      %p115 = scmp.ne.s32.totalorder %s100, %s114
      %p116 = scmp.eq.s32.totalorder %s27, 0
      %p117 = por %p115, %p116
      %s119 = sadd.s32 %s118, 1
      %p122 = scmp.eq.s32.totalorder %s21, 1
      %p123 = scmp.ne.s32.totalorder %s118, %s120
      %p124 = scmp.eq.s32.totalorder %s21, 0
      %p125 = por %p123, %p124
      %p126 = scmp.ne.s32.totalorder %s118, %s120
      %p127 = scmp.eq.s32.totalorder %s26, 1
      %p128 = por %p126, %p127
      %p129 = scmp.ne.s32.totalorder %s120, %s121
      %p130 = scmp.eq.s32.totalorder %s26, 0
      %p131 = por %p129, %p130
      %p132 = scmp.ne.s32.totalorder %s120, %s121
      %p133 = scmp.eq.s32.totalorder %s27, 1
      %p134 = por %p132, %p133
      %p136 = scmp.ne.s32.totalorder %s121, %s135
      %p137 = scmp.eq.s32.totalorder %s27, 0
      %p138 = por %p136, %p137
      %s140 = sadd.s32 %s139, 1
      %p143 = scmp.eq.s32.totalorder %s21, 1
      %p144 = scmp.ne.s32.totalorder %s139, %s141
      %p145 = scmp.eq.s32.totalorder %s21, 0
      %p146 = por %p144, %p145
      %p147 = scmp.ne.s32.totalorder %s139, %s141
      %p148 = scmp.eq.s32.totalorder %s26, 1
      %p149 = por %p147, %p148
      %p150 = scmp.ne.s32.totalorder %s141, %s142
      %p151 = scmp.eq.s32.totalorder %s26, 0
      %p152 = por %p150, %p151
      %p153 = scmp.ne.s32.totalorder %s141, %s142
      %p154 = scmp.eq.s32.totalorder %s27, 1
      %p155 = por %p153, %p154
      %p157 = scmp.ne.s32.totalorder %s142, %s156
      %p158 = scmp.eq.s32.totalorder %s27, 0
      %p159 = por %p157, %p158
      %s161 = sadd.s32 %s160, 1
      %p164 = scmp.eq.s32.totalorder %s21, 1
      %p165 = scmp.ne.s32.totalorder %s160, %s162
      %p166 = scmp.eq.s32.totalorder %s21, 0
      %p167 = por %p165, %p166
      %p168 = scmp.ne.s32.totalorder %s160, %s162
      %p169 = scmp.eq.s32.totalorder %s26, 1
      %p170 = por %p168, %p169
      %p171 = scmp.ne.s32.totalorder %s162, %s163
      %p172 = scmp.eq.s32.totalorder %s26, 0
      %p173 = por %p171, %p172
      %p174 = scmp.ne.s32.totalorder %s162, %s163
      %p175 = scmp.eq.s32.totalorder %s27, 1
      %p176 = por %p174, %p175
      %p178 = scmp.ne.s32.totalorder %s163, %s177
      %p179 = scmp.eq.s32.totalorder %s27, 0
      %p180 = por %p178, %p179
      %s182 = sadd.s32 %s181, 1
      %p185 = scmp.eq.s32.totalorder %s21, 1
      %p186 = scmp.ne.s32.totalorder %s181, %s183
      %p187 = scmp.eq.s32.totalorder %s21, 0
      %p188 = por %p186, %p187
      %p189 = scmp.ne.s32.totalorder %s181, %s183
      %p190 = scmp.eq.s32.totalorder %s26, 1
      %p191 = por %p189, %p190
      %p192 = scmp.ne.s32.totalorder %s183, %s184
      %p193 = scmp.eq.s32.totalorder %s26, 0
      %p194 = por %p192, %p193
      %p195 = scmp.ne.s32.totalorder %s183, %s184
      %p196 = scmp.eq.s32.totalorder %s27, 1
      %p197 = por %p195, %p196
      %p199 = scmp.ne.s32.totalorder %s184, %s198
      %p200 = scmp.eq.s32.totalorder %s27, 0
      %p201 = por %p199, %p200
      %s203 = sadd.s32 %s202, 1
      %p206 = scmp.eq.s32.totalorder %s21, 1
      %p207 = scmp.ne.s32.totalorder %s202, %s204
      %p208 = scmp.eq.s32.totalorder %s21, 0
      %p209 = por %p207, %p208
      %p210 = scmp.ne.s32.totalorder %s202, %s204
      %p211 = scmp.eq.s32.totalorder %s26, 1
      %p212 = por %p210, %p211
      %p213 = scmp.ne.s32.totalorder %s204, %s205
      %p214 = scmp.eq.s32.totalorder %s26, 0
      %p215 = por %p213, %p214
      %p216 = scmp.ne.s32.totalorder %s204, %s205
      %p217 = scmp.eq.s32.totalorder %s27, 1
      %p218 = por %p216, %p217
      %p220 = scmp.ne.s32.totalorder %s205, %s219
      %p221 = scmp.eq.s32.totalorder %s27, 0
      %p222 = por %p220, %p221
      %s223 = ssub.s32 %s21, %s28
      %p224 = scmp.eq.s32.totalorder %s223, 0
      %s226 = sadd.s32 %s225, 1
      %s227 = scalar_select %p224, %s225, %s226
      %p230 = pneg %p224
      %p231 = scmp.eq.s32.totalorder %s21, 1
      %p232 = por %p230, %p231
      %p233 = scmp.ne.s32.totalorder %s225, %s228
      %p234 = scmp.eq.s32.totalorder %s21, 0
      %p235 = por %p233, %p234
      %p236 = scmp.ne.s32.totalorder %s225, %s228
      %p237 = scmp.eq.s32.totalorder %s26, 1
      %p238 = por %p236, %p237
      %p239 = scmp.ne.s32.totalorder %s228, %s229
      %p240 = scmp.eq.s32.totalorder %s26, 0
      %p241 = por %p239, %p240
      %p242 = scmp.ne.s32.totalorder %s228, %s229
      %p243 = scmp.eq.s32.totalorder %s27, 1
      %p244 = por %p242, %p243
      %p246 = scmp.ne.s32.totalorder %s229, %s245
      %p247 = scmp.eq.s32.totalorder %s27, 0
      %p248 = por %p246, %p247
      %p249 = scmp.le.s32.totalorder 1, %s21
      %p250 = scmp.lt.s32.totalorder %s21, 3
      %p251 = pnand %p249, %p250
      %p252 = pneg %p251
      // Predicated region
      $region9: #{tpu_custom_call.1} parent=5 // pred_check
        _
      $region10: #{tpu_custom_call.1} parent=5 // pred_check_branch
        %254 = sbr.rel (%p251) target = $region12
      $region11: #{tpu_custom_call.1} parent=5 // pred_region
        %s255 = ssub.s32 %s21, 1
        // Predicated region
        $region13: #{tpu_custom_call.1} parent=11 // pred_check
          %p256 = pneg %p68
        $region14: #{tpu_custom_call.1} parent=11 // pred_check_branch
          %258 = sbr.rel (%p256) target = $region16
        $region15: #{tpu_custom_call.1} parent=11 // pred_region
          _
        $region16: #{tpu_custom_call.1} parent=11 // pred_fallthru
          _
        // Predicated region
        $region17: #{tpu_custom_call.1} parent=11 // pred_check
          %p259 = pneg %p89
        $region18: #{tpu_custom_call.1} parent=11 // pred_check_branch
          %261 = sbr.rel (%p259) target = $region20
        $region19: #{tpu_custom_call.1} parent=11 // pred_region
          _
        $region20: #{tpu_custom_call.1} parent=11 // pred_fallthru
          _
        // Predicated region
        $region21: #{tpu_custom_call.1} parent=11 // pred_check
          %p262 = pneg %p110
        $region22: #{tpu_custom_call.1} parent=11 // pred_check_branch
          %264 = sbr.rel (%p262) target = $region24
        $region23: #{tpu_custom_call.1} parent=11 // pred_region
          _
        $region24: #{tpu_custom_call.1} parent=11 // pred_fallthru
          _
        // Predicated region
        $region25: #{tpu_custom_call.1} parent=11 // pred_check
          %p265 = pneg %p131
        $region26: #{tpu_custom_call.1} parent=11 // pred_check_branch
          %267 = sbr.rel (%p265) target = $region28
        $region27: #{tpu_custom_call.1} parent=11 // pred_region
          _
        $region28: #{tpu_custom_call.1} parent=11 // pred_fallthru
          _
        // Predicated region
        $region29: #{tpu_custom_call.1} parent=11 // pred_check
          %p268 = pneg %p152
        $region30: #{tpu_custom_call.1} parent=11 // pred_check_branch
          %270 = sbr.rel (%p268) target = $region32
        $region31: #{tpu_custom_call.1} parent=11 // pred_region
          _
        $region32: #{tpu_custom_call.1} parent=11 // pred_fallthru
          _
        // Predicated region
        $region33: #{tpu_custom_call.1} parent=11 // pred_check
          %p271 = pneg %p173
        $region34: #{tpu_custom_call.1} parent=11 // pred_check_branch
          %273 = sbr.rel (%p271) target = $region36
        $region35: #{tpu_custom_call.1} parent=11 // pred_region
          _
        $region36: #{tpu_custom_call.1} parent=11 // pred_fallthru
          _
        // Predicated region
        $region37: #{tpu_custom_call.1} parent=11 // pred_check
          %p274 = pneg %p194
        $region38: #{tpu_custom_call.1} parent=11 // pred_check_branch
          %276 = sbr.rel (%p274) target = $region40
        $region39: #{tpu_custom_call.1} parent=11 // pred_region
          _
        $region40: #{tpu_custom_call.1} parent=11 // pred_fallthru
          _
        // Predicated region
        $region41: #{tpu_custom_call.1} parent=11 // pred_check
          %p277 = pneg %p215
        $region42: #{tpu_custom_call.1} parent=11 // pred_check_branch
          %279 = sbr.rel (%p277) target = $region44
        $region43: #{tpu_custom_call.1} parent=11 // pred_region
          _
        $region44: #{tpu_custom_call.1} parent=11 // pred_fallthru
          _
      $region12: #{tpu_custom_call.1} parent=5 // pred_fallthru
        _
      %p280 = scmp.lt.s32.totalorder %s21, 2
      // Predicated region
      $region45: #{tpu_custom_call.1} parent=5 // pred_check
        %p281 = pneg %p280
      $region46: #{tpu_custom_call.1} parent=5 // pred_check_branch
        %283 = sbr.rel (%p281) target = $region48
      $region47: #{tpu_custom_call.1} parent=5 // pred_region
        // Predicated region
        $region49: #{tpu_custom_call.1} parent=47 // pred_check
          %p284 = pneg %p41
        $region50: #{tpu_custom_call.1} parent=47 // pred_check_branch
          %286 = sbr.rel (%p284) target = $region52
        $region51: #{tpu_custom_call.1} parent=47 // pred_region
          %s287 = sand.u32 %s31, 1
          %s288 = scalar_lea.sflag [#allocation3], %s287
          %s289 = sand.u32 %s31, 1
          %s290 = smul.addr %s289, 64
          %s291 = scalar_lea.vmem [#allocation2], %s290
          %s292 = smul.u32 8, %s21
          %s294 = ssub.s32 1024, 1024
          %295 = vsyncadd %s288, %s294
          %s296 = smul.addr %s292, 128
          %s297 = scalar_lea.hbm %s0, %s296
          %s298 = sshll.u32 %s291, 4
          %s299 = int_to_ptr.vmem [resolvable:$true] %s298
          %304 = dma.hbm_to_vmem [thread:$0]  %s297, 1024, %s299, %s288, 128, 128, 8
        $region52: #{tpu_custom_call.1} parent=47 // pred_fallthru
          _
      $region48: #{tpu_custom_call.1} parent=5 // pred_fallthru
        _
      %p305 = scmp.le.s32.totalorder 1, %s21
      %p306 = scmp.lt.s32.totalorder %s21, 3
      %p307 = pnand %p305, %p306
      %p308 = pneg %p307
      // Predicated region
      $region53: #{tpu_custom_call.1} parent=5 // pred_check
        _
      $region54: #{tpu_custom_call.1} parent=5 // pred_check_branch
        %310 = sbr.rel (%p307) target = $region56
      $region55: #{tpu_custom_call.1} parent=5 // pred_region
        %s311 = ssub.s32 %s21, 1
        %s312 = sand.u32 %s34, 1
        %s313 = scalar_lea.sflag [#allocation3], %s312
        %s314 = sand.u32 %s34, 1
        %s315 = smul.addr %s314, 64
        %s316 = scalar_lea.vmem [#allocation2], %s315
        // Predicated region
        $region57: #{tpu_custom_call.1} parent=55 // pred_check
          %p317 = pneg %p47
        $region58: #{tpu_custom_call.1} parent=55 // pred_check_branch
          %319 = sbr.rel (%p317) target = $region60
        $region59: #{tpu_custom_call.1} parent=55 // pred_region
          %320 = dma.done %s313, 1024
        $region60: #{tpu_custom_call.1} parent=55 // pred_fallthru
          _
        %s321 = sand.u32 %s34, 1
        %s322 = scalar_lea.sflag [#allocation3], %s321
        %s323 = sand.u32 %s34, 1
        %s324 = smul.addr %s323, 64
        %s325 = scalar_lea.vmem [#allocation2], %s324
        %p326 = pneg %p47
        %p327 = pneg %p44
        %p328 = pneg %p68
        %p329 = pneg %p65
        %p330 = pneg %p89
        %p331 = pneg %p86
        %p332 = pneg %p110
        %p333 = pneg %p107
        %p334 = pneg %p131
        %p335 = pneg %p128
        %p336 = pneg %p152
        %p337 = pneg %p149
        %p338 = pneg %p173
        %p339 = pneg %p170
        %p340 = pneg %p194
        %p341 = pneg %p191
        %p342 = pneg %p215
        %p343 = pneg %p212
        %p344 = pneg %p241
        %p345 = pneg %p238
        %s346 = sand.u32 %s228, 1
        %s347 = scalar_lea.sflag [#allocation4], %s346
        %s348 = sand.u32 %s228, 1
        %s349 = smul.addr %s348, 64
        %s350 = scalar_lea.vmem [#allocation5], %s349
        %s351 = smul.u32 8, %s26
        %s352 = smul.u32 8, %s26
        %v353 = vld [vmem:[%s316] sm:$0xff]
        %v354 = vld [vmem:[%s316 + $0x8] sm:$0xff]
        %v355 = vld [vmem:[%s316 + $0x10] sm:$0xff]
        %v356 = vld [vmem:[%s316 + $0x18] sm:$0xff]
        %v357 = vld [vmem:[%s316 + $0x20] sm:$0xff]
        %v358 = vld [vmem:[%s316 + $0x28] sm:$0xff]
        %v359 = vld [vmem:[%s316 + $0x30] sm:$0xff]
        %v360 = vld [vmem:[%s316 + $0x38] sm:$0xff]
        %v361 = vld [vmem:[%s1] sm:$0xff]
        %v362 = vld [vmem:[%s1 + $0x8] sm:$0xff]
        %v363 = vld [vmem:[%s1 + $0x10] sm:$0xff]
        %v364 = vld [vmem:[%s1 + $0x18] sm:$0xff]
        %v365 = vld [vmem:[%s2] sm:$0x1]
        %v367 = vlaneseq
        %v368 = vshrl.u32 %v367, 7
        %v369 = vsub.s32 0, %v368
        %v370 = vrot.slane %v365, %v369
        %vm372 = vcmask 261120
        %v374 = vsel %vm372, %v353, 0
        %v377 = vsel %vm372, %v354, 0
        %v380 = vsel %vm372, %v355, 0
        %v383 = vsel %vm372, %v356, 0
        %v386 = vsel %vm372, %v357, 0
        %v389 = vsel %vm372, %v358, 0
        %v392 = vsel %vm372, %v359, 0
        %v395 = vsel %vm372, %v360, 0
        %397 = vmatprep.subr.mxu0 0.0
        %398 = vmatpush1.msra.mxu0 0.0
        %399 = vmatprep.subr.mxu0 0.0
        %400 = vmatpush1.msra.mxu0 0.0
        %401 = vmatprep.subr.mxu0 0.0
        %402 = vmatpush1.msra.mxu0 0.0
        %403 = vmatprep.subr.mxu0 0.0
        %404 = vmatpush1.msra.mxu0 0.0
        %405 = vmatprep.subr.mxu0 0.0
        %406 = vmatpush1.msra.mxu0 0.0
        %407 = vmatprep.subr.mxu0 0.0
        %408 = vmatpush1.msra.mxu0 0.0
        %409 = vmatprep.subr.mxu0 0.0
        %410 = vmatpush1.msra.mxu0 0.0
        %411 = vmatprep.subr.mxu0 0.0
        %412 = vmatpush1.msra.mxu0 0.0
        %413 = vmatprep.subr.mxu0 0.0
        %414 = vmatpush1.msra.mxu0 0.0
        %415 = vmatprep.subr.mxu0 0.0
        %416 = vmatpush1.msra.mxu0 0.0
        %417 = vmatprep.subr.mxu0 0.0
        %418 = vmatpush1.msra.mxu0 0.0
        %419 = vmatprep.subr.mxu0 0.0
        %420 = vmatpush1.msra.mxu0 0.0
        %421 = vmatprep.subr.mxu0 0.0
        %422 = vmatpush1.msra.mxu0 %v364
        %423 = vmatprep.subr.mxu0 0.0
        %424 = vmatpush1.msra.mxu0 %v363
        %425 = vmatprep.subr.mxu0 0.0
        %426 = vmatpush1.msra.mxu0 %v362
        %427 = vmatprep.subr.mxu0 0.0
        %428 = vmatpush1.msra.mxu0 %v361
        %429 = vmatprep.subr.mxu0 0.0
        %430 = vmatpush2.msra.mxu0 0.0
        %431 = vmatprep.subr.mxu0 0.0
        %432 = vmatpush2.msra.mxu0 0.0
        %433 = vmatprep.subr.mxu0 0.0
        %434 = vmatpush2.msra.mxu0 0.0
        %435 = vmatprep.subr.mxu0 0.0
        %436 = vmatpush2.msra.mxu0 0.0
        %437 = vmatprep.subr.mxu0 0.0
        %438 = vmatpush2.msra.mxu0 0.0
        %439 = vmatprep.subr.mxu0 0.0
        %440 = vmatpush2.msra.mxu0 0.0
        %441 = vmatprep.subr.mxu0 0.0
        %442 = vmatpush2.msra.mxu0 0.0
        %443 = vmatprep.subr.mxu0 0.0
        %444 = vmatpush2.msra.mxu0 0.0
        %445 = vmatprep.subr.mxu0 0.0
        %446 = vmatpush2.msra.mxu0 0.0
        %447 = vmatprep.subr.mxu0 0.0
        %448 = vmatpush2.msra.mxu0 0.0
        %449 = vmatprep.subr.mxu0 0.0
        %450 = vmatpush2.msra.mxu0 0.0
        %451 = vmatprep.subr.mxu0 0.0
        %452 = vmatpush2.msra.mxu0 0.0
        %453 = vmatprep.subr.mxu0 0.0
        %454 = vmatpush2.msra.mxu0 0.0
        %455 = vmatprep.subr.mxu0 0.0
        %456 = vmatpush2.msra.mxu0 0.0
        %457 = vmatprep.subr.mxu0 0.0
        %458 = vmatpush2.msra.mxu0 0.0
        %459 = vmatprep.subr.mxu0 0.0
        %460 = vmatpush2.msra.mxu0 0.0
        %461 = vmatprep.mubr.f32.mxu0 0.0
        %462 = vmatmul.mubr.f32.gmra.mxu0 %v374
        %v463 = vpop.f32.mrf.mxu0
        %v464 = vadd.f32 %v370, %v463
        %v465 = vpop.f32.mrf.mxu0
        %466 = vmatprep.mubr.f32.mxu0 0.0
        %467 = vmatmul.mubr.f32.gmra.mxu0 %v377
        %v468 = vpop.f32.mrf.mxu0
        %v469 = vadd.f32 %v370, %v468
        %v470 = vpop.f32.mrf.mxu0
        %471 = vmatprep.mubr.f32.mxu0 0.0
        %472 = vmatmul.mubr.f32.gmra.mxu0 %v380
        %v473 = vpop.f32.mrf.mxu0
        %v474 = vadd.f32 %v370, %v473
        %v475 = vpop.f32.mrf.mxu0
        %476 = vmatprep.mubr.f32.mxu0 0.0
        %477 = vmatmul.mubr.f32.gmra.mxu0 %v383
        %v478 = vpop.f32.mrf.mxu0
        %v479 = vadd.f32 %v370, %v478
        %v480 = vpop.f32.mrf.mxu0
        %481 = vmatprep.mubr.f32.mxu0 0.0
        %482 = vmatmul.mubr.f32.gmra.mxu0 %v386
        %v483 = vpop.f32.mrf.mxu0
        %v484 = vadd.f32 %v370, %v483
        %v485 = vpop.f32.mrf.mxu0
        %486 = vmatprep.mubr.f32.mxu0 0.0
        %487 = vmatmul.mubr.f32.gmra.mxu0 %v389
        %v488 = vpop.f32.mrf.mxu0
        %v489 = vadd.f32 %v370, %v488
        %v490 = vpop.f32.mrf.mxu0
        %491 = vmatprep.mubr.f32.mxu0 0.0
        %492 = vmatmul.mubr.f32.gmra.mxu0 %v392
        %v493 = vpop.f32.mrf.mxu0
        %v494 = vadd.f32 %v370, %v493
        %v495 = vpop.f32.mrf.mxu0
        %496 = vmatprep.mubr.f32.mxu0 0.0
        %497 = vmatmul.mubr.f32.gmra.mxu0 %v395
        %v498 = vpop.f32.mrf.mxu0
        %v499 = vadd.f32 %v370, %v498
        %v500 = vpop.f32.mrf.mxu0
        %501 = vdwg.mxu0
        %v502 = vlaneseq
        %v503 = vshrl.u32 %v502, 7
        %v504 = vlaneseq
        %v505 = vand.u32 %v504, 127
        %vm506 = vcmp.gt.s32.totalorder %v505, %v503
        %v507 = vsel %vm506, -1e+30, 0.0
        %vm508 = vcmask 130048
        %v510 = vsel %vm508, %v464, 0
        %512 = vmatprep.subr.mxu0 0.0
        %513 = vmatpush1.xpose.msra.mxu0 0.0
        %514 = vmatprep.subr.mxu0 0.0
        %515 = vmatpush1.xpose.msra.mxu0 0.0
        %516 = vmatprep.subr.mxu0 0.0
        %517 = vmatpush1.xpose.msra.mxu0 0.0
        %518 = vmatprep.subr.mxu0 0.0
        %519 = vmatpush1.xpose.msra.mxu0 0.0
        %520 = vmatprep.subr.mxu0 0.0
        %521 = vmatpush1.xpose.msra.mxu0 0.0
        %522 = vmatprep.subr.mxu0 0.0
        %523 = vmatpush1.xpose.msra.mxu0 0.0
        %524 = vmatprep.subr.mxu0 0.0
        %525 = vmatpush1.xpose.msra.mxu0 0.0
        %526 = vmatprep.subr.mxu0 0.0
        %527 = vmatpush1.xpose.msra.mxu0 0.0
        %528 = vmatprep.subr.mxu0 0.0
        %529 = vmatpush1.xpose.msra.mxu0 0.0
        %530 = vmatprep.subr.mxu0 0.0
        %531 = vmatpush1.xpose.msra.mxu0 0.0
        %532 = vmatprep.subr.mxu0 0.0
        %533 = vmatpush1.xpose.msra.mxu0 0.0
        %534 = vmatprep.subr.mxu0 0.0
        %535 = vmatpush1.xpose.msra.mxu0 0.0
        %536 = vmatprep.subr.mxu0 0.0
        %537 = vmatpush1.xpose.msra.mxu0 0.0
        %538 = vmatprep.subr.mxu0 0.0
        %539 = vmatpush1.xpose.msra.mxu0 0.0
        %540 = vmatprep.subr.mxu0 0.0
        %541 = vmatpush1.xpose.msra.mxu0 0.0
        %542 = vmatprep.subr.mxu0 0.0
        %543 = vmatpush1.xpose.msra.mxu0 %v510
        %544 = vmatprep.subr.mxu0 0.0
        %545 = vmatpush2.xpose.msra.mxu0 0.0
        %546 = vmatprep.subr.mxu0 0.0
        %547 = vmatpush2.xpose.msra.mxu0 0.0
        %548 = vmatprep.subr.mxu0 0.0
        %549 = vmatpush2.xpose.msra.mxu0 0.0
        %550 = vmatprep.subr.mxu0 0.0
        %551 = vmatpush2.xpose.msra.mxu0 0.0
        %552 = vmatprep.subr.mxu0 0.0
        %553 = vmatpush2.xpose.msra.mxu0 0.0
        %554 = vmatprep.subr.mxu0 0.0
        %555 = vmatpush2.xpose.msra.mxu0 0.0
        %556 = vmatprep.subr.mxu0 0.0
        %557 = vmatpush2.xpose.msra.mxu0 0.0
        %558 = vmatprep.subr.mxu0 0.0
        %559 = vmatpush2.xpose.msra.mxu0 0.0
        %560 = vmatprep.subr.mxu0 0.0
        %561 = vmatpush2.xpose.msra.mxu0 0.0
        %562 = vmatprep.subr.mxu0 0.0
        %563 = vmatpush2.xpose.msra.mxu0 0.0
        %564 = vmatprep.subr.mxu0 0.0
        %565 = vmatpush2.xpose.msra.mxu0 0.0
        %566 = vmatprep.subr.mxu0 0.0
        %567 = vmatpush2.xpose.msra.mxu0 0.0
        %568 = vmatprep.subr.mxu0 0.0
        %569 = vmatpush2.xpose.msra.mxu0 0.0
        %570 = vmatprep.subr.mxu0 0.0
        %571 = vmatpush2.xpose.msra.mxu0 0.0
        %572 = vmatprep.subr.mxu0 0.0
        %573 = vmatpush2.xpose.msra.mxu0 0.0
        %574 = vmatprep.subr.mxu0 0.0
        %575 = vmatpush2.xpose.msra.mxu0 0.0
        %576 = vmatprep.mubr.f32.mxu0 0.0
        %577 = vmatmul.mubr.f32.gmra.mxu0 %v510
        %v578 = vpop.f32.mrf.mxu0
        %v579 = vadd.f32 0.0, %v578
        %v580 = vpop.f32.mrf.mxu0
        %581 = vdwg.mxu0
        %v583 = vsel %vm508, %v469, 0
        %585 = vmatprep.subr.mxu0 0.0
        %586 = vmatpush1.xpose.msra.mxu0 0.0
        %587 = vmatprep.subr.mxu0 0.0
        %588 = vmatpush1.xpose.msra.mxu0 0.0
        %589 = vmatprep.subr.mxu0 0.0
        %590 = vmatpush1.xpose.msra.mxu0 0.0
        %591 = vmatprep.subr.mxu0 0.0
        %592 = vmatpush1.xpose.msra.mxu0 0.0
        %593 = vmatprep.subr.mxu0 0.0
        %594 = vmatpush1.xpose.msra.mxu0 0.0
        %595 = vmatprep.subr.mxu0 0.0
        %596 = vmatpush1.xpose.msra.mxu0 0.0
        %597 = vmatprep.subr.mxu0 0.0
        %598 = vmatpush1.xpose.msra.mxu0 0.0
        %599 = vmatprep.subr.mxu0 0.0
        %600 = vmatpush1.xpose.msra.mxu0 0.0
        %601 = vmatprep.subr.mxu0 0.0
        %602 = vmatpush1.xpose.msra.mxu0 0.0
        %603 = vmatprep.subr.mxu0 0.0
        %604 = vmatpush1.xpose.msra.mxu0 0.0
        %605 = vmatprep.subr.mxu0 0.0
        %606 = vmatpush1.xpose.msra.mxu0 0.0
        %607 = vmatprep.subr.mxu0 0.0
        %608 = vmatpush1.xpose.msra.mxu0 0.0
        %609 = vmatprep.subr.mxu0 0.0
        %610 = vmatpush1.xpose.msra.mxu0 0.0
        %611 = vmatprep.subr.mxu0 0.0
        %612 = vmatpush1.xpose.msra.mxu0 0.0
        %613 = vmatprep.subr.mxu0 0.0
        %614 = vmatpush1.xpose.msra.mxu0 0.0
        %615 = vmatprep.subr.mxu0 0.0
        %616 = vmatpush1.xpose.msra.mxu0 %v583
        %617 = vmatprep.subr.mxu0 0.0
        %618 = vmatpush2.xpose.msra.mxu0 0.0
        %619 = vmatprep.subr.mxu0 0.0
        %620 = vmatpush2.xpose.msra.mxu0 0.0
        %621 = vmatprep.subr.mxu0 0.0
        %622 = vmatpush2.xpose.msra.mxu0 0.0
        %623 = vmatprep.subr.mxu0 0.0
        %624 = vmatpush2.xpose.msra.mxu0 0.0
        %625 = vmatprep.subr.mxu0 0.0
        %626 = vmatpush2.xpose.msra.mxu0 0.0
        %627 = vmatprep.subr.mxu0 0.0
        %628 = vmatpush2.xpose.msra.mxu0 0.0
        %629 = vmatprep.subr.mxu0 0.0
        %630 = vmatpush2.xpose.msra.mxu0 0.0
        %631 = vmatprep.subr.mxu0 0.0
        %632 = vmatpush2.xpose.msra.mxu0 0.0
        %633 = vmatprep.subr.mxu0 0.0
        %634 = vmatpush2.xpose.msra.mxu0 0.0
        %635 = vmatprep.subr.mxu0 0.0
        %636 = vmatpush2.xpose.msra.mxu0 0.0
        %637 = vmatprep.subr.mxu0 0.0
        %638 = vmatpush2.xpose.msra.mxu0 0.0
        %639 = vmatprep.subr.mxu0 0.0
        %640 = vmatpush2.xpose.msra.mxu0 0.0
        %641 = vmatprep.subr.mxu0 0.0
        %642 = vmatpush2.xpose.msra.mxu0 0.0
        %643 = vmatprep.subr.mxu0 0.0
        %644 = vmatpush2.xpose.msra.mxu0 0.0
        %645 = vmatprep.subr.mxu0 0.0
        %646 = vmatpush2.xpose.msra.mxu0 0.0
        %647 = vmatprep.subr.mxu0 0.0
        %648 = vmatpush2.xpose.msra.mxu0 0.0
        %649 = vmatprep.mubr.f32.mxu0 0.0
        %650 = vmatmul.mubr.f32.gmra.mxu0 %v583
        %v651 = vpop.f32.mrf.mxu0
        %v652 = vadd.f32 0.0, %v651
        %v653 = vpop.f32.mrf.mxu0
        %654 = vdwg.mxu0
        %v656 = vsel %vm508, %v474, 0
        %658 = vmatprep.subr.mxu0 0.0
        %659 = vmatpush1.xpose.msra.mxu0 0.0
        %660 = vmatprep.subr.mxu0 0.0
        %661 = vmatpush1.xpose.msra.mxu0 0.0
        %662 = vmatprep.subr.mxu0 0.0
        %663 = vmatpush1.xpose.msra.mxu0 0.0
        %664 = vmatprep.subr.mxu0 0.0
        %665 = vmatpush1.xpose.msra.mxu0 0.0
        %666 = vmatprep.subr.mxu0 0.0
        %667 = vmatpush1.xpose.msra.mxu0 0.0
        %668 = vmatprep.subr.mxu0 0.0
        %669 = vmatpush1.xpose.msra.mxu0 0.0
        %670 = vmatprep.subr.mxu0 0.0
        %671 = vmatpush1.xpose.msra.mxu0 0.0
        %672 = vmatprep.subr.mxu0 0.0
        %673 = vmatpush1.xpose.msra.mxu0 0.0
        %674 = vmatprep.subr.mxu0 0.0
        %675 = vmatpush1.xpose.msra.mxu0 0.0
        %676 = vmatprep.subr.mxu0 0.0
        %677 = vmatpush1.xpose.msra.mxu0 0.0
        %678 = vmatprep.subr.mxu0 0.0
        %679 = vmatpush1.xpose.msra.mxu0 0.0
        %680 = vmatprep.subr.mxu0 0.0
        %681 = vmatpush1.xpose.msra.mxu0 0.0
        %682 = vmatprep.subr.mxu0 0.0
        %683 = vmatpush1.xpose.msra.mxu0 0.0
        %684 = vmatprep.subr.mxu0 0.0
        %685 = vmatpush1.xpose.msra.mxu0 0.0
        %686 = vmatprep.subr.mxu0 0.0
        %687 = vmatpush1.xpose.msra.mxu0 0.0
        %688 = vmatprep.subr.mxu0 0.0
        %689 = vmatpush1.xpose.msra.mxu0 %v656
        %690 = vmatprep.subr.mxu0 0.0
        %691 = vmatpush2.xpose.msra.mxu0 0.0
        %692 = vmatprep.subr.mxu0 0.0
        %693 = vmatpush2.xpose.msra.mxu0 0.0
        %694 = vmatprep.subr.mxu0 0.0
        %695 = vmatpush2.xpose.msra.mxu0 0.0
        %696 = vmatprep.subr.mxu0 0.0
        %697 = vmatpush2.xpose.msra.mxu0 0.0
        %698 = vmatprep.subr.mxu0 0.0
        %699 = vmatpush2.xpose.msra.mxu0 0.0
        %700 = vmatprep.subr.mxu0 0.0
        %701 = vmatpush2.xpose.msra.mxu0 0.0
        %702 = vmatprep.subr.mxu0 0.0
        %703 = vmatpush2.xpose.msra.mxu0 0.0
        %704 = vmatprep.subr.mxu0 0.0
        %705 = vmatpush2.xpose.msra.mxu0 0.0
        %706 = vmatprep.subr.mxu0 0.0
        %707 = vmatpush2.xpose.msra.mxu0 0.0
        %708 = vmatprep.subr.mxu0 0.0
        %709 = vmatpush2.xpose.msra.mxu0 0.0
        %710 = vmatprep.subr.mxu0 0.0
        %711 = vmatpush2.xpose.msra.mxu0 0.0
        %712 = vmatprep.subr.mxu0 0.0
        %713 = vmatpush2.xpose.msra.mxu0 0.0
        %714 = vmatprep.subr.mxu0 0.0
        %715 = vmatpush2.xpose.msra.mxu0 0.0
        %716 = vmatprep.subr.mxu0 0.0
        %717 = vmatpush2.xpose.msra.mxu0 0.0
        %718 = vmatprep.subr.mxu0 0.0
        %719 = vmatpush2.xpose.msra.mxu0 0.0
        %720 = vmatprep.subr.mxu0 0.0
        %721 = vmatpush2.xpose.msra.mxu0 0.0
        %722 = vmatprep.mubr.f32.mxu0 0.0
        %723 = vmatmul.mubr.f32.gmra.mxu0 %v656
        %v724 = vpop.f32.mrf.mxu0
        %v725 = vadd.f32 0.0, %v724
        %v726 = vpop.f32.mrf.mxu0
        %727 = vdwg.mxu0
        %v729 = vsel %vm508, %v479, 0
        %731 = vmatprep.subr.mxu0 0.0
        %732 = vmatpush1.xpose.msra.mxu0 0.0
        %733 = vmatprep.subr.mxu0 0.0
        %734 = vmatpush1.xpose.msra.mxu0 0.0
        %735 = vmatprep.subr.mxu0 0.0
        %736 = vmatpush1.xpose.msra.mxu0 0.0
        %737 = vmatprep.subr.mxu0 0.0
        %738 = vmatpush1.xpose.msra.mxu0 0.0
        %739 = vmatprep.subr.mxu0 0.0
        %740 = vmatpush1.xpose.msra.mxu0 0.0
        %741 = vmatprep.subr.mxu0 0.0
        %742 = vmatpush1.xpose.msra.mxu0 0.0
        %743 = vmatprep.subr.mxu0 0.0
        %744 = vmatpush1.xpose.msra.mxu0 0.0
        %745 = vmatprep.subr.mxu0 0.0
        %746 = vmatpush1.xpose.msra.mxu0 0.0
        %747 = vmatprep.subr.mxu0 0.0
        %748 = vmatpush1.xpose.msra.mxu0 0.0
        %749 = vmatprep.subr.mxu0 0.0
        %750 = vmatpush1.xpose.msra.mxu0 0.0
        %751 = vmatprep.subr.mxu0 0.0
        %752 = vmatpush1.xpose.msra.mxu0 0.0
        %753 = vmatprep.subr.mxu0 0.0
        %754 = vmatpush1.xpose.msra.mxu0 0.0
        %755 = vmatprep.subr.mxu0 0.0
        %756 = vmatpush1.xpose.msra.mxu0 0.0
        %757 = vmatprep.subr.mxu0 0.0
        %758 = vmatpush1.xpose.msra.mxu0 0.0
        %759 = vmatprep.subr.mxu0 0.0
        %760 = vmatpush1.xpose.msra.mxu0 0.0
        %761 = vmatprep.subr.mxu0 0.0
        %762 = vmatpush1.xpose.msra.mxu0 %v729
        %763 = vmatprep.subr.mxu0 0.0
        %764 = vmatpush2.xpose.msra.mxu0 0.0
        %765 = vmatprep.subr.mxu0 0.0
        %766 = vmatpush2.xpose.msra.mxu0 0.0
        %767 = vmatprep.subr.mxu0 0.0
        %768 = vmatpush2.xpose.msra.mxu0 0.0
        %769 = vmatprep.subr.mxu0 0.0
        %770 = vmatpush2.xpose.msra.mxu0 0.0
        %771 = vmatprep.subr.mxu0 0.0
        %772 = vmatpush2.xpose.msra.mxu0 0.0
        %773 = vmatprep.subr.mxu0 0.0
        %774 = vmatpush2.xpose.msra.mxu0 0.0
        %775 = vmatprep.subr.mxu0 0.0
        %776 = vmatpush2.xpose.msra.mxu0 0.0
        %777 = vmatprep.subr.mxu0 0.0
        %778 = vmatpush2.xpose.msra.mxu0 0.0
        %779 = vmatprep.subr.mxu0 0.0
        %780 = vmatpush2.xpose.msra.mxu0 0.0
        %781 = vmatprep.subr.mxu0 0.0
        %782 = vmatpush2.xpose.msra.mxu0 0.0
        %783 = vmatprep.subr.mxu0 0.0
        %784 = vmatpush2.xpose.msra.mxu0 0.0
        %785 = vmatprep.subr.mxu0 0.0
        %786 = vmatpush2.xpose.msra.mxu0 0.0
        %787 = vmatprep.subr.mxu0 0.0
        %788 = vmatpush2.xpose.msra.mxu0 0.0
        %789 = vmatprep.subr.mxu0 0.0
        %790 = vmatpush2.xpose.msra.mxu0 0.0
        %791 = vmatprep.subr.mxu0 0.0
        %792 = vmatpush2.xpose.msra.mxu0 0.0
        %793 = vmatprep.subr.mxu0 0.0
        %794 = vmatpush2.xpose.msra.mxu0 0.0
        %795 = vmatprep.mubr.f32.mxu0 0.0
        %796 = vmatmul.mubr.f32.gmra.mxu0 %v729
        %v797 = vpop.f32.mrf.mxu0
        %v798 = vadd.f32 0.0, %v797
        %v799 = vpop.f32.mrf.mxu0
        %800 = vdwg.mxu0
        %v802 = vsel %vm508, %v484, 0
        %804 = vmatprep.subr.mxu0 0.0
        %805 = vmatpush1.xpose.msra.mxu0 0.0
        %806 = vmatprep.subr.mxu0 0.0
        %807 = vmatpush1.xpose.msra.mxu0 0.0
        %808 = vmatprep.subr.mxu0 0.0
        %809 = vmatpush1.xpose.msra.mxu0 0.0
        %810 = vmatprep.subr.mxu0 0.0
        %811 = vmatpush1.xpose.msra.mxu0 0.0
        %812 = vmatprep.subr.mxu0 0.0
        %813 = vmatpush1.xpose.msra.mxu0 0.0
        %814 = vmatprep.subr.mxu0 0.0
        %815 = vmatpush1.xpose.msra.mxu0 0.0
        %816 = vmatprep.subr.mxu0 0.0
        %817 = vmatpush1.xpose.msra.mxu0 0.0
        %818 = vmatprep.subr.mxu0 0.0
        %819 = vmatpush1.xpose.msra.mxu0 0.0
        %820 = vmatprep.subr.mxu0 0.0
        %821 = vmatpush1.xpose.msra.mxu0 0.0
        %822 = vmatprep.subr.mxu0 0.0
        %823 = vmatpush1.xpose.msra.mxu0 0.0
        %824 = vmatprep.subr.mxu0 0.0
        %825 = vmatpush1.xpose.msra.mxu0 0.0
        %826 = vmatprep.subr.mxu0 0.0
        %827 = vmatpush1.xpose.msra.mxu0 0.0
        %828 = vmatprep.subr.mxu0 0.0
        %829 = vmatpush1.xpose.msra.mxu0 0.0
        %830 = vmatprep.subr.mxu0 0.0
        %831 = vmatpush1.xpose.msra.mxu0 0.0
        %832 = vmatprep.subr.mxu0 0.0
        %833 = vmatpush1.xpose.msra.mxu0 0.0
        %834 = vmatprep.subr.mxu0 0.0
        %835 = vmatpush1.xpose.msra.mxu0 %v802
        %836 = vmatprep.subr.mxu0 0.0
        %837 = vmatpush2.xpose.msra.mxu0 0.0
        %838 = vmatprep.subr.mxu0 0.0
        %839 = vmatpush2.xpose.msra.mxu0 0.0
        %840 = vmatprep.subr.mxu0 0.0
        %841 = vmatpush2.xpose.msra.mxu0 0.0
        %842 = vmatprep.subr.mxu0 0.0
        %843 = vmatpush2.xpose.msra.mxu0 0.0
        %844 = vmatprep.subr.mxu0 0.0
        %845 = vmatpush2.xpose.msra.mxu0 0.0
        %846 = vmatprep.subr.mxu0 0.0
        %847 = vmatpush2.xpose.msra.mxu0 0.0
        %848 = vmatprep.subr.mxu0 0.0
        %849 = vmatpush2.xpose.msra.mxu0 0.0
        %850 = vmatprep.subr.mxu0 0.0
        %851 = vmatpush2.xpose.msra.mxu0 0.0
        %852 = vmatprep.subr.mxu0 0.0
        %853 = vmatpush2.xpose.msra.mxu0 0.0
        %854 = vmatprep.subr.mxu0 0.0
        %855 = vmatpush2.xpose.msra.mxu0 0.0
        %856 = vmatprep.subr.mxu0 0.0
        %857 = vmatpush2.xpose.msra.mxu0 0.0
        %858 = vmatprep.subr.mxu0 0.0
        %859 = vmatpush2.xpose.msra.mxu0 0.0
        %860 = vmatprep.subr.mxu0 0.0
        %861 = vmatpush2.xpose.msra.mxu0 0.0
        %862 = vmatprep.subr.mxu0 0.0
        %863 = vmatpush2.xpose.msra.mxu0 0.0
        %864 = vmatprep.subr.mxu0 0.0
        %865 = vmatpush2.xpose.msra.mxu0 0.0
        %866 = vmatprep.subr.mxu0 0.0
        %867 = vmatpush2.xpose.msra.mxu0 0.0
        %868 = vmatprep.mubr.f32.mxu0 0.0
        %869 = vmatmul.mubr.f32.gmra.mxu0 %v802
        %v870 = vpop.f32.mrf.mxu0
        %v871 = vadd.f32 0.0, %v870
        %v872 = vpop.f32.mrf.mxu0
        %873 = vdwg.mxu0
        %v875 = vsel %vm508, %v489, 0
        %877 = vmatprep.subr.mxu0 0.0
        %878 = vmatpush1.xpose.msra.mxu0 0.0
        %879 = vmatprep.subr.mxu0 0.0
        %880 = vmatpush1.xpose.msra.mxu0 0.0
        %881 = vmatprep.subr.mxu0 0.0
        %882 = vmatpush1.xpose.msra.mxu0 0.0
        %883 = vmatprep.subr.mxu0 0.0
        %884 = vmatpush1.xpose.msra.mxu0 0.0
        %885 = vmatprep.subr.mxu0 0.0
        %886 = vmatpush1.xpose.msra.mxu0 0.0
        %887 = vmatprep.subr.mxu0 0.0
        %888 = vmatpush1.xpose.msra.mxu0 0.0
        %889 = vmatprep.subr.mxu0 0.0
        %890 = vmatpush1.xpose.msra.mxu0 0.0
        %891 = vmatprep.subr.mxu0 0.0
        %892 = vmatpush1.xpose.msra.mxu0 0.0
        %893 = vmatprep.subr.mxu0 0.0
        %894 = vmatpush1.xpose.msra.mxu0 0.0
        %895 = vmatprep.subr.mxu0 0.0
        %896 = vmatpush1.xpose.msra.mxu0 0.0
        %897 = vmatprep.subr.mxu0 0.0
        %898 = vmatpush1.xpose.msra.mxu0 0.0
        %899 = vmatprep.subr.mxu0 0.0
        %900 = vmatpush1.xpose.msra.mxu0 0.0
        %901 = vmatprep.subr.mxu0 0.0
        %902 = vmatpush1.xpose.msra.mxu0 0.0
        %903 = vmatprep.subr.mxu0 0.0
        %904 = vmatpush1.xpose.msra.mxu0 0.0
        %905 = vmatprep.subr.mxu0 0.0
        %906 = vmatpush1.xpose.msra.mxu0 0.0
        %907 = vmatprep.subr.mxu0 0.0
        %908 = vmatpush1.xpose.msra.mxu0 %v875
        %909 = vmatprep.subr.mxu0 0.0
        %910 = vmatpush2.xpose.msra.mxu0 0.0
        %911 = vmatprep.subr.mxu0 0.0
        %912 = vmatpush2.xpose.msra.mxu0 0.0
        %913 = vmatprep.subr.mxu0 0.0
        %914 = vmatpush2.xpose.msra.mxu0 0.0
        %915 = vmatprep.subr.mxu0 0.0
        %916 = vmatpush2.xpose.msra.mxu0 0.0
        %917 = vmatprep.subr.mxu0 0.0
        %918 = vmatpush2.xpose.msra.mxu0 0.0
        %919 = vmatprep.subr.mxu0 0.0
        %920 = vmatpush2.xpose.msra.mxu0 0.0
        %921 = vmatprep.subr.mxu0 0.0
        %922 = vmatpush2.xpose.msra.mxu0 0.0
        %923 = vmatprep.subr.mxu0 0.0
        %924 = vmatpush2.xpose.msra.mxu0 0.0
        %925 = vmatprep.subr.mxu0 0.0
        %926 = vmatpush2.xpose.msra.mxu0 0.0
        %927 = vmatprep.subr.mxu0 0.0
        %928 = vmatpush2.xpose.msra.mxu0 0.0
        %929 = vmatprep.subr.mxu0 0.0
        %930 = vmatpush2.xpose.msra.mxu0 0.0
        %931 = vmatprep.subr.mxu0 0.0
        %932 = vmatpush2.xpose.msra.mxu0 0.0
        %933 = vmatprep.subr.mxu0 0.0
        %934 = vmatpush2.xpose.msra.mxu0 0.0
        %935 = vmatprep.subr.mxu0 0.0
        %936 = vmatpush2.xpose.msra.mxu0 0.0
        %937 = vmatprep.subr.mxu0 0.0
        %938 = vmatpush2.xpose.msra.mxu0 0.0
        %939 = vmatprep.subr.mxu0 0.0
        %940 = vmatpush2.xpose.msra.mxu0 0.0
        %941 = vmatprep.mubr.f32.mxu0 0.0
        %942 = vmatmul.mubr.f32.gmra.mxu0 %v875
        %v943 = vpop.f32.mrf.mxu0
        %v944 = vadd.f32 0.0, %v943
        %v945 = vpop.f32.mrf.mxu0
        %946 = vdwg.mxu0
        %v948 = vsel %vm508, %v494, 0
        %950 = vmatprep.subr.mxu0 0.0
        %951 = vmatpush1.xpose.msra.mxu0 0.0
        %952 = vmatprep.subr.mxu0 0.0
        %953 = vmatpush1.xpose.msra.mxu0 0.0
        %954 = vmatprep.subr.mxu0 0.0
        %955 = vmatpush1.xpose.msra.mxu0 0.0
        %956 = vmatprep.subr.mxu0 0.0
        %957 = vmatpush1.xpose.msra.mxu0 0.0
        %958 = vmatprep.subr.mxu0 0.0
        %959 = vmatpush1.xpose.msra.mxu0 0.0
        %960 = vmatprep.subr.mxu0 0.0
        %961 = vmatpush1.xpose.msra.mxu0 0.0
        %962 = vmatprep.subr.mxu0 0.0
        %963 = vmatpush1.xpose.msra.mxu0 0.0
        %964 = vmatprep.subr.mxu0 0.0
        %965 = vmatpush1.xpose.msra.mxu0 0.0
        %966 = vmatprep.subr.mxu0 0.0
        %967 = vmatpush1.xpose.msra.mxu0 0.0
        %968 = vmatprep.subr.mxu0 0.0
        %969 = vmatpush1.xpose.msra.mxu0 0.0
        %970 = vmatprep.subr.mxu0 0.0
        %971 = vmatpush1.xpose.msra.mxu0 0.0
        %972 = vmatprep.subr.mxu0 0.0
        %973 = vmatpush1.xpose.msra.mxu0 0.0
        %974 = vmatprep.subr.mxu0 0.0
        %975 = vmatpush1.xpose.msra.mxu0 0.0
        %976 = vmatprep.subr.mxu0 0.0
        %977 = vmatpush1.xpose.msra.mxu0 0.0
        %978 = vmatprep.subr.mxu0 0.0
        %979 = vmatpush1.xpose.msra.mxu0 0.0
        %980 = vmatprep.subr.mxu0 0.0
        %981 = vmatpush1.xpose.msra.mxu0 %v948
        %982 = vmatprep.subr.mxu0 0.0
        %983 = vmatpush2.xpose.msra.mxu0 0.0
        %984 = vmatprep.subr.mxu0 0.0
        %985 = vmatpush2.xpose.msra.mxu0 0.0
        %986 = vmatprep.subr.mxu0 0.0
        %987 = vmatpush2.xpose.msra.mxu0 0.0
        %988 = vmatprep.subr.mxu0 0.0
        %989 = vmatpush2.xpose.msra.mxu0 0.0
        %990 = vmatprep.subr.mxu0 0.0
        %991 = vmatpush2.xpose.msra.mxu0 0.0
        %992 = vmatprep.subr.mxu0 0.0
        %993 = vmatpush2.xpose.msra.mxu0 0.0
        %994 = vmatprep.subr.mxu0 0.0
        %995 = vmatpush2.xpose.msra.mxu0 0.0
        %996 = vmatprep.subr.mxu0 0.0
        %997 = vmatpush2.xpose.msra.mxu0 0.0
        %998 = vmatprep.subr.mxu0 0.0
        %999 = vmatpush2.xpose.msra.mxu0 0.0
        %1000 = vmatprep.subr.mxu0 0.0
        %1001 = vmatpush2.xpose.msra.mxu0 0.0
        %1002 = vmatprep.subr.mxu0 0.0
        %1003 = vmatpush2.xpose.msra.mxu0 0.0
        %1004 = vmatprep.subr.mxu0 0.0
        %1005 = vmatpush2.xpose.msra.mxu0 0.0
        %1006 = vmatprep.subr.mxu0 0.0
        %1007 = vmatpush2.xpose.msra.mxu0 0.0
        %1008 = vmatprep.subr.mxu0 0.0
        %1009 = vmatpush2.xpose.msra.mxu0 0.0
        %1010 = vmatprep.subr.mxu0 0.0
        %1011 = vmatpush2.xpose.msra.mxu0 0.0
        %1012 = vmatprep.subr.mxu0 0.0
        %1013 = vmatpush2.xpose.msra.mxu0 0.0
        %1014 = vmatprep.mubr.f32.mxu0 0.0
        %1015 = vmatmul.mubr.f32.gmra.mxu0 %v948
        %v1016 = vpop.f32.mrf.mxu0
        %v1017 = vadd.f32 0.0, %v1016
        %v1018 = vpop.f32.mrf.mxu0
        %1019 = vdwg.mxu0
        %v1021 = vsel %vm508, %v499, 0
        %1023 = vmatprep.subr.mxu0 0.0
        %1024 = vmatpush1.xpose.msra.mxu0 0.0
        %1025 = vmatprep.subr.mxu0 0.0
        %1026 = vmatpush1.xpose.msra.mxu0 0.0
        %1027 = vmatprep.subr.mxu0 0.0
        %1028 = vmatpush1.xpose.msra.mxu0 0.0
        %1029 = vmatprep.subr.mxu0 0.0
        %1030 = vmatpush1.xpose.msra.mxu0 0.0
        %1031 = vmatprep.subr.mxu0 0.0
        %1032 = vmatpush1.xpose.msra.mxu0 0.0
        %1033 = vmatprep.subr.mxu0 0.0
        %1034 = vmatpush1.xpose.msra.mxu0 0.0
        %1035 = vmatprep.subr.mxu0 0.0
        %1036 = vmatpush1.xpose.msra.mxu0 0.0
        %1037 = vmatprep.subr.mxu0 0.0
        %1038 = vmatpush1.xpose.msra.mxu0 0.0
        %1039 = vmatprep.subr.mxu0 0.0
        %1040 = vmatpush1.xpose.msra.mxu0 0.0
        %1041 = vmatprep.subr.mxu0 0.0
        %1042 = vmatpush1.xpose.msra.mxu0 0.0
        %1043 = vmatprep.subr.mxu0 0.0
        %1044 = vmatpush1.xpose.msra.mxu0 0.0
        %1045 = vmatprep.subr.mxu0 0.0
        %1046 = vmatpush1.xpose.msra.mxu0 0.0
        %1047 = vmatprep.subr.mxu0 0.0
        %1048 = vmatpush1.xpose.msra.mxu0 0.0
        %1049 = vmatprep.subr.mxu0 0.0
        %1050 = vmatpush1.xpose.msra.mxu0 0.0
        %1051 = vmatprep.subr.mxu0 0.0
        %1052 = vmatpush1.xpose.msra.mxu0 0.0
        %1053 = vmatprep.subr.mxu0 0.0
        %1054 = vmatpush1.xpose.msra.mxu0 %v1021
        %1055 = vmatprep.subr.mxu0 0.0
        %1056 = vmatpush2.xpose.msra.mxu0 0.0
        %1057 = vmatprep.subr.mxu0 0.0
        %1058 = vmatpush2.xpose.msra.mxu0 0.0
        %1059 = vmatprep.subr.mxu0 0.0
        %1060 = vmatpush2.xpose.msra.mxu0 0.0
        %1061 = vmatprep.subr.mxu0 0.0
        %1062 = vmatpush2.xpose.msra.mxu0 0.0
        %1063 = vmatprep.subr.mxu0 0.0
        %1064 = vmatpush2.xpose.msra.mxu0 0.0
        %1065 = vmatprep.subr.mxu0 0.0
        %1066 = vmatpush2.xpose.msra.mxu0 0.0
        %1067 = vmatprep.subr.mxu0 0.0
        %1068 = vmatpush2.xpose.msra.mxu0 0.0
        %1069 = vmatprep.subr.mxu0 0.0
        %1070 = vmatpush2.xpose.msra.mxu0 0.0
        %1071 = vmatprep.subr.mxu0 0.0
        %1072 = vmatpush2.xpose.msra.mxu0 0.0
        %1073 = vmatprep.subr.mxu0 0.0
        %1074 = vmatpush2.xpose.msra.mxu0 0.0
        %1075 = vmatprep.subr.mxu0 0.0
        %1076 = vmatpush2.xpose.msra.mxu0 0.0
        %1077 = vmatprep.subr.mxu0 0.0
        %1078 = vmatpush2.xpose.msra.mxu0 0.0
        %1079 = vmatprep.subr.mxu0 0.0
        %1080 = vmatpush2.xpose.msra.mxu0 0.0
        %1081 = vmatprep.subr.mxu0 0.0
        %1082 = vmatpush2.xpose.msra.mxu0 0.0
        %1083 = vmatprep.subr.mxu0 0.0
        %1084 = vmatpush2.xpose.msra.mxu0 0.0
        %1085 = vmatprep.subr.mxu0 0.0
        %1086 = vmatpush2.xpose.msra.mxu0 0.0
        %1087 = vmatprep.mubr.f32.mxu0 0.0
        %1088 = vmatmul.mubr.f32.gmra.mxu0 %v1021
        %v1089 = vpop.f32.mrf.mxu0
        %v1090 = vadd.f32 0.0, %v1089
        %v1091 = vpop.f32.mrf.mxu0
        %1092 = vdwg.mxu0
        %v1093 = vmul.f32 %v579, 0.25
        %v1094 = vmul.f32 %v652, 0.25
        %v1095 = vmul.f32 %v725, 0.25
        %v1096 = vmul.f32 %v798, 0.25
        %v1097 = vmul.f32 %v871, 0.25
        %v1098 = vmul.f32 %v944, 0.25
        %v1099 = vmul.f32 %v1017, 0.25
        %v1100 = vmul.f32 %v1090, 0.25
        %v1101 = vadd.f32 %v1093, %v507
        %v1102 = vadd.f32 %v1094, %v507
        %v1103 = vadd.f32 %v1095, %v507
        %v1104 = vadd.f32 %v1096, %v507
        %v1105 = vadd.f32 %v1097, %v507
        %v1106 = vadd.f32 %v1098, %v507
        %v1107 = vadd.f32 %v1099, %v507
        %v1108 = vadd.f32 %v1100, %v507
        %vm1109 = vcmask 64512
        %v1110 = vsel %vm1109, %v1101, -inf
        %1111 = vmax.xlane.f32.xlu0 %v1110
        %v1112 = vpop.xlane.xlu0 %1111
        %v1113 = vsel %vm1109, %v1102, -inf
        %1114 = vmax.xlane.f32.xlu0 %v1113
        %v1115 = vpop.xlane.xlu0 %1114
        %v1116 = vsel %vm1109, %v1103, -inf
        %1117 = vmax.xlane.f32.xlu0 %v1116
        %v1118 = vpop.xlane.xlu0 %1117
        %v1119 = vsel %vm1109, %v1104, -inf
        %1120 = vmax.xlane.f32.xlu0 %v1119
        %v1121 = vpop.xlane.xlu0 %1120
        %v1122 = vsel %vm1109, %v1105, -inf
        %1123 = vmax.xlane.f32.xlu0 %v1122
        %v1124 = vpop.xlane.xlu0 %1123
        %v1125 = vsel %vm1109, %v1106, -inf
        %1126 = vmax.xlane.f32.xlu0 %v1125
        %v1127 = vpop.xlane.xlu0 %1126
        %v1128 = vsel %vm1109, %v1107, -inf
        %1129 = vmax.xlane.f32.xlu0 %v1128
        %v1130 = vpop.xlane.xlu0 %1129
        %v1131 = vsel %vm1109, %v1108, -inf
        %1132 = vmax.xlane.f32.xlu0 %v1131
        %v1133 = vpop.xlane.xlu0 %1132
        %v1134 = vsub.f32 %v1101, %v1112
        %v1135 = vsub.f32 %v1102, %v1115
        %v1136 = vsub.f32 %v1103, %v1118
        %v1137 = vsub.f32 %v1104, %v1121
        %v1138 = vsub.f32 %v1105, %v1124
        %v1139 = vsub.f32 %v1106, %v1127
        %v1140 = vsub.f32 %v1107, %v1130
        %v1141 = vsub.f32 %v1108, %v1133
        %v1142 = vmul.f32 %v1134, 1.442695
        %v1143 = vpow.pop %v1142
        %v1144 = vmul.f32 %v1135, 1.442695
        %v1145 = vpow.pop %v1144
        %v1146 = vmul.f32 %v1136, 1.442695
        %v1147 = vpow.pop %v1146
        %v1148 = vmul.f32 %v1137, 1.442695
        %v1149 = vpow.pop %v1148
        %v1150 = vmul.f32 %v1138, 1.442695
        %v1151 = vpow.pop %v1150
        %v1152 = vmul.f32 %v1139, 1.442695
        %v1153 = vpow.pop %v1152
        %v1154 = vmul.f32 %v1140, 1.442695
        %v1155 = vpow.pop %v1154
        %v1156 = vmul.f32 %v1141, 1.442695
        %v1157 = vpow.pop %v1156
        %v1158 = vsel %vm1109, %v1143, 0.0
        %1159 = vadd.xlane.f32.xlu0 %v1158
        %v1160 = vpop.xlane.xlu0 %1159
        %v1161 = vsel %vm1109, %v1145, 0.0
        %1162 = vadd.xlane.f32.xlu0 %v1161
        %v1163 = vpop.xlane.xlu0 %1162
        %v1164 = vsel %vm1109, %v1147, 0.0
        %1165 = vadd.xlane.f32.xlu0 %v1164
        %v1166 = vpop.xlane.xlu0 %1165
        %v1167 = vsel %vm1109, %v1149, 0.0
        %1168 = vadd.xlane.f32.xlu0 %v1167
        %v1169 = vpop.xlane.xlu0 %1168
        %v1170 = vsel %vm1109, %v1151, 0.0
        %1171 = vadd.xlane.f32.xlu0 %v1170
        %v1172 = vpop.xlane.xlu0 %1171
        %v1173 = vsel %vm1109, %v1153, 0.0
        %1174 = vadd.xlane.f32.xlu0 %v1173
        %v1175 = vpop.xlane.xlu0 %1174
        %v1176 = vsel %vm1109, %v1155, 0.0
        %1177 = vadd.xlane.f32.xlu0 %v1176
        %v1178 = vpop.xlane.xlu0 %1177
        %v1179 = vsel %vm1109, %v1157, 0.0
        %1180 = vadd.xlane.f32.xlu0 %v1179
        %v1181 = vpop.xlane.xlu0 %1180
        %v1182 = vrcp.pop %v1160
        %v1183 = vmul.f32 %v1143, %v1182
        %v1184 = vrcp.pop %v1163
        %v1185 = vmul.f32 %v1145, %v1184
        %v1186 = vrcp.pop %v1166
        %v1187 = vmul.f32 %v1147, %v1186
        %v1188 = vrcp.pop %v1169
        %v1189 = vmul.f32 %v1149, %v1188
        %v1190 = vrcp.pop %v1172
        %v1191 = vmul.f32 %v1151, %v1190
        %v1192 = vrcp.pop %v1175
        %v1193 = vmul.f32 %v1153, %v1192
        %v1194 = vrcp.pop %v1178
        %v1195 = vmul.f32 %v1155, %v1194
        %v1196 = vrcp.pop %v1181
        %v1197 = vmul.f32 %v1157, %v1196
        %1198 = vrot.lane.b32.xlu0 %v464, 96
        %v1199 = vpop.permute.xlu0 %1198
        %v1202 = vsel %vm1109, %v1183, 0
        %1204 = vmatprep.subr.mxu0 0.0
        %1205 = vmatpush1.msra.mxu0 0.0
        %1206 = vmatprep.subr.mxu0 0.0
        %1207 = vmatpush1.msra.mxu0 0.0
        %1208 = vmatprep.subr.mxu0 0.0
        %1209 = vmatpush1.msra.mxu0 0.0
        %1210 = vmatprep.subr.mxu0 0.0
        %1211 = vmatpush1.msra.mxu0 0.0
        %1212 = vmatprep.subr.mxu0 0.0
        %1213 = vmatpush1.msra.mxu0 0.0
        %1214 = vmatprep.subr.mxu0 0.0
        %1215 = vmatpush1.msra.mxu0 0.0
        %1216 = vmatprep.subr.mxu0 0.0
        %1217 = vmatpush1.msra.mxu0 0.0
        %1218 = vmatprep.subr.mxu0 0.0
        %1219 = vmatpush1.msra.mxu0 0.0
        %1220 = vmatprep.subr.mxu0 0.0
        %1221 = vmatpush1.msra.mxu0 0.0
        %1222 = vmatprep.subr.mxu0 0.0
        %1223 = vmatpush1.msra.mxu0 0.0
        %1224 = vmatprep.subr.mxu0 0.0
        %1225 = vmatpush1.msra.mxu0 0.0
        %1226 = vmatprep.subr.mxu0 0.0
        %1227 = vmatpush1.msra.mxu0 0.0
        %1228 = vmatprep.subr.mxu0 0.0
        %1229 = vmatpush1.msra.mxu0 0.0
        %1230 = vmatprep.subr.mxu0 0.0
        %1231 = vmatpush1.msra.mxu0 0.0
        %1232 = vmatprep.subr.mxu0 0.0
        %1233 = vmatpush1.msra.mxu0 0.0
        %1234 = vmatprep.subr.mxu0 0.0
        %1235 = vmatpush1.msra.mxu0 %v1199
        %1236 = vmatprep.subr.mxu0 0.0
        %1237 = vmatpush2.msra.mxu0 0.0
        %1238 = vmatprep.subr.mxu0 0.0
        %1239 = vmatpush2.msra.mxu0 0.0
        %1240 = vmatprep.subr.mxu0 0.0
        %1241 = vmatpush2.msra.mxu0 0.0
        %1242 = vmatprep.subr.mxu0 0.0
        %1243 = vmatpush2.msra.mxu0 0.0
        %1244 = vmatprep.subr.mxu0 0.0
        %1245 = vmatpush2.msra.mxu0 0.0
        %1246 = vmatprep.subr.mxu0 0.0
        %1247 = vmatpush2.msra.mxu0 0.0
        %1248 = vmatprep.subr.mxu0 0.0
        %1249 = vmatpush2.msra.mxu0 0.0
        %1250 = vmatprep.subr.mxu0 0.0
        %1251 = vmatpush2.msra.mxu0 0.0
        %1252 = vmatprep.subr.mxu0 0.0
        %1253 = vmatpush2.msra.mxu0 0.0
        %1254 = vmatprep.subr.mxu0 0.0
        %1255 = vmatpush2.msra.mxu0 0.0
        %1256 = vmatprep.subr.mxu0 0.0
        %1257 = vmatpush2.msra.mxu0 0.0
        %1258 = vmatprep.subr.mxu0 0.0
        %1259 = vmatpush2.msra.mxu0 0.0
        %1260 = vmatprep.subr.mxu0 0.0
        %1261 = vmatpush2.msra.mxu0 0.0
        %1262 = vmatprep.subr.mxu0 0.0
        %1263 = vmatpush2.msra.mxu0 0.0
        %1264 = vmatprep.subr.mxu0 0.0
        %1265 = vmatpush2.msra.mxu0 0.0
        %1266 = vmatprep.subr.mxu0 0.0
        %1267 = vmatpush2.msra.mxu0 0.0
        %1268 = vmatprep.mubr.f32.mxu0 0.0
        %1269 = vmatmul.mubr.f32.gmra.mxu0 %v1202
        %v1270 = vpop.f32.mrf.mxu0
        %v1271 = vadd.f32 0.0, %v1270
        %v1272 = vpop.f32.mrf.mxu0
        %1273 = vdwg.mxu0
        %1274 = vrot.lane.b32.xlu0 %v469, 96
        %v1275 = vpop.permute.xlu0 %1274
        %v1278 = vsel %vm1109, %v1185, 0
        %1280 = vmatprep.subr.mxu0 0.0
        %1281 = vmatpush1.msra.mxu0 0.0
        %1282 = vmatprep.subr.mxu0 0.0
        %1283 = vmatpush1.msra.mxu0 0.0
        %1284 = vmatprep.subr.mxu0 0.0
        %1285 = vmatpush1.msra.mxu0 0.0
        %1286 = vmatprep.subr.mxu0 0.0
        %1287 = vmatpush1.msra.mxu0 0.0
        %1288 = vmatprep.subr.mxu0 0.0
        %1289 = vmatpush1.msra.mxu0 0.0
        %1290 = vmatprep.subr.mxu0 0.0
        %1291 = vmatpush1.msra.mxu0 0.0
        %1292 = vmatprep.subr.mxu0 0.0
        %1293 = vmatpush1.msra.mxu0 0.0
        %1294 = vmatprep.subr.mxu0 0.0
        %1295 = vmatpush1.msra.mxu0 0.0
        %1296 = vmatprep.subr.mxu0 0.0
        %1297 = vmatpush1.msra.mxu0 0.0
        %1298 = vmatprep.subr.mxu0 0.0
        %1299 = vmatpush1.msra.mxu0 0.0
        %1300 = vmatprep.subr.mxu0 0.0
        %1301 = vmatpush1.msra.mxu0 0.0
        %1302 = vmatprep.subr.mxu0 0.0
        %1303 = vmatpush1.msra.mxu0 0.0
        %1304 = vmatprep.subr.mxu0 0.0
        %1305 = vmatpush1.msra.mxu0 0.0
        %1306 = vmatprep.subr.mxu0 0.0
        %1307 = vmatpush1.msra.mxu0 0.0
        %1308 = vmatprep.subr.mxu0 0.0
        %1309 = vmatpush1.msra.mxu0 0.0
        %1310 = vmatprep.subr.mxu0 0.0
        %1311 = vmatpush1.msra.mxu0 %v1275
        %1312 = vmatprep.subr.mxu0 0.0
        %1313 = vmatpush2.msra.mxu0 0.0
        %1314 = vmatprep.subr.mxu0 0.0
        %1315 = vmatpush2.msra.mxu0 0.0
        %1316 = vmatprep.subr.mxu0 0.0
        %1317 = vmatpush2.msra.mxu0 0.0
        %1318 = vmatprep.subr.mxu0 0.0
        %1319 = vmatpush2.msra.mxu0 0.0
        %1320 = vmatprep.subr.mxu0 0.0
        %1321 = vmatpush2.msra.mxu0 0.0
        %1322 = vmatprep.subr.mxu0 0.0
        %1323 = vmatpush2.msra.mxu0 0.0
        %1324 = vmatprep.subr.mxu0 0.0
        %1325 = vmatpush2.msra.mxu0 0.0
        %1326 = vmatprep.subr.mxu0 0.0
        %1327 = vmatpush2.msra.mxu0 0.0
        %1328 = vmatprep.subr.mxu0 0.0
        %1329 = vmatpush2.msra.mxu0 0.0
        %1330 = vmatprep.subr.mxu0 0.0
        %1331 = vmatpush2.msra.mxu0 0.0
        %1332 = vmatprep.subr.mxu0 0.0
        %1333 = vmatpush2.msra.mxu0 0.0
        %1334 = vmatprep.subr.mxu0 0.0
        %1335 = vmatpush2.msra.mxu0 0.0
        %1336 = vmatprep.subr.mxu0 0.0
        %1337 = vmatpush2.msra.mxu0 0.0
        %1338 = vmatprep.subr.mxu0 0.0
        %1339 = vmatpush2.msra.mxu0 0.0
        %1340 = vmatprep.subr.mxu0 0.0
        %1341 = vmatpush2.msra.mxu0 0.0
        %1342 = vmatprep.subr.mxu0 0.0
        %1343 = vmatpush2.msra.mxu0 0.0
        %1344 = vmatprep.mubr.f32.mxu0 0.0
        %1345 = vmatmul.mubr.f32.gmra.mxu0 %v1278
        %v1346 = vpop.f32.mrf.mxu0
        %v1347 = vadd.f32 0.0, %v1346
        %v1348 = vpop.f32.mrf.mxu0
        %1349 = vdwg.mxu0
        %1350 = vrot.lane.b32.xlu0 %v474, 96
        %v1351 = vpop.permute.xlu0 %1350
        %v1354 = vsel %vm1109, %v1187, 0
        %1356 = vmatprep.subr.mxu0 0.0
        %1357 = vmatpush1.msra.mxu0 0.0
        %1358 = vmatprep.subr.mxu0 0.0
        %1359 = vmatpush1.msra.mxu0 0.0
        %1360 = vmatprep.subr.mxu0 0.0
        %1361 = vmatpush1.msra.mxu0 0.0
        %1362 = vmatprep.subr.mxu0 0.0
        %1363 = vmatpush1.msra.mxu0 0.0
        %1364 = vmatprep.subr.mxu0 0.0
        %1365 = vmatpush1.msra.mxu0 0.0
        %1366 = vmatprep.subr.mxu0 0.0
        %1367 = vmatpush1.msra.mxu0 0.0
        %1368 = vmatprep.subr.mxu0 0.0
        %1369 = vmatpush1.msra.mxu0 0.0
        %1370 = vmatprep.subr.mxu0 0.0
        %1371 = vmatpush1.msra.mxu0 0.0
        %1372 = vmatprep.subr.mxu0 0.0
        %1373 = vmatpush1.msra.mxu0 0.0
        %1374 = vmatprep.subr.mxu0 0.0
        %1375 = vmatpush1.msra.mxu0 0.0
        %1376 = vmatprep.subr.mxu0 0.0
        %1377 = vmatpush1.msra.mxu0 0.0
        %1378 = vmatprep.subr.mxu0 0.0
        %1379 = vmatpush1.msra.mxu0 0.0
        %1380 = vmatprep.subr.mxu0 0.0
        %1381 = vmatpush1.msra.mxu0 0.0
        %1382 = vmatprep.subr.mxu0 0.0
        %1383 = vmatpush1.msra.mxu0 0.0
        %1384 = vmatprep.subr.mxu0 0.0
        %1385 = vmatpush1.msra.mxu0 0.0
        %1386 = vmatprep.subr.mxu0 0.0
        %1387 = vmatpush1.msra.mxu0 %v1351
        %1388 = vmatprep.subr.mxu0 0.0
        %1389 = vmatpush2.msra.mxu0 0.0
        %1390 = vmatprep.subr.mxu0 0.0
        %1391 = vmatpush2.msra.mxu0 0.0
        %1392 = vmatprep.subr.mxu0 0.0
        %1393 = vmatpush2.msra.mxu0 0.0
        %1394 = vmatprep.subr.mxu0 0.0
        %1395 = vmatpush2.msra.mxu0 0.0
        %1396 = vmatprep.subr.mxu0 0.0
        %1397 = vmatpush2.msra.mxu0 0.0
        %1398 = vmatprep.subr.mxu0 0.0
        %1399 = vmatpush2.msra.mxu0 0.0
        %1400 = vmatprep.subr.mxu0 0.0
        %1401 = vmatpush2.msra.mxu0 0.0
        %1402 = vmatprep.subr.mxu0 0.0
        %1403 = vmatpush2.msra.mxu0 0.0
        %1404 = vmatprep.subr.mxu0 0.0
        %1405 = vmatpush2.msra.mxu0 0.0
        %1406 = vmatprep.subr.mxu0 0.0
        %1407 = vmatpush2.msra.mxu0 0.0
        %1408 = vmatprep.subr.mxu0 0.0
        %1409 = vmatpush2.msra.mxu0 0.0
        %1410 = vmatprep.subr.mxu0 0.0
        %1411 = vmatpush2.msra.mxu0 0.0
        %1412 = vmatprep.subr.mxu0 0.0
        %1413 = vmatpush2.msra.mxu0 0.0
        %1414 = vmatprep.subr.mxu0 0.0
        %1415 = vmatpush2.msra.mxu0 0.0
        %1416 = vmatprep.subr.mxu0 0.0
        %1417 = vmatpush2.msra.mxu0 0.0
        %1418 = vmatprep.subr.mxu0 0.0
        %1419 = vmatpush2.msra.mxu0 0.0
        %1420 = vmatprep.mubr.f32.mxu0 0.0
        %1421 = vmatmul.mubr.f32.gmra.mxu0 %v1354
        %v1422 = vpop.f32.mrf.mxu0
        %v1423 = vadd.f32 0.0, %v1422
        %v1424 = vpop.f32.mrf.mxu0
        %1425 = vdwg.mxu0
        %1426 = vrot.lane.b32.xlu0 %v479, 96
        %v1427 = vpop.permute.xlu0 %1426
        %v1430 = vsel %vm1109, %v1189, 0
        %1432 = vmatprep.subr.mxu0 0.0
        %1433 = vmatpush1.msra.mxu0 0.0
        %1434 = vmatprep.subr.mxu0 0.0
        %1435 = vmatpush1.msra.mxu0 0.0
        %1436 = vmatprep.subr.mxu0 0.0
        %1437 = vmatpush1.msra.mxu0 0.0
        %1438 = vmatprep.subr.mxu0 0.0
        %1439 = vmatpush1.msra.mxu0 0.0
        %1440 = vmatprep.subr.mxu0 0.0
        %1441 = vmatpush1.msra.mxu0 0.0
        %1442 = vmatprep.subr.mxu0 0.0
        %1443 = vmatpush1.msra.mxu0 0.0
        %1444 = vmatprep.subr.mxu0 0.0
        %1445 = vmatpush1.msra.mxu0 0.0
        %1446 = vmatprep.subr.mxu0 0.0
        %1447 = vmatpush1.msra.mxu0 0.0
        %1448 = vmatprep.subr.mxu0 0.0
        %1449 = vmatpush1.msra.mxu0 0.0
        %1450 = vmatprep.subr.mxu0 0.0
        %1451 = vmatpush1.msra.mxu0 0.0
        %1452 = vmatprep.subr.mxu0 0.0
        %1453 = vmatpush1.msra.mxu0 0.0
        %1454 = vmatprep.subr.mxu0 0.0
        %1455 = vmatpush1.msra.mxu0 0.0
        %1456 = vmatprep.subr.mxu0 0.0
        %1457 = vmatpush1.msra.mxu0 0.0
        %1458 = vmatprep.subr.mxu0 0.0
        %1459 = vmatpush1.msra.mxu0 0.0
        %1460 = vmatprep.subr.mxu0 0.0
        %1461 = vmatpush1.msra.mxu0 0.0
        %1462 = vmatprep.subr.mxu0 0.0
        %1463 = vmatpush1.msra.mxu0 %v1427
        %1464 = vmatprep.subr.mxu0 0.0
        %1465 = vmatpush2.msra.mxu0 0.0
        %1466 = vmatprep.subr.mxu0 0.0
        %1467 = vmatpush2.msra.mxu0 0.0
        %1468 = vmatprep.subr.mxu0 0.0
        %1469 = vmatpush2.msra.mxu0 0.0
        %1470 = vmatprep.subr.mxu0 0.0
        %1471 = vmatpush2.msra.mxu0 0.0
        %1472 = vmatprep.subr.mxu0 0.0
        %1473 = vmatpush2.msra.mxu0 0.0
        %1474 = vmatprep.subr.mxu0 0.0
        %1475 = vmatpush2.msra.mxu0 0.0
        %1476 = vmatprep.subr.mxu0 0.0
        %1477 = vmatpush2.msra.mxu0 0.0
        %1478 = vmatprep.subr.mxu0 0.0
        %1479 = vmatpush2.msra.mxu0 0.0
        %1480 = vmatprep.subr.mxu0 0.0
        %1481 = vmatpush2.msra.mxu0 0.0
        %1482 = vmatprep.subr.mxu0 0.0
        %1483 = vmatpush2.msra.mxu0 0.0
        %1484 = vmatprep.subr.mxu0 0.0
        %1485 = vmatpush2.msra.mxu0 0.0
        %1486 = vmatprep.subr.mxu0 0.0
        %1487 = vmatpush2.msra.mxu0 0.0
        %1488 = vmatprep.subr.mxu0 0.0
        %1489 = vmatpush2.msra.mxu0 0.0
        %1490 = vmatprep.subr.mxu0 0.0
        %1491 = vmatpush2.msra.mxu0 0.0
        %1492 = vmatprep.subr.mxu0 0.0
        %1493 = vmatpush2.msra.mxu0 0.0
        %1494 = vmatprep.subr.mxu0 0.0
        %1495 = vmatpush2.msra.mxu0 0.0
        %1496 = vmatprep.mubr.f32.mxu0 0.0
        %1497 = vmatmul.mubr.f32.gmra.mxu0 %v1430
        %v1498 = vpop.f32.mrf.mxu0
        %v1499 = vadd.f32 0.0, %v1498
        %v1500 = vpop.f32.mrf.mxu0
        %1501 = vdwg.mxu0
        %1502 = vrot.lane.b32.xlu0 %v484, 96
        %v1503 = vpop.permute.xlu0 %1502
        %v1506 = vsel %vm1109, %v1191, 0
        %1508 = vmatprep.subr.mxu0 0.0
        %1509 = vmatpush1.msra.mxu0 0.0
        %1510 = vmatprep.subr.mxu0 0.0
        %1511 = vmatpush1.msra.mxu0 0.0
        %1512 = vmatprep.subr.mxu0 0.0
        %1513 = vmatpush1.msra.mxu0 0.0
        %1514 = vmatprep.subr.mxu0 0.0
        %1515 = vmatpush1.msra.mxu0 0.0
        %1516 = vmatprep.subr.mxu0 0.0
        %1517 = vmatpush1.msra.mxu0 0.0
        %1518 = vmatprep.subr.mxu0 0.0
        %1519 = vmatpush1.msra.mxu0 0.0
        %1520 = vmatprep.subr.mxu0 0.0
        %1521 = vmatpush1.msra.mxu0 0.0
        %1522 = vmatprep.subr.mxu0 0.0
        %1523 = vmatpush1.msra.mxu0 0.0
        %1524 = vmatprep.subr.mxu0 0.0
        %1525 = vmatpush1.msra.mxu0 0.0
        %1526 = vmatprep.subr.mxu0 0.0
        %1527 = vmatpush1.msra.mxu0 0.0
        %1528 = vmatprep.subr.mxu0 0.0
        %1529 = vmatpush1.msra.mxu0 0.0
        %1530 = vmatprep.subr.mxu0 0.0
        %1531 = vmatpush1.msra.mxu0 0.0
        %1532 = vmatprep.subr.mxu0 0.0
        %1533 = vmatpush1.msra.mxu0 0.0
        %1534 = vmatprep.subr.mxu0 0.0
        %1535 = vmatpush1.msra.mxu0 0.0
        %1536 = vmatprep.subr.mxu0 0.0
        %1537 = vmatpush1.msra.mxu0 0.0
        %1538 = vmatprep.subr.mxu0 0.0
        %1539 = vmatpush1.msra.mxu0 %v1503
        %1540 = vmatprep.subr.mxu0 0.0
        %1541 = vmatpush2.msra.mxu0 0.0
        %1542 = vmatprep.subr.mxu0 0.0
        %1543 = vmatpush2.msra.mxu0 0.0
        %1544 = vmatprep.subr.mxu0 0.0
        %1545 = vmatpush2.msra.mxu0 0.0
        %1546 = vmatprep.subr.mxu0 0.0
        %1547 = vmatpush2.msra.mxu0 0.0
        %1548 = vmatprep.subr.mxu0 0.0
        %1549 = vmatpush2.msra.mxu0 0.0
        %1550 = vmatprep.subr.mxu0 0.0
        %1551 = vmatpush2.msra.mxu0 0.0
        %1552 = vmatprep.subr.mxu0 0.0
        %1553 = vmatpush2.msra.mxu0 0.0
        %1554 = vmatprep.subr.mxu0 0.0
        %1555 = vmatpush2.msra.mxu0 0.0
        %1556 = vmatprep.subr.mxu0 0.0
        %1557 = vmatpush2.msra.mxu0 0.0
        %1558 = vmatprep.subr.mxu0 0.0
        %1559 = vmatpush2.msra.mxu0 0.0
        %1560 = vmatprep.subr.mxu0 0.0
        %1561 = vmatpush2.msra.mxu0 0.0
        %1562 = vmatprep.subr.mxu0 0.0
        %1563 = vmatpush2.msra.mxu0 0.0
        %1564 = vmatprep.subr.mxu0 0.0
        %1565 = vmatpush2.msra.mxu0 0.0
        %1566 = vmatprep.subr.mxu0 0.0
        %1567 = vmatpush2.msra.mxu0 0.0
        %1568 = vmatprep.subr.mxu0 0.0
        %1569 = vmatpush2.msra.mxu0 0.0
        %1570 = vmatprep.subr.mxu0 0.0
        %1571 = vmatpush2.msra.mxu0 0.0
        %1572 = vmatprep.mubr.f32.mxu0 0.0
        %1573 = vmatmul.mubr.f32.gmra.mxu0 %v1506
        %v1574 = vpop.f32.mrf.mxu0
        %v1575 = vadd.f32 0.0, %v1574
        %v1576 = vpop.f32.mrf.mxu0
        %1577 = vdwg.mxu0
        %1578 = vrot.lane.b32.xlu0 %v489, 96
        %v1579 = vpop.permute.xlu0 %1578
        %v1582 = vsel %vm1109, %v1193, 0
        %1584 = vmatprep.subr.mxu0 0.0
        %1585 = vmatpush1.msra.mxu0 0.0
        %1586 = vmatprep.subr.mxu0 0.0
        %1587 = vmatpush1.msra.mxu0 0.0
        %1588 = vmatprep.subr.mxu0 0.0
        %1589 = vmatpush1.msra.mxu0 0.0
        %1590 = vmatprep.subr.mxu0 0.0
        %1591 = vmatpush1.msra.mxu0 0.0
        %1592 = vmatprep.subr.mxu0 0.0
        %1593 = vmatpush1.msra.mxu0 0.0
        %1594 = vmatprep.subr.mxu0 0.0
        %1595 = vmatpush1.msra.mxu0 0.0
        %1596 = vmatprep.subr.mxu0 0.0
        %1597 = vmatpush1.msra.mxu0 0.0
        %1598 = vmatprep.subr.mxu0 0.0
        %1599 = vmatpush1.msra.mxu0 0.0
        %1600 = vmatprep.subr.mxu0 0.0
        %1601 = vmatpush1.msra.mxu0 0.0
        %1602 = vmatprep.subr.mxu0 0.0
        %1603 = vmatpush1.msra.mxu0 0.0
        %1604 = vmatprep.subr.mxu0 0.0
        %1605 = vmatpush1.msra.mxu0 0.0
        %1606 = vmatprep.subr.mxu0 0.0
        %1607 = vmatpush1.msra.mxu0 0.0
        %1608 = vmatprep.subr.mxu0 0.0
        %1609 = vmatpush1.msra.mxu0 0.0
        %1610 = vmatprep.subr.mxu0 0.0
        %1611 = vmatpush1.msra.mxu0 0.0
        %1612 = vmatprep.subr.mxu0 0.0
        %1613 = vmatpush1.msra.mxu0 0.0
        %1614 = vmatprep.subr.mxu0 0.0
        %1615 = vmatpush1.msra.mxu0 %v1579
        %1616 = vmatprep.subr.mxu0 0.0
        %1617 = vmatpush2.msra.mxu0 0.0
        %1618 = vmatprep.subr.mxu0 0.0
        %1619 = vmatpush2.msra.mxu0 0.0
        %1620 = vmatprep.subr.mxu0 0.0
        %1621 = vmatpush2.msra.mxu0 0.0
        %1622 = vmatprep.subr.mxu0 0.0
        %1623 = vmatpush2.msra.mxu0 0.0
        %1624 = vmatprep.subr.mxu0 0.0
        %1625 = vmatpush2.msra.mxu0 0.0
        %1626 = vmatprep.subr.mxu0 0.0
        %1627 = vmatpush2.msra.mxu0 0.0
        %1628 = vmatprep.subr.mxu0 0.0
        %1629 = vmatpush2.msra.mxu0 0.0
        %1630 = vmatprep.subr.mxu0 0.0
        %1631 = vmatpush2.msra.mxu0 0.0
        %1632 = vmatprep.subr.mxu0 0.0
        %1633 = vmatpush2.msra.mxu0 0.0
        %1634 = vmatprep.subr.mxu0 0.0
        %1635 = vmatpush2.msra.mxu0 0.0
        %1636 = vmatprep.subr.mxu0 0.0
        %1637 = vmatpush2.msra.mxu0 0.0
        %1638 = vmatprep.subr.mxu0 0.0
        %1639 = vmatpush2.msra.mxu0 0.0
        %1640 = vmatprep.subr.mxu0 0.0
        %1641 = vmatpush2.msra.mxu0 0.0
        %1642 = vmatprep.subr.mxu0 0.0
        %1643 = vmatpush2.msra.mxu0 0.0
        %1644 = vmatprep.subr.mxu0 0.0
        %1645 = vmatpush2.msra.mxu0 0.0
        %1646 = vmatprep.subr.mxu0 0.0
        %1647 = vmatpush2.msra.mxu0 0.0
        %1648 = vmatprep.mubr.f32.mxu0 0.0
        %1649 = vmatmul.mubr.f32.gmra.mxu0 %v1582
        %v1650 = vpop.f32.mrf.mxu0
        %v1651 = vadd.f32 0.0, %v1650
        %v1652 = vpop.f32.mrf.mxu0
        %1653 = vdwg.mxu0
        %1654 = vrot.lane.b32.xlu0 %v494, 96
        %v1655 = vpop.permute.xlu0 %1654
        %v1658 = vsel %vm1109, %v1195, 0
        %1660 = vmatprep.subr.mxu0 0.0
        %1661 = vmatpush1.msra.mxu0 0.0
        %1662 = vmatprep.subr.mxu0 0.0
        %1663 = vmatpush1.msra.mxu0 0.0
        %1664 = vmatprep.subr.mxu0 0.0
        %1665 = vmatpush1.msra.mxu0 0.0
        %1666 = vmatprep.subr.mxu0 0.0
        %1667 = vmatpush1.msra.mxu0 0.0
        %1668 = vmatprep.subr.mxu0 0.0
        %1669 = vmatpush1.msra.mxu0 0.0
        %1670 = vmatprep.subr.mxu0 0.0
        %1671 = vmatpush1.msra.mxu0 0.0
        %1672 = vmatprep.subr.mxu0 0.0
        %1673 = vmatpush1.msra.mxu0 0.0
        %1674 = vmatprep.subr.mxu0 0.0
        %1675 = vmatpush1.msra.mxu0 0.0
        %1676 = vmatprep.subr.mxu0 0.0
        %1677 = vmatpush1.msra.mxu0 0.0
        %1678 = vmatprep.subr.mxu0 0.0
        %1679 = vmatpush1.msra.mxu0 0.0
        %1680 = vmatprep.subr.mxu0 0.0
        %1681 = vmatpush1.msra.mxu0 0.0
        %1682 = vmatprep.subr.mxu0 0.0
        %1683 = vmatpush1.msra.mxu0 0.0
        %1684 = vmatprep.subr.mxu0 0.0
        %1685 = vmatpush1.msra.mxu0 0.0
        %1686 = vmatprep.subr.mxu0 0.0
        %1687 = vmatpush1.msra.mxu0 0.0
        %1688 = vmatprep.subr.mxu0 0.0
        %1689 = vmatpush1.msra.mxu0 0.0
        %1690 = vmatprep.subr.mxu0 0.0
        %1691 = vmatpush1.msra.mxu0 %v1655
        %1692 = vmatprep.subr.mxu0 0.0
        %1693 = vmatpush2.msra.mxu0 0.0
        %1694 = vmatprep.subr.mxu0 0.0
        %1695 = vmatpush2.msra.mxu0 0.0
        %1696 = vmatprep.subr.mxu0 0.0
        %1697 = vmatpush2.msra.mxu0 0.0
        %1698 = vmatprep.subr.mxu0 0.0
        %1699 = vmatpush2.msra.mxu0 0.0
        %1700 = vmatprep.subr.mxu0 0.0
        %1701 = vmatpush2.msra.mxu0 0.0
        %1702 = vmatprep.subr.mxu0 0.0
        %1703 = vmatpush2.msra.mxu0 0.0
        %1704 = vmatprep.subr.mxu0 0.0
        %1705 = vmatpush2.msra.mxu0 0.0
        %1706 = vmatprep.subr.mxu0 0.0
        %1707 = vmatpush2.msra.mxu0 0.0
        %1708 = vmatprep.subr.mxu0 0.0
        %1709 = vmatpush2.msra.mxu0 0.0
        %1710 = vmatprep.subr.mxu0 0.0
        %1711 = vmatpush2.msra.mxu0 0.0
        %1712 = vmatprep.subr.mxu0 0.0
        %1713 = vmatpush2.msra.mxu0 0.0
        %1714 = vmatprep.subr.mxu0 0.0
        %1715 = vmatpush2.msra.mxu0 0.0
        %1716 = vmatprep.subr.mxu0 0.0
        %1717 = vmatpush2.msra.mxu0 0.0
        %1718 = vmatprep.subr.mxu0 0.0
        %1719 = vmatpush2.msra.mxu0 0.0
        %1720 = vmatprep.subr.mxu0 0.0
        %1721 = vmatpush2.msra.mxu0 0.0
        %1722 = vmatprep.subr.mxu0 0.0
        %1723 = vmatpush2.msra.mxu0 0.0
        %1724 = vmatprep.mubr.f32.mxu0 0.0
        %1725 = vmatmul.mubr.f32.gmra.mxu0 %v1658
        %v1726 = vpop.f32.mrf.mxu0
        %v1727 = vadd.f32 0.0, %v1726
        %v1728 = vpop.f32.mrf.mxu0
        %1729 = vdwg.mxu0
        %1730 = vrot.lane.b32.xlu0 %v499, 96
        %v1731 = vpop.permute.xlu0 %1730
        %v1734 = vsel %vm1109, %v1197, 0
        %1736 = vmatprep.subr.mxu0 0.0
        %1737 = vmatpush1.msra.mxu0 0.0
        %1738 = vmatprep.subr.mxu0 0.0
        %1739 = vmatpush1.msra.mxu0 0.0
        %1740 = vmatprep.subr.mxu0 0.0
        %1741 = vmatpush1.msra.mxu0 0.0
        %1742 = vmatprep.subr.mxu0 0.0
        %1743 = vmatpush1.msra.mxu0 0.0
        %1744 = vmatprep.subr.mxu0 0.0
        %1745 = vmatpush1.msra.mxu0 0.0
        %1746 = vmatprep.subr.mxu0 0.0
        %1747 = vmatpush1.msra.mxu0 0.0
        %1748 = vmatprep.subr.mxu0 0.0
        %1749 = vmatpush1.msra.mxu0 0.0
        %1750 = vmatprep.subr.mxu0 0.0
        %1751 = vmatpush1.msra.mxu0 0.0
        %1752 = vmatprep.subr.mxu0 0.0
        %1753 = vmatpush1.msra.mxu0 0.0
        %1754 = vmatprep.subr.mxu0 0.0
        %1755 = vmatpush1.msra.mxu0 0.0
        %1756 = vmatprep.subr.mxu0 0.0
        %1757 = vmatpush1.msra.mxu0 0.0
        %1758 = vmatprep.subr.mxu0 0.0
        %1759 = vmatpush1.msra.mxu0 0.0
        %1760 = vmatprep.subr.mxu0 0.0
        %1761 = vmatpush1.msra.mxu0 0.0
        %1762 = vmatprep.subr.mxu0 0.0
        %1763 = vmatpush1.msra.mxu0 0.0
        %1764 = vmatprep.subr.mxu0 0.0
        %1765 = vmatpush1.msra.mxu0 0.0
        %1766 = vmatprep.subr.mxu0 0.0
        %1767 = vmatpush1.msra.mxu0 %v1731
        %1768 = vmatprep.subr.mxu0 0.0
        %1769 = vmatpush2.msra.mxu0 0.0
        %1770 = vmatprep.subr.mxu0 0.0
        %1771 = vmatpush2.msra.mxu0 0.0
        %1772 = vmatprep.subr.mxu0 0.0
        %1773 = vmatpush2.msra.mxu0 0.0
        %1774 = vmatprep.subr.mxu0 0.0
        %1775 = vmatpush2.msra.mxu0 0.0
        %1776 = vmatprep.subr.mxu0 0.0
        %1777 = vmatpush2.msra.mxu0 0.0
        %1778 = vmatprep.subr.mxu0 0.0
        %1779 = vmatpush2.msra.mxu0 0.0
        %1780 = vmatprep.subr.mxu0 0.0
        %1781 = vmatpush2.msra.mxu0 0.0
        %1782 = vmatprep.subr.mxu0 0.0
        %1783 = vmatpush2.msra.mxu0 0.0
        %1784 = vmatprep.subr.mxu0 0.0
        %1785 = vmatpush2.msra.mxu0 0.0
        %1786 = vmatprep.subr.mxu0 0.0
        %1787 = vmatpush2.msra.mxu0 0.0
        %1788 = vmatprep.subr.mxu0 0.0
        %1789 = vmatpush2.msra.mxu0 0.0
        %1790 = vmatprep.subr.mxu0 0.0
        %1791 = vmatpush2.msra.mxu0 0.0
        %1792 = vmatprep.subr.mxu0 0.0
        %1793 = vmatpush2.msra.mxu0 0.0
        %1794 = vmatprep.subr.mxu0 0.0
        %1795 = vmatpush2.msra.mxu0 0.0
        %1796 = vmatprep.subr.mxu0 0.0
        %1797 = vmatpush2.msra.mxu0 0.0
        %1798 = vmatprep.subr.mxu0 0.0
        %1799 = vmatpush2.msra.mxu0 0.0
        %1800 = vmatprep.mubr.f32.mxu0 0.0
        %1801 = vmatmul.mubr.f32.gmra.mxu0 %v1734
        %v1802 = vpop.f32.mrf.mxu0
        %v1803 = vadd.f32 0.0, %v1802
        %v1804 = vpop.f32.mrf.mxu0
        %1805 = vdwg.mxu0
        %v1806 = vld [vmem:[%s3] sm:$0xff]
        %v1807 = vld [vmem:[%s3 + $0x8] sm:$0xff]
        %1808 = vrot.lane.b32.xlu0 %v464, 112
        %v1809 = vpop.permute.xlu0 %1808
        %v1810 = vsel %vm508, %v1809, 0
        %1812 = vmatprep.subr.mxu0 0.0
        %1813 = vmatpush1.xpose.msra.mxu0 0.0
        %1814 = vmatprep.subr.mxu0 0.0
        %1815 = vmatpush1.xpose.msra.mxu0 0.0
        %1816 = vmatprep.subr.mxu0 0.0
        %1817 = vmatpush1.xpose.msra.mxu0 0.0
        %1818 = vmatprep.subr.mxu0 0.0
        %1819 = vmatpush1.xpose.msra.mxu0 0.0
        %1820 = vmatprep.subr.mxu0 0.0
        %1821 = vmatpush1.xpose.msra.mxu0 0.0
        %1822 = vmatprep.subr.mxu0 0.0
        %1823 = vmatpush1.xpose.msra.mxu0 0.0
        %1824 = vmatprep.subr.mxu0 0.0
        %1825 = vmatpush1.xpose.msra.mxu0 0.0
        %1826 = vmatprep.subr.mxu0 0.0
        %1827 = vmatpush1.xpose.msra.mxu0 0.0
        %1828 = vmatprep.subr.mxu0 0.0
        %1829 = vmatpush1.xpose.msra.mxu0 0.0
        %1830 = vmatprep.subr.mxu0 0.0
        %1831 = vmatpush1.xpose.msra.mxu0 0.0
        %1832 = vmatprep.subr.mxu0 0.0
        %1833 = vmatpush1.xpose.msra.mxu0 0.0
        %1834 = vmatprep.subr.mxu0 0.0
        %1835 = vmatpush1.xpose.msra.mxu0 0.0
        %1836 = vmatprep.subr.mxu0 0.0
        %1837 = vmatpush1.xpose.msra.mxu0 0.0
        %1838 = vmatprep.subr.mxu0 0.0
        %1839 = vmatpush1.xpose.msra.mxu0 0.0
        %1840 = vmatprep.subr.mxu0 0.0
        %1841 = vmatpush1.xpose.msra.mxu0 0.0
        %1842 = vmatprep.subr.mxu0 0.0
        %1843 = vmatpush1.xpose.msra.mxu0 %v1810
        %1844 = vmatprep.subr.mxu0 0.0
        %1845 = vmatpush2.xpose.msra.mxu0 0.0
        %1846 = vmatprep.subr.mxu0 0.0
        %1847 = vmatpush2.xpose.msra.mxu0 0.0
        %1848 = vmatprep.subr.mxu0 0.0
        %1849 = vmatpush2.xpose.msra.mxu0 0.0
        %1850 = vmatprep.subr.mxu0 0.0
        %1851 = vmatpush2.xpose.msra.mxu0 0.0
        %1852 = vmatprep.subr.mxu0 0.0
        %1853 = vmatpush2.xpose.msra.mxu0 0.0
        %1854 = vmatprep.subr.mxu0 0.0
        %1855 = vmatpush2.xpose.msra.mxu0 0.0
        %1856 = vmatprep.subr.mxu0 0.0
        %1857 = vmatpush2.xpose.msra.mxu0 0.0
        %1858 = vmatprep.subr.mxu0 0.0
        %1859 = vmatpush2.xpose.msra.mxu0 0.0
        %1860 = vmatprep.subr.mxu0 0.0
        %1861 = vmatpush2.xpose.msra.mxu0 0.0
        %1862 = vmatprep.subr.mxu0 0.0
        %1863 = vmatpush2.xpose.msra.mxu0 0.0
        %1864 = vmatprep.subr.mxu0 0.0
        %1865 = vmatpush2.xpose.msra.mxu0 0.0
        %1866 = vmatprep.subr.mxu0 0.0
        %1867 = vmatpush2.xpose.msra.mxu0 0.0
        %1868 = vmatprep.subr.mxu0 0.0
        %1869 = vmatpush2.xpose.msra.mxu0 0.0
        %1870 = vmatprep.subr.mxu0 0.0
        %1871 = vmatpush2.xpose.msra.mxu0 0.0
        %1872 = vmatprep.subr.mxu0 0.0
        %1873 = vmatpush2.xpose.msra.mxu0 0.0
        %1874 = vmatprep.subr.mxu0 0.0
        %1875 = vmatpush2.xpose.msra.mxu0 0.0
        %1876 = vmatprep.mubr.f32.mxu0 0.0
        %1877 = vmatmul.mubr.f32.gmra.mxu0 %v1810
        %v1878 = vpop.f32.mrf.mxu0
        %v1879 = vadd.f32 0.0, %v1878
        %v1880 = vpop.f32.mrf.mxu0
        %1881 = vdwg.mxu0
        %1882 = vrot.lane.b32.xlu0 %v469, 112
        %v1883 = vpop.permute.xlu0 %1882
        %v1884 = vsel %vm508, %v1883, 0
        %1886 = vmatprep.subr.mxu0 0.0
        %1887 = vmatpush1.xpose.msra.mxu0 0.0
        %1888 = vmatprep.subr.mxu0 0.0
        %1889 = vmatpush1.xpose.msra.mxu0 0.0
        %1890 = vmatprep.subr.mxu0 0.0
        %1891 = vmatpush1.xpose.msra.mxu0 0.0
        %1892 = vmatprep.subr.mxu0 0.0
        %1893 = vmatpush1.xpose.msra.mxu0 0.0
        %1894 = vmatprep.subr.mxu0 0.0
        %1895 = vmatpush1.xpose.msra.mxu0 0.0
        %1896 = vmatprep.subr.mxu0 0.0
        %1897 = vmatpush1.xpose.msra.mxu0 0.0
        %1898 = vmatprep.subr.mxu0 0.0
        %1899 = vmatpush1.xpose.msra.mxu0 0.0
        %1900 = vmatprep.subr.mxu0 0.0
        %1901 = vmatpush1.xpose.msra.mxu0 0.0
        %1902 = vmatprep.subr.mxu0 0.0
        %1903 = vmatpush1.xpose.msra.mxu0 0.0
        %1904 = vmatprep.subr.mxu0 0.0
        %1905 = vmatpush1.xpose.msra.mxu0 0.0
        %1906 = vmatprep.subr.mxu0 0.0
        %1907 = vmatpush1.xpose.msra.mxu0 0.0
        %1908 = vmatprep.subr.mxu0 0.0
        %1909 = vmatpush1.xpose.msra.mxu0 0.0
        %1910 = vmatprep.subr.mxu0 0.0
        %1911 = vmatpush1.xpose.msra.mxu0 0.0
        %1912 = vmatprep.subr.mxu0 0.0
        %1913 = vmatpush1.xpose.msra.mxu0 0.0
        %1914 = vmatprep.subr.mxu0 0.0
        %1915 = vmatpush1.xpose.msra.mxu0 0.0
        %1916 = vmatprep.subr.mxu0 0.0
        %1917 = vmatpush1.xpose.msra.mxu0 %v1884
        %1918 = vmatprep.subr.mxu0 0.0
        %1919 = vmatpush2.xpose.msra.mxu0 0.0
        %1920 = vmatprep.subr.mxu0 0.0
        %1921 = vmatpush2.xpose.msra.mxu0 0.0
        %1922 = vmatprep.subr.mxu0 0.0
        %1923 = vmatpush2.xpose.msra.mxu0 0.0
        %1924 = vmatprep.subr.mxu0 0.0
        %1925 = vmatpush2.xpose.msra.mxu0 0.0
        %1926 = vmatprep.subr.mxu0 0.0
        %1927 = vmatpush2.xpose.msra.mxu0 0.0
        %1928 = vmatprep.subr.mxu0 0.0
        %1929 = vmatpush2.xpose.msra.mxu0 0.0
        %1930 = vmatprep.subr.mxu0 0.0
        %1931 = vmatpush2.xpose.msra.mxu0 0.0
        %1932 = vmatprep.subr.mxu0 0.0
        %1933 = vmatpush2.xpose.msra.mxu0 0.0
        %1934 = vmatprep.subr.mxu0 0.0
        %1935 = vmatpush2.xpose.msra.mxu0 0.0
        %1936 = vmatprep.subr.mxu0 0.0
        %1937 = vmatpush2.xpose.msra.mxu0 0.0
        %1938 = vmatprep.subr.mxu0 0.0
        %1939 = vmatpush2.xpose.msra.mxu0 0.0
        %1940 = vmatprep.subr.mxu0 0.0
        %1941 = vmatpush2.xpose.msra.mxu0 0.0
        %1942 = vmatprep.subr.mxu0 0.0
        %1943 = vmatpush2.xpose.msra.mxu0 0.0
        %1944 = vmatprep.subr.mxu0 0.0
        %1945 = vmatpush2.xpose.msra.mxu0 0.0
        %1946 = vmatprep.subr.mxu0 0.0
        %1947 = vmatpush2.xpose.msra.mxu0 0.0
        %1948 = vmatprep.subr.mxu0 0.0
        %1949 = vmatpush2.xpose.msra.mxu0 0.0
        %1950 = vmatprep.mubr.f32.mxu0 0.0
        %1951 = vmatmul.mubr.f32.gmra.mxu0 %v1884
        %v1952 = vpop.f32.mrf.mxu0
        %v1953 = vadd.f32 0.0, %v1952
        %v1954 = vpop.f32.mrf.mxu0
        %1955 = vdwg.mxu0
        %1956 = vrot.lane.b32.xlu0 %v474, 112
        %v1957 = vpop.permute.xlu0 %1956
        %v1958 = vsel %vm508, %v1957, 0
        %1960 = vmatprep.subr.mxu0 0.0
        %1961 = vmatpush1.xpose.msra.mxu0 0.0
        %1962 = vmatprep.subr.mxu0 0.0
        %1963 = vmatpush1.xpose.msra.mxu0 0.0
        %1964 = vmatprep.subr.mxu0 0.0
        %1965 = vmatpush1.xpose.msra.mxu0 0.0
        %1966 = vmatprep.subr.mxu0 0.0
        %1967 = vmatpush1.xpose.msra.mxu0 0.0
        %1968 = vmatprep.subr.mxu0 0.0
        %1969 = vmatpush1.xpose.msra.mxu0 0.0
        %1970 = vmatprep.subr.mxu0 0.0
        %1971 = vmatpush1.xpose.msra.mxu0 0.0
        %1972 = vmatprep.subr.mxu0 0.0
        %1973 = vmatpush1.xpose.msra.mxu0 0.0
        %1974 = vmatprep.subr.mxu0 0.0
        %1975 = vmatpush1.xpose.msra.mxu0 0.0
        %1976 = vmatprep.subr.mxu0 0.0
        %1977 = vmatpush1.xpose.msra.mxu0 0.0
        %1978 = vmatprep.subr.mxu0 0.0
        %1979 = vmatpush1.xpose.msra.mxu0 0.0
        %1980 = vmatprep.subr.mxu0 0.0
        %1981 = vmatpush1.xpose.msra.mxu0 0.0
        %1982 = vmatprep.subr.mxu0 0.0
        %1983 = vmatpush1.xpose.msra.mxu0 0.0
        %1984 = vmatprep.subr.mxu0 0.0
        %1985 = vmatpush1.xpose.msra.mxu0 0.0
        %1986 = vmatprep.subr.mxu0 0.0
        %1987 = vmatpush1.xpose.msra.mxu0 0.0
        %1988 = vmatprep.subr.mxu0 0.0
        %1989 = vmatpush1.xpose.msra.mxu0 0.0
        %1990 = vmatprep.subr.mxu0 0.0
        %1991 = vmatpush1.xpose.msra.mxu0 %v1958
        %1992 = vmatprep.subr.mxu0 0.0
        %1993 = vmatpush2.xpose.msra.mxu0 0.0
        %1994 = vmatprep.subr.mxu0 0.0
        %1995 = vmatpush2.xpose.msra.mxu0 0.0
        %1996 = vmatprep.subr.mxu0 0.0
        %1997 = vmatpush2.xpose.msra.mxu0 0.0
        %1998 = vmatprep.subr.mxu0 0.0
        %1999 = vmatpush2.xpose.msra.mxu0 0.0
        %2000 = vmatprep.subr.mxu0 0.0
        %2001 = vmatpush2.xpose.msra.mxu0 0.0
        %2002 = vmatprep.subr.mxu0 0.0
        %2003 = vmatpush2.xpose.msra.mxu0 0.0
        %2004 = vmatprep.subr.mxu0 0.0
        %2005 = vmatpush2.xpose.msra.mxu0 0.0
        %2006 = vmatprep.subr.mxu0 0.0
        %2007 = vmatpush2.xpose.msra.mxu0 0.0
        %2008 = vmatprep.subr.mxu0 0.0
        %2009 = vmatpush2.xpose.msra.mxu0 0.0
        %2010 = vmatprep.subr.mxu0 0.0
        %2011 = vmatpush2.xpose.msra.mxu0 0.0
        %2012 = vmatprep.subr.mxu0 0.0
        %2013 = vmatpush2.xpose.msra.mxu0 0.0
        %2014 = vmatprep.subr.mxu0 0.0
        %2015 = vmatpush2.xpose.msra.mxu0 0.0
        %2016 = vmatprep.subr.mxu0 0.0
        %2017 = vmatpush2.xpose.msra.mxu0 0.0
        %2018 = vmatprep.subr.mxu0 0.0
        %2019 = vmatpush2.xpose.msra.mxu0 0.0
        %2020 = vmatprep.subr.mxu0 0.0
        %2021 = vmatpush2.xpose.msra.mxu0 0.0
        %2022 = vmatprep.subr.mxu0 0.0
        %2023 = vmatpush2.xpose.msra.mxu0 0.0
        %2024 = vmatprep.mubr.f32.mxu0 0.0
        %2025 = vmatmul.mubr.f32.gmra.mxu0 %v1958
        %v2026 = vpop.f32.mrf.mxu0
        %v2027 = vadd.f32 0.0, %v2026
        %v2028 = vpop.f32.mrf.mxu0
        %2029 = vdwg.mxu0
        %2030 = vrot.lane.b32.xlu0 %v479, 112
        %v2031 = vpop.permute.xlu0 %2030
        %v2032 = vsel %vm508, %v2031, 0
        %2034 = vmatprep.subr.mxu0 0.0
        %2035 = vmatpush1.xpose.msra.mxu0 0.0
        %2036 = vmatprep.subr.mxu0 0.0
        %2037 = vmatpush1.xpose.msra.mxu0 0.0
        %2038 = vmatprep.subr.mxu0 0.0
        %2039 = vmatpush1.xpose.msra.mxu0 0.0
        %2040 = vmatprep.subr.mxu0 0.0
        %2041 = vmatpush1.xpose.msra.mxu0 0.0
        %2042 = vmatprep.subr.mxu0 0.0
        %2043 = vmatpush1.xpose.msra.mxu0 0.0
        %2044 = vmatprep.subr.mxu0 0.0
        %2045 = vmatpush1.xpose.msra.mxu0 0.0
        %2046 = vmatprep.subr.mxu0 0.0
        %2047 = vmatpush1.xpose.msra.mxu0 0.0
        %2048 = vmatprep.subr.mxu0 0.0
        %2049 = vmatpush1.xpose.msra.mxu0 0.0
        %2050 = vmatprep.subr.mxu0 0.0
        %2051 = vmatpush1.xpose.msra.mxu0 0.0
        %2052 = vmatprep.subr.mxu0 0.0
        %2053 = vmatpush1.xpose.msra.mxu0 0.0
        %2054 = vmatprep.subr.mxu0 0.0
        %2055 = vmatpush1.xpose.msra.mxu0 0.0
        %2056 = vmatprep.subr.mxu0 0.0
        %2057 = vmatpush1.xpose.msra.mxu0 0.0
        %2058 = vmatprep.subr.mxu0 0.0
        %2059 = vmatpush1.xpose.msra.mxu0 0.0
        %2060 = vmatprep.subr.mxu0 0.0
        %2061 = vmatpush1.xpose.msra.mxu0 0.0
        %2062 = vmatprep.subr.mxu0 0.0
        %2063 = vmatpush1.xpose.msra.mxu0 0.0
        %2064 = vmatprep.subr.mxu0 0.0
        %2065 = vmatpush1.xpose.msra.mxu0 %v2032
        %2066 = vmatprep.subr.mxu0 0.0
        %2067 = vmatpush2.xpose.msra.mxu0 0.0
        %2068 = vmatprep.subr.mxu0 0.0
        %2069 = vmatpush2.xpose.msra.mxu0 0.0
        %2070 = vmatprep.subr.mxu0 0.0
        %2071 = vmatpush2.xpose.msra.mxu0 0.0
        %2072 = vmatprep.subr.mxu0 0.0
        %2073 = vmatpush2.xpose.msra.mxu0 0.0
        %2074 = vmatprep.subr.mxu0 0.0
        %2075 = vmatpush2.xpose.msra.mxu0 0.0
        %2076 = vmatprep.subr.mxu0 0.0
        %2077 = vmatpush2.xpose.msra.mxu0 0.0
        %2078 = vmatprep.subr.mxu0 0.0
        %2079 = vmatpush2.xpose.msra.mxu0 0.0
        %2080 = vmatprep.subr.mxu0 0.0
        %2081 = vmatpush2.xpose.msra.mxu0 0.0
        %2082 = vmatprep.subr.mxu0 0.0
        %2083 = vmatpush2.xpose.msra.mxu0 0.0
        %2084 = vmatprep.subr.mxu0 0.0
        %2085 = vmatpush2.xpose.msra.mxu0 0.0
        %2086 = vmatprep.subr.mxu0 0.0
        %2087 = vmatpush2.xpose.msra.mxu0 0.0
        %2088 = vmatprep.subr.mxu0 0.0
        %2089 = vmatpush2.xpose.msra.mxu0 0.0
        %2090 = vmatprep.subr.mxu0 0.0
        %2091 = vmatpush2.xpose.msra.mxu0 0.0
        %2092 = vmatprep.subr.mxu0 0.0
        %2093 = vmatpush2.xpose.msra.mxu0 0.0
        %2094 = vmatprep.subr.mxu0 0.0
        %2095 = vmatpush2.xpose.msra.mxu0 0.0
        %2096 = vmatprep.subr.mxu0 0.0
        %2097 = vmatpush2.xpose.msra.mxu0 0.0
        %2098 = vmatprep.mubr.f32.mxu0 0.0
        %2099 = vmatmul.mubr.f32.gmra.mxu0 %v2032
        %v2100 = vpop.f32.mrf.mxu0
        %v2101 = vadd.f32 0.0, %v2100
        %v2102 = vpop.f32.mrf.mxu0
        %2103 = vdwg.mxu0
        %2104 = vrot.lane.b32.xlu0 %v484, 112
        %v2105 = vpop.permute.xlu0 %2104
        %v2106 = vsel %vm508, %v2105, 0
        %2108 = vmatprep.subr.mxu0 0.0
        %2109 = vmatpush1.xpose.msra.mxu0 0.0
        %2110 = vmatprep.subr.mxu0 0.0
        %2111 = vmatpush1.xpose.msra.mxu0 0.0
        %2112 = vmatprep.subr.mxu0 0.0
        %2113 = vmatpush1.xpose.msra.mxu0 0.0
        %2114 = vmatprep.subr.mxu0 0.0
        %2115 = vmatpush1.xpose.msra.mxu0 0.0
        %2116 = vmatprep.subr.mxu0 0.0
        %2117 = vmatpush1.xpose.msra.mxu0 0.0
        %2118 = vmatprep.subr.mxu0 0.0
        %2119 = vmatpush1.xpose.msra.mxu0 0.0
        %2120 = vmatprep.subr.mxu0 0.0
        %2121 = vmatpush1.xpose.msra.mxu0 0.0
        %2122 = vmatprep.subr.mxu0 0.0
        %2123 = vmatpush1.xpose.msra.mxu0 0.0
        %2124 = vmatprep.subr.mxu0 0.0
        %2125 = vmatpush1.xpose.msra.mxu0 0.0
        %2126 = vmatprep.subr.mxu0 0.0
        %2127 = vmatpush1.xpose.msra.mxu0 0.0
        %2128 = vmatprep.subr.mxu0 0.0
        %2129 = vmatpush1.xpose.msra.mxu0 0.0
        %2130 = vmatprep.subr.mxu0 0.0
        %2131 = vmatpush1.xpose.msra.mxu0 0.0
        %2132 = vmatprep.subr.mxu0 0.0
        %2133 = vmatpush1.xpose.msra.mxu0 0.0
        %2134 = vmatprep.subr.mxu0 0.0
        %2135 = vmatpush1.xpose.msra.mxu0 0.0
        %2136 = vmatprep.subr.mxu0 0.0
        %2137 = vmatpush1.xpose.msra.mxu0 0.0
        %2138 = vmatprep.subr.mxu0 0.0
        %2139 = vmatpush1.xpose.msra.mxu0 %v2106
        %2140 = vmatprep.subr.mxu0 0.0
        %2141 = vmatpush2.xpose.msra.mxu0 0.0
        %2142 = vmatprep.subr.mxu0 0.0
        %2143 = vmatpush2.xpose.msra.mxu0 0.0
        %2144 = vmatprep.subr.mxu0 0.0
        %2145 = vmatpush2.xpose.msra.mxu0 0.0
        %2146 = vmatprep.subr.mxu0 0.0
        %2147 = vmatpush2.xpose.msra.mxu0 0.0
        %2148 = vmatprep.subr.mxu0 0.0
        %2149 = vmatpush2.xpose.msra.mxu0 0.0
        %2150 = vmatprep.subr.mxu0 0.0
        %2151 = vmatpush2.xpose.msra.mxu0 0.0
        %2152 = vmatprep.subr.mxu0 0.0
        %2153 = vmatpush2.xpose.msra.mxu0 0.0
        %2154 = vmatprep.subr.mxu0 0.0
        %2155 = vmatpush2.xpose.msra.mxu0 0.0
        %2156 = vmatprep.subr.mxu0 0.0
        %2157 = vmatpush2.xpose.msra.mxu0 0.0
        %2158 = vmatprep.subr.mxu0 0.0
        %2159 = vmatpush2.xpose.msra.mxu0 0.0
        %2160 = vmatprep.subr.mxu0 0.0
        %2161 = vmatpush2.xpose.msra.mxu0 0.0
        %2162 = vmatprep.subr.mxu0 0.0
        %2163 = vmatpush2.xpose.msra.mxu0 0.0
        %2164 = vmatprep.subr.mxu0 0.0
        %2165 = vmatpush2.xpose.msra.mxu0 0.0
        %2166 = vmatprep.subr.mxu0 0.0
        %2167 = vmatpush2.xpose.msra.mxu0 0.0
        %2168 = vmatprep.subr.mxu0 0.0
        %2169 = vmatpush2.xpose.msra.mxu0 0.0
        %2170 = vmatprep.subr.mxu0 0.0
        %2171 = vmatpush2.xpose.msra.mxu0 0.0
        %2172 = vmatprep.mubr.f32.mxu0 0.0
        %2173 = vmatmul.mubr.f32.gmra.mxu0 %v2106
        %v2174 = vpop.f32.mrf.mxu0
        %v2175 = vadd.f32 0.0, %v2174
        %v2176 = vpop.f32.mrf.mxu0
        %2177 = vdwg.mxu0
        %2178 = vrot.lane.b32.xlu0 %v489, 112
        %v2179 = vpop.permute.xlu0 %2178
        %v2180 = vsel %vm508, %v2179, 0
        %2182 = vmatprep.subr.mxu0 0.0
        %2183 = vmatpush1.xpose.msra.mxu0 0.0
        %2184 = vmatprep.subr.mxu0 0.0
        %2185 = vmatpush1.xpose.msra.mxu0 0.0
        %2186 = vmatprep.subr.mxu0 0.0
        %2187 = vmatpush1.xpose.msra.mxu0 0.0
        %2188 = vmatprep.subr.mxu0 0.0
        %2189 = vmatpush1.xpose.msra.mxu0 0.0
        %2190 = vmatprep.subr.mxu0 0.0
        %2191 = vmatpush1.xpose.msra.mxu0 0.0
        %2192 = vmatprep.subr.mxu0 0.0
        %2193 = vmatpush1.xpose.msra.mxu0 0.0
        %2194 = vmatprep.subr.mxu0 0.0
        %2195 = vmatpush1.xpose.msra.mxu0 0.0
        %2196 = vmatprep.subr.mxu0 0.0
        %2197 = vmatpush1.xpose.msra.mxu0 0.0
        %2198 = vmatprep.subr.mxu0 0.0
        %2199 = vmatpush1.xpose.msra.mxu0 0.0
        %2200 = vmatprep.subr.mxu0 0.0
        %2201 = vmatpush1.xpose.msra.mxu0 0.0
        %2202 = vmatprep.subr.mxu0 0.0
        %2203 = vmatpush1.xpose.msra.mxu0 0.0
        %2204 = vmatprep.subr.mxu0 0.0
        %2205 = vmatpush1.xpose.msra.mxu0 0.0
        %2206 = vmatprep.subr.mxu0 0.0
        %2207 = vmatpush1.xpose.msra.mxu0 0.0
        %2208 = vmatprep.subr.mxu0 0.0
        %2209 = vmatpush1.xpose.msra.mxu0 0.0
        %2210 = vmatprep.subr.mxu0 0.0
        %2211 = vmatpush1.xpose.msra.mxu0 0.0
        %2212 = vmatprep.subr.mxu0 0.0
        %2213 = vmatpush1.xpose.msra.mxu0 %v2180
        %2214 = vmatprep.subr.mxu0 0.0
        %2215 = vmatpush2.xpose.msra.mxu0 0.0
        %2216 = vmatprep.subr.mxu0 0.0
        %2217 = vmatpush2.xpose.msra.mxu0 0.0
        %2218 = vmatprep.subr.mxu0 0.0
        %2219 = vmatpush2.xpose.msra.mxu0 0.0
        %2220 = vmatprep.subr.mxu0 0.0
        %2221 = vmatpush2.xpose.msra.mxu0 0.0
        %2222 = vmatprep.subr.mxu0 0.0
        %2223 = vmatpush2.xpose.msra.mxu0 0.0
        %2224 = vmatprep.subr.mxu0 0.0
        %2225 = vmatpush2.xpose.msra.mxu0 0.0
        %2226 = vmatprep.subr.mxu0 0.0
        %2227 = vmatpush2.xpose.msra.mxu0 0.0
        %2228 = vmatprep.subr.mxu0 0.0
        %2229 = vmatpush2.xpose.msra.mxu0 0.0
        %2230 = vmatprep.subr.mxu0 0.0
        %2231 = vmatpush2.xpose.msra.mxu0 0.0
        %2232 = vmatprep.subr.mxu0 0.0
        %2233 = vmatpush2.xpose.msra.mxu0 0.0
        %2234 = vmatprep.subr.mxu0 0.0
        %2235 = vmatpush2.xpose.msra.mxu0 0.0
        %2236 = vmatprep.subr.mxu0 0.0
        %2237 = vmatpush2.xpose.msra.mxu0 0.0
        %2238 = vmatprep.subr.mxu0 0.0
        %2239 = vmatpush2.xpose.msra.mxu0 0.0
        %2240 = vmatprep.subr.mxu0 0.0
        %2241 = vmatpush2.xpose.msra.mxu0 0.0
        %2242 = vmatprep.subr.mxu0 0.0
        %2243 = vmatpush2.xpose.msra.mxu0 0.0
        %2244 = vmatprep.subr.mxu0 0.0
        %2245 = vmatpush2.xpose.msra.mxu0 0.0
        %2246 = vmatprep.mubr.f32.mxu0 0.0
        %2247 = vmatmul.mubr.f32.gmra.mxu0 %v2180
        %v2248 = vpop.f32.mrf.mxu0
        %v2249 = vadd.f32 0.0, %v2248
        %v2250 = vpop.f32.mrf.mxu0
        %2251 = vdwg.mxu0
        %2252 = vrot.lane.b32.xlu0 %v494, 112
        %v2253 = vpop.permute.xlu0 %2252
        %v2254 = vsel %vm508, %v2253, 0
        %2256 = vmatprep.subr.mxu0 0.0
        %2257 = vmatpush1.xpose.msra.mxu0 0.0
        %2258 = vmatprep.subr.mxu0 0.0
        %2259 = vmatpush1.xpose.msra.mxu0 0.0
        %2260 = vmatprep.subr.mxu0 0.0
        %2261 = vmatpush1.xpose.msra.mxu0 0.0
        %2262 = vmatprep.subr.mxu0 0.0
        %2263 = vmatpush1.xpose.msra.mxu0 0.0
        %2264 = vmatprep.subr.mxu0 0.0
        %2265 = vmatpush1.xpose.msra.mxu0 0.0
        %2266 = vmatprep.subr.mxu0 0.0
        %2267 = vmatpush1.xpose.msra.mxu0 0.0
        %2268 = vmatprep.subr.mxu0 0.0
        %2269 = vmatpush1.xpose.msra.mxu0 0.0
        %2270 = vmatprep.subr.mxu0 0.0
        %2271 = vmatpush1.xpose.msra.mxu0 0.0
        %2272 = vmatprep.subr.mxu0 0.0
        %2273 = vmatpush1.xpose.msra.mxu0 0.0
        %2274 = vmatprep.subr.mxu0 0.0
        %2275 = vmatpush1.xpose.msra.mxu0 0.0
        %2276 = vmatprep.subr.mxu0 0.0
        %2277 = vmatpush1.xpose.msra.mxu0 0.0
        %2278 = vmatprep.subr.mxu0 0.0
        %2279 = vmatpush1.xpose.msra.mxu0 0.0
        %2280 = vmatprep.subr.mxu0 0.0
        %2281 = vmatpush1.xpose.msra.mxu0 0.0
        %2282 = vmatprep.subr.mxu0 0.0
        %2283 = vmatpush1.xpose.msra.mxu0 0.0
        %2284 = vmatprep.subr.mxu0 0.0
        %2285 = vmatpush1.xpose.msra.mxu0 0.0
        %2286 = vmatprep.subr.mxu0 0.0
        %2287 = vmatpush1.xpose.msra.mxu0 %v2254
        %2288 = vmatprep.subr.mxu0 0.0
        %2289 = vmatpush2.xpose.msra.mxu0 0.0
        %2290 = vmatprep.subr.mxu0 0.0
        %2291 = vmatpush2.xpose.msra.mxu0 0.0
        %2292 = vmatprep.subr.mxu0 0.0
        %2293 = vmatpush2.xpose.msra.mxu0 0.0
        %2294 = vmatprep.subr.mxu0 0.0
        %2295 = vmatpush2.xpose.msra.mxu0 0.0
        %2296 = vmatprep.subr.mxu0 0.0
        %2297 = vmatpush2.xpose.msra.mxu0 0.0
        %2298 = vmatprep.subr.mxu0 0.0
        %2299 = vmatpush2.xpose.msra.mxu0 0.0
        %2300 = vmatprep.subr.mxu0 0.0
        %2301 = vmatpush2.xpose.msra.mxu0 0.0
        %2302 = vmatprep.subr.mxu0 0.0
        %2303 = vmatpush2.xpose.msra.mxu0 0.0
        %2304 = vmatprep.subr.mxu0 0.0
        %2305 = vmatpush2.xpose.msra.mxu0 0.0
        %2306 = vmatprep.subr.mxu0 0.0
        %2307 = vmatpush2.xpose.msra.mxu0 0.0
        %2308 = vmatprep.subr.mxu0 0.0
        %2309 = vmatpush2.xpose.msra.mxu0 0.0
        %2310 = vmatprep.subr.mxu0 0.0
        %2311 = vmatpush2.xpose.msra.mxu0 0.0
        %2312 = vmatprep.subr.mxu0 0.0
        %2313 = vmatpush2.xpose.msra.mxu0 0.0
        %2314 = vmatprep.subr.mxu0 0.0
        %2315 = vmatpush2.xpose.msra.mxu0 0.0
        %2316 = vmatprep.subr.mxu0 0.0
        %2317 = vmatpush2.xpose.msra.mxu0 0.0
        %2318 = vmatprep.subr.mxu0 0.0
        %2319 = vmatpush2.xpose.msra.mxu0 0.0
        %2320 = vmatprep.mubr.f32.mxu0 0.0
        %2321 = vmatmul.mubr.f32.gmra.mxu0 %v2254
        %v2322 = vpop.f32.mrf.mxu0
        %v2323 = vadd.f32 0.0, %v2322
        %v2324 = vpop.f32.mrf.mxu0
        %2325 = vdwg.mxu0
        %2326 = vrot.lane.b32.xlu0 %v499, 112
        %v2327 = vpop.permute.xlu0 %2326
        %v2328 = vsel %vm508, %v2327, 0
        %2330 = vmatprep.subr.mxu0 0.0
        %2331 = vmatpush1.xpose.msra.mxu0 0.0
        %2332 = vmatprep.subr.mxu0 0.0
        %2333 = vmatpush1.xpose.msra.mxu0 0.0
        %2334 = vmatprep.subr.mxu0 0.0
        %2335 = vmatpush1.xpose.msra.mxu0 0.0
        %2336 = vmatprep.subr.mxu0 0.0
        %2337 = vmatpush1.xpose.msra.mxu0 0.0
        %2338 = vmatprep.subr.mxu0 0.0
        %2339 = vmatpush1.xpose.msra.mxu0 0.0
        %2340 = vmatprep.subr.mxu0 0.0
        %2341 = vmatpush1.xpose.msra.mxu0 0.0
        %2342 = vmatprep.subr.mxu0 0.0
        %2343 = vmatpush1.xpose.msra.mxu0 0.0
        %2344 = vmatprep.subr.mxu0 0.0
        %2345 = vmatpush1.xpose.msra.mxu0 0.0
        %2346 = vmatprep.subr.mxu0 0.0
        %2347 = vmatpush1.xpose.msra.mxu0 0.0
        %2348 = vmatprep.subr.mxu0 0.0
        %2349 = vmatpush1.xpose.msra.mxu0 0.0
        %2350 = vmatprep.subr.mxu0 0.0
        %2351 = vmatpush1.xpose.msra.mxu0 0.0
        %2352 = vmatprep.subr.mxu0 0.0
        %2353 = vmatpush1.xpose.msra.mxu0 0.0
        %2354 = vmatprep.subr.mxu0 0.0
        %2355 = vmatpush1.xpose.msra.mxu0 0.0
        %2356 = vmatprep.subr.mxu0 0.0
        %2357 = vmatpush1.xpose.msra.mxu0 0.0
        %2358 = vmatprep.subr.mxu0 0.0
        %2359 = vmatpush1.xpose.msra.mxu0 0.0
        %2360 = vmatprep.subr.mxu0 0.0
        %2361 = vmatpush1.xpose.msra.mxu0 %v2328
        %2362 = vmatprep.subr.mxu0 0.0
        %2363 = vmatpush2.xpose.msra.mxu0 0.0
        %2364 = vmatprep.subr.mxu0 0.0
        %2365 = vmatpush2.xpose.msra.mxu0 0.0
        %2366 = vmatprep.subr.mxu0 0.0
        %2367 = vmatpush2.xpose.msra.mxu0 0.0
        %2368 = vmatprep.subr.mxu0 0.0
        %2369 = vmatpush2.xpose.msra.mxu0 0.0
        %2370 = vmatprep.subr.mxu0 0.0
        %2371 = vmatpush2.xpose.msra.mxu0 0.0
        %2372 = vmatprep.subr.mxu0 0.0
        %2373 = vmatpush2.xpose.msra.mxu0 0.0
        %2374 = vmatprep.subr.mxu0 0.0
        %2375 = vmatpush2.xpose.msra.mxu0 0.0
        %2376 = vmatprep.subr.mxu0 0.0
        %2377 = vmatpush2.xpose.msra.mxu0 0.0
        %2378 = vmatprep.subr.mxu0 0.0
        %2379 = vmatpush2.xpose.msra.mxu0 0.0
        %2380 = vmatprep.subr.mxu0 0.0
        %2381 = vmatpush2.xpose.msra.mxu0 0.0
        %2382 = vmatprep.subr.mxu0 0.0
        %2383 = vmatpush2.xpose.msra.mxu0 0.0
        %2384 = vmatprep.subr.mxu0 0.0
        %2385 = vmatpush2.xpose.msra.mxu0 0.0
        %2386 = vmatprep.subr.mxu0 0.0
        %2387 = vmatpush2.xpose.msra.mxu0 0.0
        %2388 = vmatprep.subr.mxu0 0.0
        %2389 = vmatpush2.xpose.msra.mxu0 0.0
        %2390 = vmatprep.subr.mxu0 0.0
        %2391 = vmatpush2.xpose.msra.mxu0 0.0
        %2392 = vmatprep.subr.mxu0 0.0
        %2393 = vmatpush2.xpose.msra.mxu0 0.0
        %2394 = vmatprep.mubr.f32.mxu0 0.0
        %2395 = vmatmul.mubr.f32.gmra.mxu0 %v2328
        %v2396 = vpop.f32.mrf.mxu0
        %v2397 = vadd.f32 0.0, %v2396
        %v2398 = vpop.f32.mrf.mxu0
        %2399 = vdwg.mxu0
        %v2400 = vmul.f32 %v1879, 0.25
        %v2401 = vmul.f32 %v1953, 0.25
        %v2402 = vmul.f32 %v2027, 0.25
        %v2403 = vmul.f32 %v2101, 0.25
        %v2404 = vmul.f32 %v2175, 0.25
        %v2405 = vmul.f32 %v2249, 0.25
        %v2406 = vmul.f32 %v2323, 0.25
        %v2407 = vmul.f32 %v2397, 0.25
        %v2408 = vadd.f32 %v2400, %v507
        %v2409 = vadd.f32 %v2401, %v507
        %v2410 = vadd.f32 %v2402, %v507
        %v2411 = vadd.f32 %v2403, %v507
        %v2412 = vadd.f32 %v2404, %v507
        %v2413 = vadd.f32 %v2405, %v507
        %v2414 = vadd.f32 %v2406, %v507
        %v2415 = vadd.f32 %v2407, %v507
        %v2416 = vsel %vm1109, %v2408, -inf
        %2417 = vmax.xlane.f32.xlu0 %v2416
        %v2418 = vpop.xlane.xlu0 %2417
        %v2419 = vsel %vm1109, %v2409, -inf
        %2420 = vmax.xlane.f32.xlu0 %v2419
        %v2421 = vpop.xlane.xlu0 %2420
        %v2422 = vsel %vm1109, %v2410, -inf
        %2423 = vmax.xlane.f32.xlu0 %v2422
        %v2424 = vpop.xlane.xlu0 %2423
        %v2425 = vsel %vm1109, %v2411, -inf
        %2426 = vmax.xlane.f32.xlu0 %v2425
        %v2427 = vpop.xlane.xlu0 %2426
        %v2428 = vsel %vm1109, %v2412, -inf
        %2429 = vmax.xlane.f32.xlu0 %v2428
        %v2430 = vpop.xlane.xlu0 %2429
        %v2431 = vsel %vm1109, %v2413, -inf
        %2432 = vmax.xlane.f32.xlu0 %v2431
        %v2433 = vpop.xlane.xlu0 %2432
        %v2434 = vsel %vm1109, %v2414, -inf
        %2435 = vmax.xlane.f32.xlu0 %v2434
        %v2436 = vpop.xlane.xlu0 %2435
        %v2437 = vsel %vm1109, %v2415, -inf
        %2438 = vmax.xlane.f32.xlu0 %v2437
        %v2439 = vpop.xlane.xlu0 %2438
        %v2440 = vsub.f32 %v2408, %v2418
        %v2441 = vsub.f32 %v2409, %v2421
        %v2442 = vsub.f32 %v2410, %v2424
        %v2443 = vsub.f32 %v2411, %v2427
        %v2444 = vsub.f32 %v2412, %v2430
        %v2445 = vsub.f32 %v2413, %v2433
        %v2446 = vsub.f32 %v2414, %v2436
        %v2447 = vsub.f32 %v2415, %v2439
        %v2448 = vmul.f32 %v2440, 1.442695
        %v2449 = vpow.pop %v2448
        %v2450 = vmul.f32 %v2441, 1.442695
        %v2451 = vpow.pop %v2450
        %v2452 = vmul.f32 %v2442, 1.442695
        %v2453 = vpow.pop %v2452
        %v2454 = vmul.f32 %v2443, 1.442695
        %v2455 = vpow.pop %v2454
        %v2456 = vmul.f32 %v2444, 1.442695
        %v2457 = vpow.pop %v2456
        %v2458 = vmul.f32 %v2445, 1.442695
        %v2459 = vpow.pop %v2458
        %v2460 = vmul.f32 %v2446, 1.442695
        %v2461 = vpow.pop %v2460
        %v2462 = vmul.f32 %v2447, 1.442695
        %v2463 = vpow.pop %v2462
        %v2464 = vsel %vm1109, %v2449, 0.0
        %2465 = vadd.xlane.f32.xlu0 %v2464
        %v2466 = vpop.xlane.xlu0 %2465
        %v2467 = vsel %vm1109, %v2451, 0.0
        %2468 = vadd.xlane.f32.xlu0 %v2467
        %v2469 = vpop.xlane.xlu0 %2468
        %v2470 = vsel %vm1109, %v2453, 0.0
        %2471 = vadd.xlane.f32.xlu0 %v2470
        %v2472 = vpop.xlane.xlu0 %2471
        %v2473 = vsel %vm1109, %v2455, 0.0
        %2474 = vadd.xlane.f32.xlu0 %v2473
        %v2475 = vpop.xlane.xlu0 %2474
        %v2476 = vsel %vm1109, %v2457, 0.0
        %2477 = vadd.xlane.f32.xlu0 %v2476
        %v2478 = vpop.xlane.xlu0 %2477
        %v2479 = vsel %vm1109, %v2459, 0.0
        %2480 = vadd.xlane.f32.xlu0 %v2479
        %v2481 = vpop.xlane.xlu0 %2480
        %v2482 = vsel %vm1109, %v2461, 0.0
        %2483 = vadd.xlane.f32.xlu0 %v2482
        %v2484 = vpop.xlane.xlu0 %2483
        %v2485 = vsel %vm1109, %v2463, 0.0
        %2486 = vadd.xlane.f32.xlu0 %v2485
        %v2487 = vpop.xlane.xlu0 %2486
        %v2488 = vrcp.pop %v2466
        %v2489 = vmul.f32 %v2449, %v2488
        %v2490 = vrcp.pop %v2469
        %v2491 = vmul.f32 %v2451, %v2490
        %v2492 = vrcp.pop %v2472
        %v2493 = vmul.f32 %v2453, %v2492
        %v2494 = vrcp.pop %v2475
        %v2495 = vmul.f32 %v2455, %v2494
        %v2496 = vrcp.pop %v2478
        %v2497 = vmul.f32 %v2457, %v2496
        %v2498 = vrcp.pop %v2481
        %v2499 = vmul.f32 %v2459, %v2498
        %v2500 = vrcp.pop %v2484
        %v2501 = vmul.f32 %v2461, %v2500
        %v2502 = vrcp.pop %v2487
        %v2503 = vmul.f32 %v2463, %v2502
        %2504 = vrot.lane.b32.xlu0 %v464, 80
        %v2505 = vpop.permute.xlu0 %2504
        %v2508 = vsel %vm1109, %v2489, 0
        %2510 = vmatprep.subr.mxu0 0.0
        %2511 = vmatpush1.msra.mxu0 0.0
        %2512 = vmatprep.subr.mxu0 0.0
        %2513 = vmatpush1.msra.mxu0 0.0
        %2514 = vmatprep.subr.mxu0 0.0
        %2515 = vmatpush1.msra.mxu0 0.0
        %2516 = vmatprep.subr.mxu0 0.0
        %2517 = vmatpush1.msra.mxu0 0.0
        %2518 = vmatprep.subr.mxu0 0.0
        %2519 = vmatpush1.msra.mxu0 0.0
        %2520 = vmatprep.subr.mxu0 0.0
        %2521 = vmatpush1.msra.mxu0 0.0
        %2522 = vmatprep.subr.mxu0 0.0
        %2523 = vmatpush1.msra.mxu0 0.0
        %2524 = vmatprep.subr.mxu0 0.0
        %2525 = vmatpush1.msra.mxu0 0.0
        %2526 = vmatprep.subr.mxu0 0.0
        %2527 = vmatpush1.msra.mxu0 0.0
        %2528 = vmatprep.subr.mxu0 0.0
        %2529 = vmatpush1.msra.mxu0 0.0
        %2530 = vmatprep.subr.mxu0 0.0
        %2531 = vmatpush1.msra.mxu0 0.0
        %2532 = vmatprep.subr.mxu0 0.0
        %2533 = vmatpush1.msra.mxu0 0.0
        %2534 = vmatprep.subr.mxu0 0.0
        %2535 = vmatpush1.msra.mxu0 0.0
        %2536 = vmatprep.subr.mxu0 0.0
        %2537 = vmatpush1.msra.mxu0 0.0
        %2538 = vmatprep.subr.mxu0 0.0
        %2539 = vmatpush1.msra.mxu0 0.0
        %2540 = vmatprep.subr.mxu0 0.0
        %2541 = vmatpush1.msra.mxu0 %v2505
        %2542 = vmatprep.subr.mxu0 0.0
        %2543 = vmatpush2.msra.mxu0 0.0
        %2544 = vmatprep.subr.mxu0 0.0
        %2545 = vmatpush2.msra.mxu0 0.0
        %2546 = vmatprep.subr.mxu0 0.0
        %2547 = vmatpush2.msra.mxu0 0.0
        %2548 = vmatprep.subr.mxu0 0.0
        %2549 = vmatpush2.msra.mxu0 0.0
        %2550 = vmatprep.subr.mxu0 0.0
        %2551 = vmatpush2.msra.mxu0 0.0
        %2552 = vmatprep.subr.mxu0 0.0
        %2553 = vmatpush2.msra.mxu0 0.0
        %2554 = vmatprep.subr.mxu0 0.0
        %2555 = vmatpush2.msra.mxu0 0.0
        %2556 = vmatprep.subr.mxu0 0.0
        %2557 = vmatpush2.msra.mxu0 0.0
        %2558 = vmatprep.subr.mxu0 0.0
        %2559 = vmatpush2.msra.mxu0 0.0
        %2560 = vmatprep.subr.mxu0 0.0
        %2561 = vmatpush2.msra.mxu0 0.0
        %2562 = vmatprep.subr.mxu0 0.0
        %2563 = vmatpush2.msra.mxu0 0.0
        %2564 = vmatprep.subr.mxu0 0.0
        %2565 = vmatpush2.msra.mxu0 0.0
        %2566 = vmatprep.subr.mxu0 0.0
        %2567 = vmatpush2.msra.mxu0 0.0
        %2568 = vmatprep.subr.mxu0 0.0
        %2569 = vmatpush2.msra.mxu0 0.0
        %2570 = vmatprep.subr.mxu0 0.0
        %2571 = vmatpush2.msra.mxu0 0.0
        %2572 = vmatprep.subr.mxu0 0.0
        %2573 = vmatpush2.msra.mxu0 0.0
        %2574 = vmatprep.mubr.f32.mxu0 0.0
        %2575 = vmatmul.mubr.f32.gmra.mxu0 %v2508
        %v2576 = vpop.f32.mrf.mxu0
        %v2577 = vadd.f32 0.0, %v2576
        %v2578 = vpop.f32.mrf.mxu0
        %2579 = vdwg.mxu0
        %2580 = vrot.lane.b32.xlu0 %v469, 80
        %v2581 = vpop.permute.xlu0 %2580
        %v2584 = vsel %vm1109, %v2491, 0
        %2586 = vmatprep.subr.mxu0 0.0
        %2587 = vmatpush1.msra.mxu0 0.0
        %2588 = vmatprep.subr.mxu0 0.0
        %2589 = vmatpush1.msra.mxu0 0.0
        %2590 = vmatprep.subr.mxu0 0.0
        %2591 = vmatpush1.msra.mxu0 0.0
        %2592 = vmatprep.subr.mxu0 0.0
        %2593 = vmatpush1.msra.mxu0 0.0
        %2594 = vmatprep.subr.mxu0 0.0
        %2595 = vmatpush1.msra.mxu0 0.0
        %2596 = vmatprep.subr.mxu0 0.0
        %2597 = vmatpush1.msra.mxu0 0.0
        %2598 = vmatprep.subr.mxu0 0.0
        %2599 = vmatpush1.msra.mxu0 0.0
        %2600 = vmatprep.subr.mxu0 0.0
        %2601 = vmatpush1.msra.mxu0 0.0
        %2602 = vmatprep.subr.mxu0 0.0
        %2603 = vmatpush1.msra.mxu0 0.0
        %2604 = vmatprep.subr.mxu0 0.0
        %2605 = vmatpush1.msra.mxu0 0.0
        %2606 = vmatprep.subr.mxu0 0.0
        %2607 = vmatpush1.msra.mxu0 0.0
        %2608 = vmatprep.subr.mxu0 0.0
        %2609 = vmatpush1.msra.mxu0 0.0
        %2610 = vmatprep.subr.mxu0 0.0
        %2611 = vmatpush1.msra.mxu0 0.0
        %2612 = vmatprep.subr.mxu0 0.0
        %2613 = vmatpush1.msra.mxu0 0.0
        %2614 = vmatprep.subr.mxu0 0.0
        %2615 = vmatpush1.msra.mxu0 0.0
        %2616 = vmatprep.subr.mxu0 0.0
        %2617 = vmatpush1.msra.mxu0 %v2581
        %2618 = vmatprep.subr.mxu0 0.0
        %2619 = vmatpush2.msra.mxu0 0.0
        %2620 = vmatprep.subr.mxu0 0.0
        %2621 = vmatpush2.msra.mxu0 0.0
        %2622 = vmatprep.subr.mxu0 0.0
        %2623 = vmatpush2.msra.mxu0 0.0
        %2624 = vmatprep.subr.mxu0 0.0
        %2625 = vmatpush2.msra.mxu0 0.0
        %2626 = vmatprep.subr.mxu0 0.0
        %2627 = vmatpush2.msra.mxu0 0.0
        %2628 = vmatprep.subr.mxu0 0.0
        %2629 = vmatpush2.msra.mxu0 0.0
        %2630 = vmatprep.subr.mxu0 0.0
        %2631 = vmatpush2.msra.mxu0 0.0
        %2632 = vmatprep.subr.mxu0 0.0
        %2633 = vmatpush2.msra.mxu0 0.0
        %2634 = vmatprep.subr.mxu0 0.0
        %2635 = vmatpush2.msra.mxu0 0.0
        %2636 = vmatprep.subr.mxu0 0.0
        %2637 = vmatpush2.msra.mxu0 0.0
        %2638 = vmatprep.subr.mxu0 0.0
        %2639 = vmatpush2.msra.mxu0 0.0
        %2640 = vmatprep.subr.mxu0 0.0
        %2641 = vmatpush2.msra.mxu0 0.0
        %2642 = vmatprep.subr.mxu0 0.0
        %2643 = vmatpush2.msra.mxu0 0.0
        %2644 = vmatprep.subr.mxu0 0.0
        %2645 = vmatpush2.msra.mxu0 0.0
        %2646 = vmatprep.subr.mxu0 0.0
        %2647 = vmatpush2.msra.mxu0 0.0
        %2648 = vmatprep.subr.mxu0 0.0
        %2649 = vmatpush2.msra.mxu0 0.0
        %2650 = vmatprep.mubr.f32.mxu0 0.0
        %2651 = vmatmul.mubr.f32.gmra.mxu0 %v2584
        %v2652 = vpop.f32.mrf.mxu0
        %v2653 = vadd.f32 0.0, %v2652
        %v2654 = vpop.f32.mrf.mxu0
        %2655 = vdwg.mxu0
        %2656 = vrot.lane.b32.xlu0 %v474, 80
        %v2657 = vpop.permute.xlu0 %2656
        %v2660 = vsel %vm1109, %v2493, 0
        %2662 = vmatprep.subr.mxu0 0.0
        %2663 = vmatpush1.msra.mxu0 0.0
        %2664 = vmatprep.subr.mxu0 0.0
        %2665 = vmatpush1.msra.mxu0 0.0
        %2666 = vmatprep.subr.mxu0 0.0
        %2667 = vmatpush1.msra.mxu0 0.0
        %2668 = vmatprep.subr.mxu0 0.0
        %2669 = vmatpush1.msra.mxu0 0.0
        %2670 = vmatprep.subr.mxu0 0.0
        %2671 = vmatpush1.msra.mxu0 0.0
        %2672 = vmatprep.subr.mxu0 0.0
        %2673 = vmatpush1.msra.mxu0 0.0
        %2674 = vmatprep.subr.mxu0 0.0
        %2675 = vmatpush1.msra.mxu0 0.0
        %2676 = vmatprep.subr.mxu0 0.0
        %2677 = vmatpush1.msra.mxu0 0.0
        %2678 = vmatprep.subr.mxu0 0.0
        %2679 = vmatpush1.msra.mxu0 0.0
        %2680 = vmatprep.subr.mxu0 0.0
        %2681 = vmatpush1.msra.mxu0 0.0
        %2682 = vmatprep.subr.mxu0 0.0
        %2683 = vmatpush1.msra.mxu0 0.0
        %2684 = vmatprep.subr.mxu0 0.0
        %2685 = vmatpush1.msra.mxu0 0.0
        %2686 = vmatprep.subr.mxu0 0.0
        %2687 = vmatpush1.msra.mxu0 0.0
        %2688 = vmatprep.subr.mxu0 0.0
        %2689 = vmatpush1.msra.mxu0 0.0
        %2690 = vmatprep.subr.mxu0 0.0
        %2691 = vmatpush1.msra.mxu0 0.0
        %2692 = vmatprep.subr.mxu0 0.0
        %2693 = vmatpush1.msra.mxu0 %v2657
        %2694 = vmatprep.subr.mxu0 0.0
        %2695 = vmatpush2.msra.mxu0 0.0
        %2696 = vmatprep.subr.mxu0 0.0
        %2697 = vmatpush2.msra.mxu0 0.0
        %2698 = vmatprep.subr.mxu0 0.0
        %2699 = vmatpush2.msra.mxu0 0.0
        %2700 = vmatprep.subr.mxu0 0.0
        %2701 = vmatpush2.msra.mxu0 0.0
        %2702 = vmatprep.subr.mxu0 0.0
        %2703 = vmatpush2.msra.mxu0 0.0
        %2704 = vmatprep.subr.mxu0 0.0
        %2705 = vmatpush2.msra.mxu0 0.0
        %2706 = vmatprep.subr.mxu0 0.0
        %2707 = vmatpush2.msra.mxu0 0.0
        %2708 = vmatprep.subr.mxu0 0.0
        %2709 = vmatpush2.msra.mxu0 0.0
        %2710 = vmatprep.subr.mxu0 0.0
        %2711 = vmatpush2.msra.mxu0 0.0
        %2712 = vmatprep.subr.mxu0 0.0
        %2713 = vmatpush2.msra.mxu0 0.0
        %2714 = vmatprep.subr.mxu0 0.0
        %2715 = vmatpush2.msra.mxu0 0.0
        %2716 = vmatprep.subr.mxu0 0.0
        %2717 = vmatpush2.msra.mxu0 0.0
        %2718 = vmatprep.subr.mxu0 0.0
        %2719 = vmatpush2.msra.mxu0 0.0
        %2720 = vmatprep.subr.mxu0 0.0
        %2721 = vmatpush2.msra.mxu0 0.0
        %2722 = vmatprep.subr.mxu0 0.0
        %2723 = vmatpush2.msra.mxu0 0.0
        %2724 = vmatprep.subr.mxu0 0.0
        %2725 = vmatpush2.msra.mxu0 0.0
        %2726 = vmatprep.mubr.f32.mxu0 0.0
        %2727 = vmatmul.mubr.f32.gmra.mxu0 %v2660
        %v2728 = vpop.f32.mrf.mxu0
        %v2729 = vadd.f32 0.0, %v2728
        %v2730 = vpop.f32.mrf.mxu0
        %2731 = vdwg.mxu0
        %2732 = vrot.lane.b32.xlu0 %v479, 80
        %v2733 = vpop.permute.xlu0 %2732
        %v2736 = vsel %vm1109, %v2495, 0
        %2738 = vmatprep.subr.mxu0 0.0
        %2739 = vmatpush1.msra.mxu0 0.0
        %2740 = vmatprep.subr.mxu0 0.0
        %2741 = vmatpush1.msra.mxu0 0.0
        %2742 = vmatprep.subr.mxu0 0.0
        %2743 = vmatpush1.msra.mxu0 0.0
        %2744 = vmatprep.subr.mxu0 0.0
        %2745 = vmatpush1.msra.mxu0 0.0
        %2746 = vmatprep.subr.mxu0 0.0
        %2747 = vmatpush1.msra.mxu0 0.0
        %2748 = vmatprep.subr.mxu0 0.0
        %2749 = vmatpush1.msra.mxu0 0.0
        %2750 = vmatprep.subr.mxu0 0.0
        %2751 = vmatpush1.msra.mxu0 0.0
        %2752 = vmatprep.subr.mxu0 0.0
        %2753 = vmatpush1.msra.mxu0 0.0
        %2754 = vmatprep.subr.mxu0 0.0
        %2755 = vmatpush1.msra.mxu0 0.0
        %2756 = vmatprep.subr.mxu0 0.0
        %2757 = vmatpush1.msra.mxu0 0.0
        %2758 = vmatprep.subr.mxu0 0.0
        %2759 = vmatpush1.msra.mxu0 0.0
        %2760 = vmatprep.subr.mxu0 0.0
        %2761 = vmatpush1.msra.mxu0 0.0
        %2762 = vmatprep.subr.mxu0 0.0
        %2763 = vmatpush1.msra.mxu0 0.0
        %2764 = vmatprep.subr.mxu0 0.0
        %2765 = vmatpush1.msra.mxu0 0.0
        %2766 = vmatprep.subr.mxu0 0.0
        %2767 = vmatpush1.msra.mxu0 0.0
        %2768 = vmatprep.subr.mxu0 0.0
        %2769 = vmatpush1.msra.mxu0 %v2733
        %2770 = vmatprep.subr.mxu0 0.0
        %2771 = vmatpush2.msra.mxu0 0.0
        %2772 = vmatprep.subr.mxu0 0.0
        %2773 = vmatpush2.msra.mxu0 0.0
        %2774 = vmatprep.subr.mxu0 0.0
        %2775 = vmatpush2.msra.mxu0 0.0
        %2776 = vmatprep.subr.mxu0 0.0
        %2777 = vmatpush2.msra.mxu0 0.0
        %2778 = vmatprep.subr.mxu0 0.0
        %2779 = vmatpush2.msra.mxu0 0.0
        %2780 = vmatprep.subr.mxu0 0.0
        %2781 = vmatpush2.msra.mxu0 0.0
        %2782 = vmatprep.subr.mxu0 0.0
        %2783 = vmatpush2.msra.mxu0 0.0
        %2784 = vmatprep.subr.mxu0 0.0
        %2785 = vmatpush2.msra.mxu0 0.0
        %2786 = vmatprep.subr.mxu0 0.0
        %2787 = vmatpush2.msra.mxu0 0.0
        %2788 = vmatprep.subr.mxu0 0.0
        %2789 = vmatpush2.msra.mxu0 0.0
        %2790 = vmatprep.subr.mxu0 0.0
        %2791 = vmatpush2.msra.mxu0 0.0
        %2792 = vmatprep.subr.mxu0 0.0
        %2793 = vmatpush2.msra.mxu0 0.0
        %2794 = vmatprep.subr.mxu0 0.0
        %2795 = vmatpush2.msra.mxu0 0.0
        %2796 = vmatprep.subr.mxu0 0.0
        %2797 = vmatpush2.msra.mxu0 0.0
        %2798 = vmatprep.subr.mxu0 0.0
        %2799 = vmatpush2.msra.mxu0 0.0
        %2800 = vmatprep.subr.mxu0 0.0
        %2801 = vmatpush2.msra.mxu0 0.0
        %2802 = vmatprep.mubr.f32.mxu0 0.0
        %2803 = vmatmul.mubr.f32.gmra.mxu0 %v2736
        %v2804 = vpop.f32.mrf.mxu0
        %v2805 = vadd.f32 0.0, %v2804
        %v2806 = vpop.f32.mrf.mxu0
        %2807 = vdwg.mxu0
        %2808 = vrot.lane.b32.xlu0 %v484, 80
        %v2809 = vpop.permute.xlu0 %2808
        %v2812 = vsel %vm1109, %v2497, 0
        %2814 = vmatprep.subr.mxu0 0.0
        %2815 = vmatpush1.msra.mxu0 0.0
        %2816 = vmatprep.subr.mxu0 0.0
        %2817 = vmatpush1.msra.mxu0 0.0
        %2818 = vmatprep.subr.mxu0 0.0
        %2819 = vmatpush1.msra.mxu0 0.0
        %2820 = vmatprep.subr.mxu0 0.0
        %2821 = vmatpush1.msra.mxu0 0.0
        %2822 = vmatprep.subr.mxu0 0.0
        %2823 = vmatpush1.msra.mxu0 0.0
        %2824 = vmatprep.subr.mxu0 0.0
        %2825 = vmatpush1.msra.mxu0 0.0
        %2826 = vmatprep.subr.mxu0 0.0
        %2827 = vmatpush1.msra.mxu0 0.0
        %2828 = vmatprep.subr.mxu0 0.0
        %2829 = vmatpush1.msra.mxu0 0.0
        %2830 = vmatprep.subr.mxu0 0.0
        %2831 = vmatpush1.msra.mxu0 0.0
        %2832 = vmatprep.subr.mxu0 0.0
        %2833 = vmatpush1.msra.mxu0 0.0
        %2834 = vmatprep.subr.mxu0 0.0
        %2835 = vmatpush1.msra.mxu0 0.0
        %2836 = vmatprep.subr.mxu0 0.0
        %2837 = vmatpush1.msra.mxu0 0.0
        %2838 = vmatprep.subr.mxu0 0.0
        %2839 = vmatpush1.msra.mxu0 0.0
        %2840 = vmatprep.subr.mxu0 0.0
        %2841 = vmatpush1.msra.mxu0 0.0
        %2842 = vmatprep.subr.mxu0 0.0
        %2843 = vmatpush1.msra.mxu0 0.0
        %2844 = vmatprep.subr.mxu0 0.0
        %2845 = vmatpush1.msra.mxu0 %v2809
        %2846 = vmatprep.subr.mxu0 0.0
        %2847 = vmatpush2.msra.mxu0 0.0
        %2848 = vmatprep.subr.mxu0 0.0
        %2849 = vmatpush2.msra.mxu0 0.0
        %2850 = vmatprep.subr.mxu0 0.0
        %2851 = vmatpush2.msra.mxu0 0.0
        %2852 = vmatprep.subr.mxu0 0.0
        %2853 = vmatpush2.msra.mxu0 0.0
        %2854 = vmatprep.subr.mxu0 0.0
        %2855 = vmatpush2.msra.mxu0 0.0
        %2856 = vmatprep.subr.mxu0 0.0
        %2857 = vmatpush2.msra.mxu0 0.0
        %2858 = vmatprep.subr.mxu0 0.0
        %2859 = vmatpush2.msra.mxu0 0.0
        %2860 = vmatprep.subr.mxu0 0.0
        %2861 = vmatpush2.msra.mxu0 0.0
        %2862 = vmatprep.subr.mxu0 0.0
        %2863 = vmatpush2.msra.mxu0 0.0
        %2864 = vmatprep.subr.mxu0 0.0
        %2865 = vmatpush2.msra.mxu0 0.0
        %2866 = vmatprep.subr.mxu0 0.0
        %2867 = vmatpush2.msra.mxu0 0.0
        %2868 = vmatprep.subr.mxu0 0.0
        %2869 = vmatpush2.msra.mxu0 0.0
        %2870 = vmatprep.subr.mxu0 0.0
        %2871 = vmatpush2.msra.mxu0 0.0
        %2872 = vmatprep.subr.mxu0 0.0
        %2873 = vmatpush2.msra.mxu0 0.0
        %2874 = vmatprep.subr.mxu0 0.0
        %2875 = vmatpush2.msra.mxu0 0.0
        %2876 = vmatprep.subr.mxu0 0.0
        %2877 = vmatpush2.msra.mxu0 0.0
        %2878 = vmatprep.mubr.f32.mxu0 0.0
        %2879 = vmatmul.mubr.f32.gmra.mxu0 %v2812
        %v2880 = vpop.f32.mrf.mxu0
        %v2881 = vadd.f32 0.0, %v2880
        %v2882 = vpop.f32.mrf.mxu0
        %2883 = vdwg.mxu0
        %2884 = vrot.lane.b32.xlu0 %v489, 80
        %v2885 = vpop.permute.xlu0 %2884
        %v2888 = vsel %vm1109, %v2499, 0
        %2890 = vmatprep.subr.mxu0 0.0
        %2891 = vmatpush1.msra.mxu0 0.0
        %2892 = vmatprep.subr.mxu0 0.0
        %2893 = vmatpush1.msra.mxu0 0.0
        %2894 = vmatprep.subr.mxu0 0.0
        %2895 = vmatpush1.msra.mxu0 0.0
        %2896 = vmatprep.subr.mxu0 0.0
        %2897 = vmatpush1.msra.mxu0 0.0
        %2898 = vmatprep.subr.mxu0 0.0
        %2899 = vmatpush1.msra.mxu0 0.0
        %2900 = vmatprep.subr.mxu0 0.0
        %2901 = vmatpush1.msra.mxu0 0.0
        %2902 = vmatprep.subr.mxu0 0.0
        %2903 = vmatpush1.msra.mxu0 0.0
        %2904 = vmatprep.subr.mxu0 0.0
        %2905 = vmatpush1.msra.mxu0 0.0
        %2906 = vmatprep.subr.mxu0 0.0
        %2907 = vmatpush1.msra.mxu0 0.0
        %2908 = vmatprep.subr.mxu0 0.0
        %2909 = vmatpush1.msra.mxu0 0.0
        %2910 = vmatprep.subr.mxu0 0.0
        %2911 = vmatpush1.msra.mxu0 0.0
        %2912 = vmatprep.subr.mxu0 0.0
        %2913 = vmatpush1.msra.mxu0 0.0
        %2914 = vmatprep.subr.mxu0 0.0
        %2915 = vmatpush1.msra.mxu0 0.0
        %2916 = vmatprep.subr.mxu0 0.0
        %2917 = vmatpush1.msra.mxu0 0.0
        %2918 = vmatprep.subr.mxu0 0.0
        %2919 = vmatpush1.msra.mxu0 0.0
        %2920 = vmatprep.subr.mxu0 0.0
        %2921 = vmatpush1.msra.mxu0 %v2885
        %2922 = vmatprep.subr.mxu0 0.0
        %2923 = vmatpush2.msra.mxu0 0.0
        %2924 = vmatprep.subr.mxu0 0.0
        %2925 = vmatpush2.msra.mxu0 0.0
        %2926 = vmatprep.subr.mxu0 0.0
        %2927 = vmatpush2.msra.mxu0 0.0
        %2928 = vmatprep.subr.mxu0 0.0
        %2929 = vmatpush2.msra.mxu0 0.0
        %2930 = vmatprep.subr.mxu0 0.0
        %2931 = vmatpush2.msra.mxu0 0.0
        %2932 = vmatprep.subr.mxu0 0.0
        %2933 = vmatpush2.msra.mxu0 0.0
        %2934 = vmatprep.subr.mxu0 0.0
        %2935 = vmatpush2.msra.mxu0 0.0
        %2936 = vmatprep.subr.mxu0 0.0
        %2937 = vmatpush2.msra.mxu0 0.0
        %2938 = vmatprep.subr.mxu0 0.0
        %2939 = vmatpush2.msra.mxu0 0.0
        %2940 = vmatprep.subr.mxu0 0.0
        %2941 = vmatpush2.msra.mxu0 0.0
        %2942 = vmatprep.subr.mxu0 0.0
        %2943 = vmatpush2.msra.mxu0 0.0
        %2944 = vmatprep.subr.mxu0 0.0
        %2945 = vmatpush2.msra.mxu0 0.0
        %2946 = vmatprep.subr.mxu0 0.0
        %2947 = vmatpush2.msra.mxu0 0.0
        %2948 = vmatprep.subr.mxu0 0.0
        %2949 = vmatpush2.msra.mxu0 0.0
        %2950 = vmatprep.subr.mxu0 0.0
        %2951 = vmatpush2.msra.mxu0 0.0
        %2952 = vmatprep.subr.mxu0 0.0
        %2953 = vmatpush2.msra.mxu0 0.0
        %2954 = vmatprep.mubr.f32.mxu0 0.0
        %2955 = vmatmul.mubr.f32.gmra.mxu0 %v2888
        %v2956 = vpop.f32.mrf.mxu0
        %v2957 = vadd.f32 0.0, %v2956
        %v2958 = vpop.f32.mrf.mxu0
        %2959 = vdwg.mxu0
        %2960 = vrot.lane.b32.xlu0 %v494, 80
        %v2961 = vpop.permute.xlu0 %2960
        %v2964 = vsel %vm1109, %v2501, 0
        %2966 = vmatprep.subr.mxu0 0.0
        %2967 = vmatpush1.msra.mxu0 0.0
        %2968 = vmatprep.subr.mxu0 0.0
        %2969 = vmatpush1.msra.mxu0 0.0
        %2970 = vmatprep.subr.mxu0 0.0
        %2971 = vmatpush1.msra.mxu0 0.0
        %2972 = vmatprep.subr.mxu0 0.0
        %2973 = vmatpush1.msra.mxu0 0.0
        %2974 = vmatprep.subr.mxu0 0.0
        %2975 = vmatpush1.msra.mxu0 0.0
        %2976 = vmatprep.subr.mxu0 0.0
        %2977 = vmatpush1.msra.mxu0 0.0
        %2978 = vmatprep.subr.mxu0 0.0
        %2979 = vmatpush1.msra.mxu0 0.0
        %2980 = vmatprep.subr.mxu0 0.0
        %2981 = vmatpush1.msra.mxu0 0.0
        %2982 = vmatprep.subr.mxu0 0.0
        %2983 = vmatpush1.msra.mxu0 0.0
        %2984 = vmatprep.subr.mxu0 0.0
        %2985 = vmatpush1.msra.mxu0 0.0
        %2986 = vmatprep.subr.mxu0 0.0
        %2987 = vmatpush1.msra.mxu0 0.0
        %2988 = vmatprep.subr.mxu0 0.0
        %2989 = vmatpush1.msra.mxu0 0.0
        %2990 = vmatprep.subr.mxu0 0.0
        %2991 = vmatpush1.msra.mxu0 0.0
        %2992 = vmatprep.subr.mxu0 0.0
        %2993 = vmatpush1.msra.mxu0 0.0
        %2994 = vmatprep.subr.mxu0 0.0
        %2995 = vmatpush1.msra.mxu0 0.0
        %2996 = vmatprep.subr.mxu0 0.0
        %2997 = vmatpush1.msra.mxu0 %v2961
        %2998 = vmatprep.subr.mxu0 0.0
        %2999 = vmatpush2.msra.mxu0 0.0
        %3000 = vmatprep.subr.mxu0 0.0
        %3001 = vmatpush2.msra.mxu0 0.0
        %3002 = vmatprep.subr.mxu0 0.0
        %3003 = vmatpush2.msra.mxu0 0.0
        %3004 = vmatprep.subr.mxu0 0.0
        %3005 = vmatpush2.msra.mxu0 0.0
        %3006 = vmatprep.subr.mxu0 0.0
        %3007 = vmatpush2.msra.mxu0 0.0
        %3008 = vmatprep.subr.mxu0 0.0
        %3009 = vmatpush2.msra.mxu0 0.0
        %3010 = vmatprep.subr.mxu0 0.0
        %3011 = vmatpush2.msra.mxu0 0.0
        %3012 = vmatprep.subr.mxu0 0.0
        %3013 = vmatpush2.msra.mxu0 0.0
        %3014 = vmatprep.subr.mxu0 0.0
        %3015 = vmatpush2.msra.mxu0 0.0
        %3016 = vmatprep.subr.mxu0 0.0
        %3017 = vmatpush2.msra.mxu0 0.0
        %3018 = vmatprep.subr.mxu0 0.0
        %3019 = vmatpush2.msra.mxu0 0.0
        %3020 = vmatprep.subr.mxu0 0.0
        %3021 = vmatpush2.msra.mxu0 0.0
        %3022 = vmatprep.subr.mxu0 0.0
        %3023 = vmatpush2.msra.mxu0 0.0
        %3024 = vmatprep.subr.mxu0 0.0
        %3025 = vmatpush2.msra.mxu0 0.0
        %3026 = vmatprep.subr.mxu0 0.0
        %3027 = vmatpush2.msra.mxu0 0.0
        %3028 = vmatprep.subr.mxu0 0.0
        %3029 = vmatpush2.msra.mxu0 0.0
        %3030 = vmatprep.mubr.f32.mxu0 0.0
        %3031 = vmatmul.mubr.f32.gmra.mxu0 %v2964
        %v3032 = vpop.f32.mrf.mxu0
        %v3033 = vadd.f32 0.0, %v3032
        %v3034 = vpop.f32.mrf.mxu0
        %3035 = vdwg.mxu0
        %3036 = vrot.lane.b32.xlu0 %v499, 80
        %v3037 = vpop.permute.xlu0 %3036
        %v3040 = vsel %vm1109, %v2503, 0
        %3042 = vmatprep.subr.mxu0 0.0
        %3043 = vmatpush1.msra.mxu0 0.0
        %3044 = vmatprep.subr.mxu0 0.0
        %3045 = vmatpush1.msra.mxu0 0.0
        %3046 = vmatprep.subr.mxu0 0.0
        %3047 = vmatpush1.msra.mxu0 0.0
        %3048 = vmatprep.subr.mxu0 0.0
        %3049 = vmatpush1.msra.mxu0 0.0
        %3050 = vmatprep.subr.mxu0 0.0
        %3051 = vmatpush1.msra.mxu0 0.0
        %3052 = vmatprep.subr.mxu0 0.0
        %3053 = vmatpush1.msra.mxu0 0.0
        %3054 = vmatprep.subr.mxu0 0.0
        %3055 = vmatpush1.msra.mxu0 0.0
        %3056 = vmatprep.subr.mxu0 0.0
        %3057 = vmatpush1.msra.mxu0 0.0
        %3058 = vmatprep.subr.mxu0 0.0
        %3059 = vmatpush1.msra.mxu0 0.0
        %3060 = vmatprep.subr.mxu0 0.0
        %3061 = vmatpush1.msra.mxu0 0.0
        %3062 = vmatprep.subr.mxu0 0.0
        %3063 = vmatpush1.msra.mxu0 0.0
        %3064 = vmatprep.subr.mxu0 0.0
        %3065 = vmatpush1.msra.mxu0 0.0
        %3066 = vmatprep.subr.mxu0 0.0
        %3067 = vmatpush1.msra.mxu0 0.0
        %3068 = vmatprep.subr.mxu0 0.0
        %3069 = vmatpush1.msra.mxu0 0.0
        %3070 = vmatprep.subr.mxu0 0.0
        %3071 = vmatpush1.msra.mxu0 0.0
        %3072 = vmatprep.subr.mxu0 0.0
        %3073 = vmatpush1.msra.mxu0 %v3037
        %3074 = vmatprep.subr.mxu0 0.0
        %3075 = vmatpush2.msra.mxu0 0.0
        %3076 = vmatprep.subr.mxu0 0.0
        %3077 = vmatpush2.msra.mxu0 0.0
        %3078 = vmatprep.subr.mxu0 0.0
        %3079 = vmatpush2.msra.mxu0 0.0
        %3080 = vmatprep.subr.mxu0 0.0
        %3081 = vmatpush2.msra.mxu0 0.0
        %3082 = vmatprep.subr.mxu0 0.0
        %3083 = vmatpush2.msra.mxu0 0.0
        %3084 = vmatprep.subr.mxu0 0.0
        %3085 = vmatpush2.msra.mxu0 0.0
        %3086 = vmatprep.subr.mxu0 0.0
        %3087 = vmatpush2.msra.mxu0 0.0
        %3088 = vmatprep.subr.mxu0 0.0
        %3089 = vmatpush2.msra.mxu0 0.0
        %3090 = vmatprep.subr.mxu0 0.0
        %3091 = vmatpush2.msra.mxu0 0.0
        %3092 = vmatprep.subr.mxu0 0.0
        %3093 = vmatpush2.msra.mxu0 0.0
        %3094 = vmatprep.subr.mxu0 0.0
        %3095 = vmatpush2.msra.mxu0 0.0
        %3096 = vmatprep.subr.mxu0 0.0
        %3097 = vmatpush2.msra.mxu0 0.0
        %3098 = vmatprep.subr.mxu0 0.0
        %3099 = vmatpush2.msra.mxu0 0.0
        %3100 = vmatprep.subr.mxu0 0.0
        %3101 = vmatpush2.msra.mxu0 0.0
        %3102 = vmatprep.subr.mxu0 0.0
        %3103 = vmatpush2.msra.mxu0 0.0
        %3104 = vmatprep.subr.mxu0 0.0
        %3105 = vmatpush2.msra.mxu0 0.0
        %3106 = vmatprep.mubr.f32.mxu0 0.0
        %3107 = vmatmul.mubr.f32.gmra.mxu0 %v3040
        %v3108 = vpop.f32.mrf.mxu0
        %v3109 = vadd.f32 0.0, %v3108
        %v3110 = vpop.f32.mrf.mxu0
        %3111 = vdwg.mxu0
        %s3112 = scalar_lea.vmem %s3, 16
        %v3113 = vld [vmem:[%s3112] sm:$0xff]
        %v3114 = vld [vmem:[%s3112 + $0x8] sm:$0xff]
        %v3116 = vsel %vm508, %v2577, 0
        %v3119 = vsel %vm508, %v2653, 0
        %v3122 = vsel %vm508, %v2729, 0
        %v3125 = vsel %vm508, %v2805, 0
        %v3128 = vsel %vm508, %v2881, 0
        %v3131 = vsel %vm508, %v2957, 0
        %v3134 = vsel %vm508, %v3033, 0
        %v3137 = vsel %vm508, %v3109, 0
        %3139 = vmatprep.subr.mxu0 0.0
        %3140 = vmatpush1.msra.mxu0 0.0
        %3141 = vmatprep.subr.mxu0 0.0
        %3142 = vmatpush1.msra.mxu0 0.0
        %3143 = vmatprep.subr.mxu0 0.0
        %3144 = vmatpush1.msra.mxu0 0.0
        %3145 = vmatprep.subr.mxu0 0.0
        %3146 = vmatpush1.msra.mxu0 0.0
        %3147 = vmatprep.subr.mxu0 0.0
        %3148 = vmatpush1.msra.mxu0 0.0
        %3149 = vmatprep.subr.mxu0 0.0
        %3150 = vmatpush1.msra.mxu0 0.0
        %3151 = vmatprep.subr.mxu0 0.0
        %3152 = vmatpush1.msra.mxu0 0.0
        %3153 = vmatprep.subr.mxu0 0.0
        %3154 = vmatpush1.msra.mxu0 0.0
        %3155 = vmatprep.subr.mxu0 0.0
        %3156 = vmatpush1.msra.mxu0 0.0
        %3157 = vmatprep.subr.mxu0 0.0
        %3158 = vmatpush1.msra.mxu0 0.0
        %3159 = vmatprep.subr.mxu0 0.0
        %3160 = vmatpush1.msra.mxu0 0.0
        %3161 = vmatprep.subr.mxu0 0.0
        %3162 = vmatpush1.msra.mxu0 0.0
        %3163 = vmatprep.subr.mxu0 0.0
        %3164 = vmatpush1.msra.mxu0 0.0
        %3165 = vmatprep.subr.mxu0 0.0
        %3166 = vmatpush1.msra.mxu0 0.0
        %3167 = vmatprep.subr.mxu0 0.0
        %3168 = vmatpush1.msra.mxu0 %v3114
        %3169 = vmatprep.subr.mxu0 0.0
        %3170 = vmatpush1.msra.mxu0 %v3113
        %3171 = vmatprep.subr.mxu0 0.0
        %3172 = vmatpush2.msra.mxu0 0.0
        %3173 = vmatprep.subr.mxu0 0.0
        %3174 = vmatpush2.msra.mxu0 0.0
        %3175 = vmatprep.subr.mxu0 0.0
        %3176 = vmatpush2.msra.mxu0 0.0
        %3177 = vmatprep.subr.mxu0 0.0
        %3178 = vmatpush2.msra.mxu0 0.0
        %3179 = vmatprep.subr.mxu0 0.0
        %3180 = vmatpush2.msra.mxu0 0.0
        %3181 = vmatprep.subr.mxu0 0.0
        %3182 = vmatpush2.msra.mxu0 0.0
        %3183 = vmatprep.subr.mxu0 0.0
        %3184 = vmatpush2.msra.mxu0 0.0
        %3185 = vmatprep.subr.mxu0 0.0
        %3186 = vmatpush2.msra.mxu0 0.0
        %3187 = vmatprep.subr.mxu0 0.0
        %3188 = vmatpush2.msra.mxu0 0.0
        %3189 = vmatprep.subr.mxu0 0.0
        %3190 = vmatpush2.msra.mxu0 0.0
        %3191 = vmatprep.subr.mxu0 0.0
        %3192 = vmatpush2.msra.mxu0 0.0
        %3193 = vmatprep.subr.mxu0 0.0
        %3194 = vmatpush2.msra.mxu0 0.0
        %3195 = vmatprep.subr.mxu0 0.0
        %3196 = vmatpush2.msra.mxu0 0.0
        %3197 = vmatprep.subr.mxu0 0.0
        %3198 = vmatpush2.msra.mxu0 0.0
        %3199 = vmatprep.subr.mxu0 0.0
        %3200 = vmatpush2.msra.mxu0 0.0
        %3201 = vmatprep.subr.mxu0 0.0
        %3202 = vmatpush2.msra.mxu0 0.0
        %3203 = vmatprep.mubr.f32.mxu0 0.0
        %3204 = vmatmul.mubr.f32.gmra.mxu0 %v3116
        %v3205 = vpop.f32.mrf.mxu0
        %v3206 = vadd.f32 0.0, %v3205
        %v3207 = vpop.f32.mrf.mxu0
        %3208 = vmatprep.mubr.f32.mxu0 0.0
        %3209 = vmatmul.mubr.f32.gmra.mxu0 %v3119
        %v3210 = vpop.f32.mrf.mxu0
        %v3211 = vadd.f32 0.0, %v3210
        %v3212 = vpop.f32.mrf.mxu0
        %3213 = vmatprep.mubr.f32.mxu0 0.0
        %3214 = vmatmul.mubr.f32.gmra.mxu0 %v3122
        %v3215 = vpop.f32.mrf.mxu0
        %v3216 = vadd.f32 0.0, %v3215
        %v3217 = vpop.f32.mrf.mxu0
        %3218 = vmatprep.mubr.f32.mxu0 0.0
        %3219 = vmatmul.mubr.f32.gmra.mxu0 %v3125
        %v3220 = vpop.f32.mrf.mxu0
        %v3221 = vadd.f32 0.0, %v3220
        %v3222 = vpop.f32.mrf.mxu0
        %3223 = vmatprep.mubr.f32.mxu0 0.0
        %3224 = vmatmul.mubr.f32.gmra.mxu0 %v3128
        %v3225 = vpop.f32.mrf.mxu0
        %v3226 = vadd.f32 0.0, %v3225
        %v3227 = vpop.f32.mrf.mxu0
        %3228 = vmatprep.mubr.f32.mxu0 0.0
        %3229 = vmatmul.mubr.f32.gmra.mxu0 %v3131
        %v3230 = vpop.f32.mrf.mxu0
        %v3231 = vadd.f32 0.0, %v3230
        %v3232 = vpop.f32.mrf.mxu0
        %3233 = vmatprep.mubr.f32.mxu0 0.0
        %3234 = vmatmul.mubr.f32.gmra.mxu0 %v3134
        %v3235 = vpop.f32.mrf.mxu0
        %v3236 = vadd.f32 0.0, %v3235
        %v3237 = vpop.f32.mrf.mxu0
        %3238 = vmatprep.mubr.f32.mxu0 0.0
        %3239 = vmatmul.mubr.f32.gmra.mxu0 %v3137
        %v3240 = vpop.f32.mrf.mxu0
        %v3241 = vadd.f32 0.0, %v3240
        %v3242 = vpop.f32.mrf.mxu0
        %3243 = vdwg.mxu0
        %v3245 = vsel %vm508, %v1271, 0
        %v3248 = vsel %vm508, %v1347, 0
        %v3251 = vsel %vm508, %v1423, 0
        %v3254 = vsel %vm508, %v1499, 0
        %v3257 = vsel %vm508, %v1575, 0
        %v3260 = vsel %vm508, %v1651, 0
        %v3263 = vsel %vm508, %v1727, 0
        %v3266 = vsel %vm508, %v1803, 0
        %3268 = vmatprep.subr.mxu0 0.0
        %3269 = vmatpush1.msra.mxu0 0.0
        %3270 = vmatprep.subr.mxu0 0.0
        %3271 = vmatpush1.msra.mxu0 0.0
        %3272 = vmatprep.subr.mxu0 0.0
        %3273 = vmatpush1.msra.mxu0 0.0
        %3274 = vmatprep.subr.mxu0 0.0
        %3275 = vmatpush1.msra.mxu0 0.0
        %3276 = vmatprep.subr.mxu0 0.0
        %3277 = vmatpush1.msra.mxu0 0.0
        %3278 = vmatprep.subr.mxu0 0.0
        %3279 = vmatpush1.msra.mxu0 0.0
        %3280 = vmatprep.subr.mxu0 0.0
        %3281 = vmatpush1.msra.mxu0 0.0
        %3282 = vmatprep.subr.mxu0 0.0
        %3283 = vmatpush1.msra.mxu0 0.0
        %3284 = vmatprep.subr.mxu0 0.0
        %3285 = vmatpush1.msra.mxu0 0.0
        %3286 = vmatprep.subr.mxu0 0.0
        %3287 = vmatpush1.msra.mxu0 0.0
        %3288 = vmatprep.subr.mxu0 0.0
        %3289 = vmatpush1.msra.mxu0 0.0
        %3290 = vmatprep.subr.mxu0 0.0
        %3291 = vmatpush1.msra.mxu0 0.0
        %3292 = vmatprep.subr.mxu0 0.0
        %3293 = vmatpush1.msra.mxu0 0.0
        %3294 = vmatprep.subr.mxu0 0.0
        %3295 = vmatpush1.msra.mxu0 0.0
        %3296 = vmatprep.subr.mxu0 0.0
        %3297 = vmatpush1.msra.mxu0 %v1807
        %3298 = vmatprep.subr.mxu0 0.0
        %3299 = vmatpush1.msra.mxu0 %v1806
        %3300 = vmatprep.subr.mxu0 0.0
        %3301 = vmatpush2.msra.mxu0 0.0
        %3302 = vmatprep.subr.mxu0 0.0
        %3303 = vmatpush2.msra.mxu0 0.0
        %3304 = vmatprep.subr.mxu0 0.0
        %3305 = vmatpush2.msra.mxu0 0.0
        %3306 = vmatprep.subr.mxu0 0.0
        %3307 = vmatpush2.msra.mxu0 0.0
        %3308 = vmatprep.subr.mxu0 0.0
        %3309 = vmatpush2.msra.mxu0 0.0
        %3310 = vmatprep.subr.mxu0 0.0
        %3311 = vmatpush2.msra.mxu0 0.0
        %3312 = vmatprep.subr.mxu0 0.0
        %3313 = vmatpush2.msra.mxu0 0.0
        %3314 = vmatprep.subr.mxu0 0.0
        %3315 = vmatpush2.msra.mxu0 0.0
        %3316 = vmatprep.subr.mxu0 0.0
        %3317 = vmatpush2.msra.mxu0 0.0
        %3318 = vmatprep.subr.mxu0 0.0
        %3319 = vmatpush2.msra.mxu0 0.0
        %3320 = vmatprep.subr.mxu0 0.0
        %3321 = vmatpush2.msra.mxu0 0.0
        %3322 = vmatprep.subr.mxu0 0.0
        %3323 = vmatpush2.msra.mxu0 0.0
        %3324 = vmatprep.subr.mxu0 0.0
        %3325 = vmatpush2.msra.mxu0 0.0
        %3326 = vmatprep.subr.mxu0 0.0
        %3327 = vmatpush2.msra.mxu0 0.0
        %3328 = vmatprep.subr.mxu0 0.0
        %3329 = vmatpush2.msra.mxu0 0.0
        %3330 = vmatprep.subr.mxu0 0.0
        %3331 = vmatpush2.msra.mxu0 0.0
        %3332 = vmatprep.mubr.f32.mxu0 0.0
        %3333 = vmatmul.mubr.f32.gmra.mxu0 %v3245
        %v3334 = vpop.f32.mrf.mxu0
        %v3335 = vadd.f32 %v3206, %v3334
        %v3336 = vpop.f32.mrf.mxu0
        %3337 = vmatprep.mubr.f32.mxu0 0.0
        %3338 = vmatmul.mubr.f32.gmra.mxu0 %v3248
        %v3339 = vpop.f32.mrf.mxu0
        %v3340 = vadd.f32 %v3211, %v3339
        %v3341 = vpop.f32.mrf.mxu0
        %3342 = vmatprep.mubr.f32.mxu0 0.0
        %3343 = vmatmul.mubr.f32.gmra.mxu0 %v3251
        %v3344 = vpop.f32.mrf.mxu0
        %v3345 = vadd.f32 %v3216, %v3344
        %v3346 = vpop.f32.mrf.mxu0
        %3347 = vmatprep.mubr.f32.mxu0 0.0
        %3348 = vmatmul.mubr.f32.gmra.mxu0 %v3254
        %v3349 = vpop.f32.mrf.mxu0
        %v3350 = vadd.f32 %v3221, %v3349
        %v3351 = vpop.f32.mrf.mxu0
        %3352 = vmatprep.mubr.f32.mxu0 0.0
        %3353 = vmatmul.mubr.f32.gmra.mxu0 %v3257
        %v3354 = vpop.f32.mrf.mxu0
        %v3355 = vadd.f32 %v3226, %v3354
        %v3356 = vpop.f32.mrf.mxu0
        %3357 = vmatprep.mubr.f32.mxu0 0.0
        %3358 = vmatmul.mubr.f32.gmra.mxu0 %v3260
        %v3359 = vpop.f32.mrf.mxu0
        %v3360 = vadd.f32 %v3231, %v3359
        %v3361 = vpop.f32.mrf.mxu0
        %3362 = vmatprep.mubr.f32.mxu0 0.0
        %3363 = vmatmul.mubr.f32.gmra.mxu0 %v3263
        %v3364 = vpop.f32.mrf.mxu0
        %v3365 = vadd.f32 %v3236, %v3364
        %v3366 = vpop.f32.mrf.mxu0
        %3367 = vmatprep.mubr.f32.mxu0 0.0
        %3368 = vmatmul.mubr.f32.gmra.mxu0 %v3266
        %v3369 = vpop.f32.mrf.mxu0
        %v3370 = vadd.f32 %v3241, %v3369
        %v3371 = vpop.f32.mrf.mxu0
        %3372 = vdwg.mxu0
        %v3373 = vld [vmem:[%s4] sm:$0x1]
        %v3375 = vlaneseq
        %v3376 = vshrl.u32 %v3375, 7
        %v3377 = vsub.s32 0, %v3376
        %v3378 = vrot.slane %v3373, %v3377
        %v3380 = vadd.f32 %v3335, %v3378
        %v3381 = vadd.f32 %v3340, %v3378
        %v3382 = vadd.f32 %v3345, %v3378
        %v3383 = vadd.f32 %v3350, %v3378
        %v3384 = vadd.f32 %v3355, %v3378
        %v3385 = vadd.f32 %v3360, %v3378
        %v3386 = vadd.f32 %v3365, %v3378
        %v3387 = vadd.f32 %v3370, %v3378
        %v3388 = vadd.f32 %v3380, %v353
        %v3389 = vadd.f32 %v3381, %v354
        %v3390 = vadd.f32 %v3382, %v355
        %v3391 = vadd.f32 %v3383, %v356
        %v3392 = vadd.f32 %v3384, %v357
        %v3393 = vadd.f32 %v3385, %v358
        %v3394 = vadd.f32 %v3386, %v359
        %v3395 = vadd.f32 %v3387, %v360
        %v3396 = vsel %vm372, %v3388, 0.0
        %3397 = vadd.xlane.f32.xlu0 %v3396
        %v3398 = vpop.xlane.xlu0 %3397
        %v3399 = vsel %vm372, %v3389, 0.0
        %3400 = vadd.xlane.f32.xlu0 %v3399
        %v3401 = vpop.xlane.xlu0 %3400
        %v3402 = vsel %vm372, %v3390, 0.0
        %3403 = vadd.xlane.f32.xlu0 %v3402
        %v3404 = vpop.xlane.xlu0 %3403
        %v3405 = vsel %vm372, %v3391, 0.0
        %3406 = vadd.xlane.f32.xlu0 %v3405
        %v3407 = vpop.xlane.xlu0 %3406
        %v3408 = vsel %vm372, %v3392, 0.0
        %3409 = vadd.xlane.f32.xlu0 %v3408
        %v3410 = vpop.xlane.xlu0 %3409
        %v3411 = vsel %vm372, %v3393, 0.0
        %3412 = vadd.xlane.f32.xlu0 %v3411
        %v3413 = vpop.xlane.xlu0 %3412
        %v3414 = vsel %vm372, %v3394, 0.0
        %3415 = vadd.xlane.f32.xlu0 %v3414
        %v3416 = vpop.xlane.xlu0 %3415
        %v3417 = vsel %vm372, %v3395, 0.0
        %3418 = vadd.xlane.f32.xlu0 %v3417
        %v3419 = vpop.xlane.xlu0 %3418
        %v3420 = vrcp.pop 32.0
        %v3421 = vmul.f32 %v3398, %v3420
        %v3422 = vmul.f32 %v3401, %v3420
        %v3423 = vmul.f32 %v3404, %v3420
        %v3424 = vmul.f32 %v3407, %v3420
        %v3425 = vmul.f32 %v3410, %v3420
        %v3426 = vmul.f32 %v3413, %v3420
        %v3427 = vmul.f32 %v3416, %v3420
        %v3428 = vmul.f32 %v3419, %v3420
        %v3429 = vsub.f32 %v3388, %v3421
        %v3430 = vsub.f32 %v3389, %v3422
        %v3431 = vsub.f32 %v3390, %v3423
        %v3432 = vsub.f32 %v3391, %v3424
        %v3433 = vsub.f32 %v3392, %v3425
        %v3434 = vsub.f32 %v3393, %v3426
        %v3435 = vsub.f32 %v3394, %v3427
        %v3436 = vsub.f32 %v3395, %v3428
        %v3437 = vmul.f32 %v3429, %v3429
        %v3438 = vmul.f32 %v3430, %v3430
        %v3439 = vmul.f32 %v3431, %v3431
        %v3440 = vmul.f32 %v3432, %v3432
        %v3441 = vmul.f32 %v3433, %v3433
        %v3442 = vmul.f32 %v3434, %v3434
        %v3443 = vmul.f32 %v3435, %v3435
        %v3444 = vmul.f32 %v3436, %v3436
        %v3445 = vsel %vm372, %v3437, 0.0
        %3446 = vadd.xlane.f32.xlu0 %v3445
        %v3447 = vpop.xlane.xlu0 %3446
        %v3448 = vsel %vm372, %v3438, 0.0
        %3449 = vadd.xlane.f32.xlu0 %v3448
        %v3450 = vpop.xlane.xlu0 %3449
        %v3451 = vsel %vm372, %v3439, 0.0
        %3452 = vadd.xlane.f32.xlu0 %v3451
        %v3453 = vpop.xlane.xlu0 %3452
        %v3454 = vsel %vm372, %v3440, 0.0
        %3455 = vadd.xlane.f32.xlu0 %v3454
        %v3456 = vpop.xlane.xlu0 %3455
        %v3457 = vsel %vm372, %v3441, 0.0
        %3458 = vadd.xlane.f32.xlu0 %v3457
        %v3459 = vpop.xlane.xlu0 %3458
        %v3460 = vsel %vm372, %v3442, 0.0
        %3461 = vadd.xlane.f32.xlu0 %v3460
        %v3462 = vpop.xlane.xlu0 %3461
        %v3463 = vsel %vm372, %v3443, 0.0
        %3464 = vadd.xlane.f32.xlu0 %v3463
        %v3465 = vpop.xlane.xlu0 %3464
        %v3466 = vsel %vm372, %v3444, 0.0
        %3467 = vadd.xlane.f32.xlu0 %v3466
        %v3468 = vpop.xlane.xlu0 %3467
        %v3469 = vmul.f32 %v3447, %v3420
        %v3470 = vmul.f32 %v3450, %v3420
        %v3471 = vmul.f32 %v3453, %v3420
        %v3472 = vmul.f32 %v3456, %v3420
        %v3473 = vmul.f32 %v3459, %v3420
        %v3474 = vmul.f32 %v3462, %v3420
        %v3475 = vmul.f32 %v3465, %v3420
        %v3476 = vmul.f32 %v3468, %v3420
        %v3477 = vadd.f32 %v3469, 1e-05
        %v3478 = vadd.f32 %v3470, 1e-05
        %v3479 = vadd.f32 %v3471, 1e-05
        %v3480 = vadd.f32 %v3472, 1e-05
        %v3481 = vadd.f32 %v3473, 1e-05
        %v3482 = vadd.f32 %v3474, 1e-05
        %v3483 = vadd.f32 %v3475, 1e-05
        %v3484 = vadd.f32 %v3476, 1e-05
        %v3485 = vrsqrt.pop %v3477
        %v3486 = vrsqrt.pop %v3478
        %v3487 = vrsqrt.pop %v3479
        %v3488 = vrsqrt.pop %v3480
        %v3489 = vrsqrt.pop %v3481
        %v3490 = vrsqrt.pop %v3482
        %v3491 = vrsqrt.pop %v3483
        %v3492 = vrsqrt.pop %v3484
        %v3493 = vmul.f32 %v3429, %v3485
        %v3494 = vmul.f32 %v3430, %v3486
        %v3495 = vmul.f32 %v3431, %v3487
        %v3496 = vmul.f32 %v3432, %v3488
        %v3497 = vmul.f32 %v3433, %v3489
        %v3498 = vmul.f32 %v3434, %v3490
        %v3499 = vmul.f32 %v3435, %v3491
        %v3500 = vmul.f32 %v3436, %v3492
        %v3501 = vld [vmem:[%s5] sm:$0xff]
        %v3502 = vld [vmem:[%s5 + $0x8] sm:$0xff]
        %v3503 = vld [vmem:[%s5 + $0x10] sm:$0xff]
        %v3504 = vld [vmem:[%s5 + $0x18] sm:$0xff]
        %v3505 = vld [vmem:[%s6] sm:$0x1]
        %v3507 = vlaneseq
        %v3508 = vshrl.u32 %v3507, 7
        %v3509 = vsub.s32 0, %v3508
        %v3510 = vrot.slane %v3505, %v3509
        %v3513 = vsel %vm372, %v3493, 0
        %v3516 = vsel %vm372, %v3494, 0
        %v3519 = vsel %vm372, %v3495, 0
        %v3522 = vsel %vm372, %v3496, 0
        %v3525 = vsel %vm372, %v3497, 0
        %v3528 = vsel %vm372, %v3498, 0
        %v3531 = vsel %vm372, %v3499, 0
        %v3534 = vsel %vm372, %v3500, 0
        %3536 = vmatprep.subr.mxu0 0.0
        %3537 = vmatpush1.msra.mxu0 0.0
        %3538 = vmatprep.subr.mxu0 0.0
        %3539 = vmatpush1.msra.mxu0 0.0
        %3540 = vmatprep.subr.mxu0 0.0
        %3541 = vmatpush1.msra.mxu0 0.0
        %3542 = vmatprep.subr.mxu0 0.0
        %3543 = vmatpush1.msra.mxu0 0.0
        %3544 = vmatprep.subr.mxu0 0.0
        %3545 = vmatpush1.msra.mxu0 0.0
        %3546 = vmatprep.subr.mxu0 0.0
        %3547 = vmatpush1.msra.mxu0 0.0
        %3548 = vmatprep.subr.mxu0 0.0
        %3549 = vmatpush1.msra.mxu0 0.0
        %3550 = vmatprep.subr.mxu0 0.0
        %3551 = vmatpush1.msra.mxu0 0.0
        %3552 = vmatprep.subr.mxu0 0.0
        %3553 = vmatpush1.msra.mxu0 0.0
        %3554 = vmatprep.subr.mxu0 0.0
        %3555 = vmatpush1.msra.mxu0 0.0
        %3556 = vmatprep.subr.mxu0 0.0
        %3557 = vmatpush1.msra.mxu0 0.0
        %3558 = vmatprep.subr.mxu0 0.0
        %3559 = vmatpush1.msra.mxu0 0.0
        %3560 = vmatprep.subr.mxu0 0.0
        %3561 = vmatpush1.msra.mxu0 %v3504
        %3562 = vmatprep.subr.mxu0 0.0
        %3563 = vmatpush1.msra.mxu0 %v3503
        %3564 = vmatprep.subr.mxu0 0.0
        %3565 = vmatpush1.msra.mxu0 %v3502
        %3566 = vmatprep.subr.mxu0 0.0
        %3567 = vmatpush1.msra.mxu0 %v3501
        %3568 = vmatprep.subr.mxu0 0.0
        %3569 = vmatpush2.msra.mxu0 0.0
        %3570 = vmatprep.subr.mxu0 0.0
        %3571 = vmatpush2.msra.mxu0 0.0
        %3572 = vmatprep.subr.mxu0 0.0
        %3573 = vmatpush2.msra.mxu0 0.0
        %3574 = vmatprep.subr.mxu0 0.0
        %3575 = vmatpush2.msra.mxu0 0.0
        %3576 = vmatprep.subr.mxu0 0.0
        %3577 = vmatpush2.msra.mxu0 0.0
        %3578 = vmatprep.subr.mxu0 0.0
        %3579 = vmatpush2.msra.mxu0 0.0
        %3580 = vmatprep.subr.mxu0 0.0
        %3581 = vmatpush2.msra.mxu0 0.0
        %3582 = vmatprep.subr.mxu0 0.0
        %3583 = vmatpush2.msra.mxu0 0.0
        %3584 = vmatprep.subr.mxu0 0.0
        %3585 = vmatpush2.msra.mxu0 0.0
        %3586 = vmatprep.subr.mxu0 0.0
        %3587 = vmatpush2.msra.mxu0 0.0
        %3588 = vmatprep.subr.mxu0 0.0
        %3589 = vmatpush2.msra.mxu0 0.0
        %3590 = vmatprep.subr.mxu0 0.0
        %3591 = vmatpush2.msra.mxu0 0.0
        %3592 = vmatprep.subr.mxu0 0.0
        %3593 = vmatpush2.msra.mxu0 0.0
        %3594 = vmatprep.subr.mxu0 0.0
        %3595 = vmatpush2.msra.mxu0 0.0
        %3596 = vmatprep.subr.mxu0 0.0
        %3597 = vmatpush2.msra.mxu0 0.0
        %3598 = vmatprep.subr.mxu0 0.0
        %3599 = vmatpush2.msra.mxu0 0.0
        %3600 = vmatprep.mubr.f32.mxu0 0.0
        %3601 = vmatmul.mubr.f32.gmra.mxu0 %v3513
        %v3602 = vpop.f32.mrf.mxu0
        %v3603 = vadd.f32 %v3510, %v3602
        %v3604 = vpop.f32.mrf.mxu0
        %3605 = vmatprep.mubr.f32.mxu0 0.0
        %3606 = vmatmul.mubr.f32.gmra.mxu0 %v3516
        %v3607 = vpop.f32.mrf.mxu0
        %v3608 = vadd.f32 %v3510, %v3607
        %v3609 = vpop.f32.mrf.mxu0
        %3610 = vmatprep.mubr.f32.mxu0 0.0
        %3611 = vmatmul.mubr.f32.gmra.mxu0 %v3519
        %v3612 = vpop.f32.mrf.mxu0
        %v3613 = vadd.f32 %v3510, %v3612
        %v3614 = vpop.f32.mrf.mxu0
        %3615 = vmatprep.mubr.f32.mxu0 0.0
        %3616 = vmatmul.mubr.f32.gmra.mxu0 %v3522
        %v3617 = vpop.f32.mrf.mxu0
        %v3618 = vadd.f32 %v3510, %v3617
        %v3619 = vpop.f32.mrf.mxu0
        %3620 = vmatprep.mubr.f32.mxu0 0.0
        %3621 = vmatmul.mubr.f32.gmra.mxu0 %v3525
        %v3622 = vpop.f32.mrf.mxu0
        %v3623 = vadd.f32 %v3510, %v3622
        %v3624 = vpop.f32.mrf.mxu0
        %3625 = vmatprep.mubr.f32.mxu0 0.0
        %3626 = vmatmul.mubr.f32.gmra.mxu0 %v3528
        %v3627 = vpop.f32.mrf.mxu0
        %v3628 = vadd.f32 %v3510, %v3627
        %v3629 = vpop.f32.mrf.mxu0
        %3630 = vmatprep.mubr.f32.mxu0 0.0
        %3631 = vmatmul.mubr.f32.gmra.mxu0 %v3531
        %v3632 = vpop.f32.mrf.mxu0
        %v3633 = vadd.f32 %v3510, %v3632
        %v3634 = vpop.f32.mrf.mxu0
        %3635 = vmatprep.mubr.f32.mxu0 0.0
        %3636 = vmatmul.mubr.f32.gmra.mxu0 %v3534
        %v3637 = vpop.f32.mrf.mxu0
        %v3638 = vadd.f32 %v3510, %v3637
        %v3639 = vpop.f32.mrf.mxu0
        %3640 = vdwg.mxu0
        %v3641 = vmax.f32 %v3603, 0.0
        %v3642 = vmax.f32 %v3608, 0.0
        %v3643 = vmax.f32 %v3613, 0.0
        %v3644 = vmax.f32 %v3618, 0.0
        %v3645 = vmax.f32 %v3623, 0.0
        %v3646 = vmax.f32 %v3628, 0.0
        %v3647 = vmax.f32 %v3633, 0.0
        %v3648 = vmax.f32 %v3638, 0.0
        %v3649 = vld [vmem:[%s7] sm:$0xff]
        %v3650 = vld [vmem:[%s7 + $0x8] sm:$0xff]
        %v3651 = vld [vmem:[%s7 + $0x10] sm:$0xff]
        %v3652 = vld [vmem:[%s7 + $0x18] sm:$0xff]
        %v3653 = vld [vmem:[%s7 + $0x20] sm:$0xff]
        %v3654 = vld [vmem:[%s7 + $0x28] sm:$0xff]
        %v3655 = vld [vmem:[%s7 + $0x30] sm:$0xff]
        %v3656 = vld [vmem:[%s7 + $0x38] sm:$0xff]
        %v3657 = vld [vmem:[%s8] sm:$0x1]
        %v3659 = vlaneseq
        %v3660 = vshrl.u32 %v3659, 7
        %v3661 = vsub.s32 0, %v3660
        %v3662 = vrot.slane %v3657, %v3661
        %vm3664 = vcmask 523264
        %v3666 = vsel %vm3664, %v3641, 0
        %v3669 = vsel %vm3664, %v3642, 0
        %v3672 = vsel %vm3664, %v3643, 0
        %v3675 = vsel %vm3664, %v3644, 0
        %v3678 = vsel %vm3664, %v3645, 0
        %v3681 = vsel %vm3664, %v3646, 0
        %v3684 = vsel %vm3664, %v3647, 0
        %v3687 = vsel %vm3664, %v3648, 0
        %3689 = vmatprep.subr.mxu0 0.0
        %3690 = vmatpush1.msra.mxu0 0.0
        %3691 = vmatprep.subr.mxu0 0.0
        %3692 = vmatpush1.msra.mxu0 0.0
        %3693 = vmatprep.subr.mxu0 0.0
        %3694 = vmatpush1.msra.mxu0 0.0
        %3695 = vmatprep.subr.mxu0 0.0
        %3696 = vmatpush1.msra.mxu0 0.0
        %3697 = vmatprep.subr.mxu0 0.0
        %3698 = vmatpush1.msra.mxu0 0.0
        %3699 = vmatprep.subr.mxu0 0.0
        %3700 = vmatpush1.msra.mxu0 0.0
        %3701 = vmatprep.subr.mxu0 0.0
        %3702 = vmatpush1.msra.mxu0 0.0
        %3703 = vmatprep.subr.mxu0 0.0
        %3704 = vmatpush1.msra.mxu0 0.0
        %3705 = vmatprep.subr.mxu0 0.0
        %3706 = vmatpush1.msra.mxu0 %v3656
        %3707 = vmatprep.subr.mxu0 0.0
        %3708 = vmatpush1.msra.mxu0 %v3655
        %3709 = vmatprep.subr.mxu0 0.0
        %3710 = vmatpush1.msra.mxu0 %v3654
        %3711 = vmatprep.subr.mxu0 0.0
        %3712 = vmatpush1.msra.mxu0 %v3653
        %3713 = vmatprep.subr.mxu0 0.0
        %3714 = vmatpush1.msra.mxu0 %v3652
        %3715 = vmatprep.subr.mxu0 0.0
        %3716 = vmatpush1.msra.mxu0 %v3651
        %3717 = vmatprep.subr.mxu0 0.0
        %3718 = vmatpush1.msra.mxu0 %v3650
        %3719 = vmatprep.subr.mxu0 0.0
        %3720 = vmatpush1.msra.mxu0 %v3649
        %3721 = vmatprep.subr.mxu0 0.0
        %3722 = vmatpush2.msra.mxu0 0.0
        %3723 = vmatprep.subr.mxu0 0.0
        %3724 = vmatpush2.msra.mxu0 0.0
        %3725 = vmatprep.subr.mxu0 0.0
        %3726 = vmatpush2.msra.mxu0 0.0
        %3727 = vmatprep.subr.mxu0 0.0
        %3728 = vmatpush2.msra.mxu0 0.0
        %3729 = vmatprep.subr.mxu0 0.0
        %3730 = vmatpush2.msra.mxu0 0.0
        %3731 = vmatprep.subr.mxu0 0.0
        %3732 = vmatpush2.msra.mxu0 0.0
        %3733 = vmatprep.subr.mxu0 0.0
        %3734 = vmatpush2.msra.mxu0 0.0
        %3735 = vmatprep.subr.mxu0 0.0
        %3736 = vmatpush2.msra.mxu0 0.0
        %3737 = vmatprep.subr.mxu0 0.0
        %3738 = vmatpush2.msra.mxu0 0.0
        %3739 = vmatprep.subr.mxu0 0.0
        %3740 = vmatpush2.msra.mxu0 0.0
        %3741 = vmatprep.subr.mxu0 0.0
        %3742 = vmatpush2.msra.mxu0 0.0
        %3743 = vmatprep.subr.mxu0 0.0
        %3744 = vmatpush2.msra.mxu0 0.0
        %3745 = vmatprep.subr.mxu0 0.0
        %3746 = vmatpush2.msra.mxu0 0.0
        %3747 = vmatprep.subr.mxu0 0.0
        %3748 = vmatpush2.msra.mxu0 0.0
        %3749 = vmatprep.subr.mxu0 0.0
        %3750 = vmatpush2.msra.mxu0 0.0
        %3751 = vmatprep.subr.mxu0 0.0
        %3752 = vmatpush2.msra.mxu0 0.0
        %3753 = vmatprep.mubr.f32.mxu0 0.0
        %3754 = vmatmul.mubr.f32.gmra.mxu0 %v3666
        %v3755 = vpop.f32.mrf.mxu0
        %v3756 = vadd.f32 %v3662, %v3755
        %v3757 = vpop.f32.mrf.mxu0
        %3758 = vmatprep.mubr.f32.mxu0 0.0
        %3759 = vmatmul.mubr.f32.gmra.mxu0 %v3669
        %v3760 = vpop.f32.mrf.mxu0
        %v3761 = vadd.f32 %v3662, %v3760
        %v3762 = vpop.f32.mrf.mxu0
        %3763 = vmatprep.mubr.f32.mxu0 0.0
        %3764 = vmatmul.mubr.f32.gmra.mxu0 %v3672
        %v3765 = vpop.f32.mrf.mxu0
        %v3766 = vadd.f32 %v3662, %v3765
        %v3767 = vpop.f32.mrf.mxu0
        %3768 = vmatprep.mubr.f32.mxu0 0.0
        %3769 = vmatmul.mubr.f32.gmra.mxu0 %v3675
        %v3770 = vpop.f32.mrf.mxu0
        %v3771 = vadd.f32 %v3662, %v3770
        %v3772 = vpop.f32.mrf.mxu0
        %3773 = vmatprep.mubr.f32.mxu0 0.0
        %3774 = vmatmul.mubr.f32.gmra.mxu0 %v3678
        %v3775 = vpop.f32.mrf.mxu0
        %v3776 = vadd.f32 %v3662, %v3775
        %v3777 = vpop.f32.mrf.mxu0
        %3778 = vmatprep.mubr.f32.mxu0 0.0
        %3779 = vmatmul.mubr.f32.gmra.mxu0 %v3681
        %v3780 = vpop.f32.mrf.mxu0
        %v3781 = vadd.f32 %v3662, %v3780
        %v3782 = vpop.f32.mrf.mxu0
        %3783 = vmatprep.mubr.f32.mxu0 0.0
        %3784 = vmatmul.mubr.f32.gmra.mxu0 %v3684
        %v3785 = vpop.f32.mrf.mxu0
        %v3786 = vadd.f32 %v3662, %v3785
        %v3787 = vpop.f32.mrf.mxu0
        %3788 = vmatprep.mubr.f32.mxu0 0.0
        %3789 = vmatmul.mubr.f32.gmra.mxu0 %v3687
        %v3790 = vpop.f32.mrf.mxu0
        %v3791 = vadd.f32 %v3662, %v3790
        %v3792 = vpop.f32.mrf.mxu0
        %3793 = vdwg.mxu0
        %v3794 = vadd.f32 %v3756, %v3493
        %v3795 = vadd.f32 %v3761, %v3494
        %v3796 = vadd.f32 %v3766, %v3495
        %v3797 = vadd.f32 %v3771, %v3496
        %v3798 = vadd.f32 %v3776, %v3497
        %v3799 = vadd.f32 %v3781, %v3498
        %v3800 = vadd.f32 %v3786, %v3499
        %v3801 = vadd.f32 %v3791, %v3500
        %v3802 = vsel %vm372, %v3794, 0.0
        %3803 = vadd.xlane.f32.xlu0 %v3802
        %v3804 = vpop.xlane.xlu0 %3803
        %v3805 = vsel %vm372, %v3795, 0.0
        %3806 = vadd.xlane.f32.xlu0 %v3805
        %v3807 = vpop.xlane.xlu0 %3806
        %v3808 = vsel %vm372, %v3796, 0.0
        %3809 = vadd.xlane.f32.xlu0 %v3808
        %v3810 = vpop.xlane.xlu0 %3809
        %v3811 = vsel %vm372, %v3797, 0.0
        %3812 = vadd.xlane.f32.xlu0 %v3811
        %v3813 = vpop.xlane.xlu0 %3812
        %v3814 = vsel %vm372, %v3798, 0.0
        %3815 = vadd.xlane.f32.xlu0 %v3814
        %v3816 = vpop.xlane.xlu0 %3815
        %v3817 = vsel %vm372, %v3799, 0.0
        %3818 = vadd.xlane.f32.xlu0 %v3817
        %v3819 = vpop.xlane.xlu0 %3818
        %v3820 = vsel %vm372, %v3800, 0.0
        %3821 = vadd.xlane.f32.xlu0 %v3820
        %v3822 = vpop.xlane.xlu0 %3821
        %v3823 = vsel %vm372, %v3801, 0.0
        %3824 = vadd.xlane.f32.xlu0 %v3823
        %v3825 = vpop.xlane.xlu0 %3824
        %v3826 = vmul.f32 %v3804, %v3420
        %v3827 = vmul.f32 %v3807, %v3420
        %v3828 = vmul.f32 %v3810, %v3420
        %v3829 = vmul.f32 %v3813, %v3420
        %v3830 = vmul.f32 %v3816, %v3420
        %v3831 = vmul.f32 %v3819, %v3420
        %v3832 = vmul.f32 %v3822, %v3420
        %v3833 = vmul.f32 %v3825, %v3420
        %v3834 = vsub.f32 %v3794, %v3826
        %v3835 = vsub.f32 %v3795, %v3827
        %v3836 = vsub.f32 %v3796, %v3828
        %v3837 = vsub.f32 %v3797, %v3829
        %v3838 = vsub.f32 %v3798, %v3830
        %v3839 = vsub.f32 %v3799, %v3831
        %v3840 = vsub.f32 %v3800, %v3832
        %v3841 = vsub.f32 %v3801, %v3833
        %v3842 = vmul.f32 %v3834, %v3834
        %v3843 = vmul.f32 %v3835, %v3835
        %v3844 = vmul.f32 %v3836, %v3836
        %v3845 = vmul.f32 %v3837, %v3837
        %v3846 = vmul.f32 %v3838, %v3838
        %v3847 = vmul.f32 %v3839, %v3839
        %v3848 = vmul.f32 %v3840, %v3840
        %v3849 = vmul.f32 %v3841, %v3841
        %v3850 = vsel %vm372, %v3842, 0.0
        %3851 = vadd.xlane.f32.xlu0 %v3850
        %v3852 = vpop.xlane.xlu0 %3851
        %v3853 = vsel %vm372, %v3843, 0.0
        %3854 = vadd.xlane.f32.xlu0 %v3853
        %v3855 = vpop.xlane.xlu0 %3854
        %v3856 = vsel %vm372, %v3844, 0.0
        %3857 = vadd.xlane.f32.xlu0 %v3856
        %v3858 = vpop.xlane.xlu0 %3857
        %v3859 = vsel %vm372, %v3845, 0.0
        %3860 = vadd.xlane.f32.xlu0 %v3859
        %v3861 = vpop.xlane.xlu0 %3860
        %v3862 = vsel %vm372, %v3846, 0.0
        %3863 = vadd.xlane.f32.xlu0 %v3862
        %v3864 = vpop.xlane.xlu0 %3863
        %v3865 = vsel %vm372, %v3847, 0.0
        %3866 = vadd.xlane.f32.xlu0 %v3865
        %v3867 = vpop.xlane.xlu0 %3866
        %v3868 = vsel %vm372, %v3848, 0.0
        %3869 = vadd.xlane.f32.xlu0 %v3868
        %v3870 = vpop.xlane.xlu0 %3869
        %v3871 = vsel %vm372, %v3849, 0.0
        %3872 = vadd.xlane.f32.xlu0 %v3871
        %v3873 = vpop.xlane.xlu0 %3872
        %v3874 = vmul.f32 %v3852, %v3420
        %v3875 = vmul.f32 %v3855, %v3420
        %v3876 = vmul.f32 %v3858, %v3420
        %v3877 = vmul.f32 %v3861, %v3420
        %v3878 = vmul.f32 %v3864, %v3420
        %v3879 = vmul.f32 %v3867, %v3420
        %v3880 = vmul.f32 %v3870, %v3420
        %v3881 = vmul.f32 %v3873, %v3420
        %v3882 = vadd.f32 %v3874, 1e-05
        %v3883 = vadd.f32 %v3875, 1e-05
        %v3884 = vadd.f32 %v3876, 1e-05
        %v3885 = vadd.f32 %v3877, 1e-05
        %v3886 = vadd.f32 %v3878, 1e-05
        %v3887 = vadd.f32 %v3879, 1e-05
        %v3888 = vadd.f32 %v3880, 1e-05
        %v3889 = vadd.f32 %v3881, 1e-05
        %v3890 = vrsqrt.pop %v3882
        %v3891 = vrsqrt.pop %v3883
        %v3892 = vrsqrt.pop %v3884
        %v3893 = vrsqrt.pop %v3885
        %v3894 = vrsqrt.pop %v3886
        %v3895 = vrsqrt.pop %v3887
        %v3896 = vrsqrt.pop %v3888
        %v3897 = vrsqrt.pop %v3889
        %v3898 = vmul.f32 %v3834, %v3890
        %v3899 = vmul.f32 %v3835, %v3891
        %v3900 = vmul.f32 %v3836, %v3892
        %v3901 = vmul.f32 %v3837, %v3893
        %v3902 = vmul.f32 %v3838, %v3894
        %v3903 = vmul.f32 %v3839, %v3895
        %v3904 = vmul.f32 %v3840, %v3896
        %v3905 = vmul.f32 %v3841, %v3897
        %3906 = vst.msk [vmem:[%s350] sm:$0xff] %vm372, %v3898
        %3907 = vst.msk [vmem:[%s350 + $0x8] sm:$0xff] %vm372, %v3899
        %3908 = vst.msk [vmem:[%s350 + $0x10] sm:$0xff] %vm372, %v3900
        %3909 = vst.msk [vmem:[%s350 + $0x18] sm:$0xff] %vm372, %v3901
        %3910 = vst.msk [vmem:[%s350 + $0x20] sm:$0xff] %vm372, %v3902
        %3911 = vst.msk [vmem:[%s350 + $0x28] sm:$0xff] %vm372, %v3903
        %3912 = vst.msk [vmem:[%s350 + $0x30] sm:$0xff] %vm372, %v3904
        %3913 = vst.msk [vmem:[%s350 + $0x38] sm:$0xff] %vm372, %v3905
        %s3914 = sand.u32 %s228, 1
        %s3915 = scalar_lea.sflag [#allocation4], %s3914
        %s3916 = sand.u32 %s228, 1
        %s3917 = smul.addr %s3916, 64
        %s3918 = scalar_lea.vmem [#allocation5], %s3917
        // Predicated region
        $region61: #{tpu_custom_call.1} parent=55 // pred_check
          %p3919 = pneg %p238
        $region62: #{tpu_custom_call.1} parent=55 // pred_check_branch
          %3921 = sbr.rel (%p3919) target = $region64
        $region63: #{tpu_custom_call.1} parent=55 // pred_region
          %s3922 = smul.u32 8, %s26
          %s3924 = ssub.s32 1024, 1024
          %3925 = vsyncadd %s3915, %s3924
          %s3926 = smul.addr %s3922, 128
          %s3927 = scalar_lea.hbm %s9, %s3926
          %s3928 = sshll.u32 %s3918, 4
          %s3929 = int_to_ptr.vmem [resolvable:$true] %s3928
          %3934 = dma.vmem_to_hbm [thread:$0]  %s3929, 1024, %s3927, %s3915, 128, 128, 8
        $region64: #{tpu_custom_call.1} parent=55 // pred_fallthru
          _
      $region56: #{tpu_custom_call.1} parent=5 // pred_fallthru
        _
      %p3935 = scmp.le.s32.totalorder 2, %s21
      // Predicated region
      $region65: #{tpu_custom_call.1} parent=5 // pred_check
        %p3936 = pneg %p3935
      $region66: #{tpu_custom_call.1} parent=5 // pred_check_branch
        %3938 = sbr.rel (%p3936) target = $region68
      $region67: #{tpu_custom_call.1} parent=5 // pred_region
        %s3939 = ssub.s32 %s21, 2
        // Predicated region
        $region69: #{tpu_custom_call.1} parent=67 // pred_check
          %p3940 = pneg %p244
        $region70: #{tpu_custom_call.1} parent=67 // pred_check_branch
          %3942 = sbr.rel (%p3940) target = $region72
        $region71: #{tpu_custom_call.1} parent=67 // pred_region
          %s3943 = sand.u32 %s229, 1
          %s3944 = scalar_lea.sflag [#allocation4], %s3943
          %s3945 = sand.u32 %s229, 1
          %s3946 = smul.addr %s3945, 64
          %s3947 = scalar_lea.vmem [#allocation5], %s3946
          %3948 = dma.done %s3944, 1024
        $region72: #{tpu_custom_call.1} parent=67 // pred_fallthru
          _
      $region68: #{tpu_custom_call.1} parent=5 // pred_fallthru
        _
    $region6: #{tpu_custom_call.1} parent=1 // loop_footer
      %s25 = sadd.s32 1, %s21
    $region7: #{tpu_custom_call.1} parent=1 // loop_footer_branch
      %20 = sbr.rel target = $region3
    $region8: #{tpu_custom_call.1} parent=1 // loop_exit
      _
    %3949 = vsyncpa [#allocation3], 1
    %s3950 = scalar_lea.sflag [#allocation3], 1
    %3951 = vsyncpa %s3950, 1
    %3952 = vsyncpa [#allocation4], 1
    %s3953 = scalar_lea.sflag [#allocation4], 1
    %3954 = vsyncpa %s3953, 1

</llo_original>
